<compile_context>
chip_gen: v6e
topology: v6e:2x2x1
jax: 0.10.0
libtpu: 0.0.40
codegen_flags: <defaults>
</compile_context>

<pallas_src>
import functools

import jax
import jax.numpy as jnp
import numpy as np
from jax import lax
from jax.experimental import pallas as pl
from jax.experimental.pallas import tpu as pltpu


# ----------------------------------------------------------------------------
# kappa-stereographic helpers SHARED by the Pallas kernels and the pure-JAX
# reference (identical formulation -> no kernel/host formulation skew).
# Only k <= 0 is implemented.
# ----------------------------------------------------------------------------
def _sign_nz(x):
    return jnp.where(x >= 0, 1.0, -1.0)


def _tan_k(u, k, mode="mixed"):
    if mode == "euclidean":
        return u
    sk = jnp.sqrt(jnp.maximum(jnp.abs(k), 1e-15))
    hyp = jnp.tanh(sk * u) * (1.0 / sk)
    if mode == "hyperbolic":
        return hyp
    taylor = u + k * u * u * u / 3.0
    return jnp.where(jnp.abs(k) <= 1e-8, taylor, hyp)


def _artan_k(u, k, mode="mixed"):
    if mode == "euclidean":
        return u
    sk = jnp.sqrt(jnp.maximum(jnp.abs(k), 1e-15))
    z = jnp.clip(sk * u, -1.0 + 1e-7, 1.0 - 1e-7)
    hyp = 0.5 * (jnp.log1p(z) - jnp.log1p(-z)) * (1.0 / sk)
    if mode == "hyperbolic":
        return hyp
    taylor = u - k * u * u * u / 3.0
    return jnp.where(jnp.abs(k) <= 1e-8, taylor, hyp)


def _elu1(x):  # elu(x) + 1
    return jnp.where(x > 0, x + 1.0, jnp.exp(x))


# ----------------------------------------------------------------------------
# Pass 1: accumulate v2_sum (1, HD) and context (HD, HD) over token tiles.
#   kb_ref : (1, HD)  per-lane curvature (head's k repeated head_dim times)
#   s_ref  : (HD, HD) block-diagonal 0/1 matrix (bf16); (a @ S) broadcasts each
#            head's feature-sum back to that head's lanes (segmented reduce on
#            the MXU).
# ----------------------------------------------------------------------------
def _accum_kernel(k_ref, v_ref, m_ref, kb_ref, s_ref, vsum_ref, ctx_ref):
    i = pl.program_id(0)

    @pl.when(i == 0)
    def _():
        vsum_ref[...] = jnp.zeros_like(vsum_ref)
        ctx_ref[...] = jnp.zeros_like(ctx_ref)

    kmat = k_ref[...]
    v = v_ref[...]
    m = m_ref[...]                    # (TILE_N, 1) broadcasts over lanes
    kb = kb_ref[...]                  # (1, HD)     broadcasts over rows
    s_bf = s_ref[...]                 # (HD, HD)    bf16 block-diag 0/1

    def seg_sum(a):                   # per-head feature sum, broadcast back
        return jnp.dot(a.astype(jnp.bfloat16), s_bf,
                       preferred_element_type=jnp.float32)

    # lambda_x(V) = 2 / clamp_min(1 + k ||V_h||^2, 1e-15)
    gamma = 2.0 * pl.reciprocal(
        jnp.maximum(1.0 + kb * seg_sum(v * v), 1e-15), approx=True)
    gm1 = gamma - 1.0
    denom = _sign_nz(gm1) * jnp.maximum(jnp.abs(gm1), 1e-10)

    # parallel_transport0back(V, K) -> key features; masked
    v2 = denom * _elu1(kmat * (0.5 * gamma)) * m
    x = gamma * pl.reciprocal(denom, approx=True) * v * m

    vsum_ref[...] += jnp.sum(v2, axis=0, keepdims=True)
    # context[d, e] += sum_n v2[n, d] * x[n, e]   (bf16 operands, f32 acc)
    ctx_ref[...] += lax.dot_general(
        v2.astype(jnp.bfloat16), x.astype(jnp.bfloat16),
        (((0,), (0,)), ((), ())), preferred_element_type=jnp.float32)

    @pl.when(i == pl.num_programs(0) - 1)
    def _():
        ctx_ref[...] *= s_bf          # keep only same-head (d, e) blocks


# ----------------------------------------------------------------------------
# Pass 2: per-token output tiles (independent across tiles -> "parallel").
# ----------------------------------------------------------------------------
def _output_kernel(q_ref, v_ref, kb_ref, s_ref, vsum_ref, ctx_ref, o_ref, *,
                   mode):
    q = q_ref[...]
    v = v_ref[...]
    kb = kb_ref[...]
    s_bf = s_ref[...]
    vsum = vsum_ref[...]
    ctx_bf = ctx_ref[...].astype(jnp.bfloat16)

    def seg_sum(a):
        return jnp.dot(a.astype(jnp.bfloat16), s_bf,
                       preferred_element_type=jnp.float32)

    gamma = 2.0 * pl.reciprocal(
        jnp.maximum(1.0 + kb * seg_sum(v * v), 1e-15), approx=True)

    # parallel_transport0back(V, Q) -> query features
    v1 = _elu1(q * (0.5 * gamma))

    # D[n, h] = <v1[n, head h], sum_n v2[n, head h]>, broadcast to head lanes.
    # Exact-zero guard + exact divide matches masked_fill_(D == 0, eps=1e-5).
    d = seg_sum(v1 * vsum)
    d_inv = 1.0 / jnp.where(d == 0.0, 1e-5, d)

    xh = jnp.dot(v1.astype(jnp.bfloat16), ctx_bf,
                 preferred_element_type=jnp.float32) * d_inv

    if mode == "euclidean":
        # k == 0 everywhere: project() is identity and
        # tan_k(0.5 * artan_k(n)) / n == 0.5 exactly.
        o_ref[...] = 0.5 * xh
        return

    # project(): clamp the per-head norm to maxnorm (k < 0 heads only).
    sk = jnp.sqrt(jnp.maximum(jnp.abs(kb), 1e-15))
    maxnorm = (1.0 - 4e-3) * pl.reciprocal(sk, approx=True)
    if mode == "mixed":
        maxnorm = jnp.where(kb < 0, maxnorm, 1e15)

    nrm = jnp.maximum(jnp.sqrt(seg_sum(xh * xh)), 1e-15)
    over = nrm > maxnorm
    xh = jnp.where(over, maxnorm * pl.reciprocal(nrm, approx=True), 1.0) * xh
    n_cl = jnp.minimum(nrm, maxnorm)   # norm after project (reused, no 2nd matmul)

    # mobius_scalar_mul(0.5); the trailing project() is dropped: for k <= 0 the
    # factor tan_k(0.5*artan_k(n))/n <= 1 cannot push the point past maxnorm.
    factor = (_tan_k(0.5 * _artan_k(n_cl, kb, mode), kb, mode)
              * pl.reciprocal(n_cl, approx=True))
    o_ref[...] = factor * xh


# ----------------------------------------------------------------------------
# Wrappers
# ----------------------------------------------------------------------------
def geometric_linearized_attention(q, k, v, mask, c, *, num_heads, head_dim,
                                   tile_n=128):
    """Token-major GeometricLinearizedAttention: q/k/v/out are (N, num_heads*head_dim)."""
    n, hd = q.shape
    assert hd == num_heads * head_dim
    f32 = jnp.float32

    # Curvature must be concrete (it is a module parameter). A traced curvature
    # previously skipped the k>0 guard silently -- now it is an explicit error.
    try:
        c_host = np.asarray(c, dtype=np.float32).reshape(-1)
    except (jax.errors.TracerArrayConversionError,
            jax.errors.ConcretizationTypeError) as e:
        raise NotImplementedError(
            "GeometricLinearizedAttention Pallas kernel requires a concrete "
            "(non-traced) curvature parameter") from e

    if c_host.shape[0] == 1:                       # self.c.repeat(num_heads)
        c_host = np.broadcast_to(c_host, (num_heads,)).copy()
    if c_host.shape[0] != num_heads:
        raise ValueError("curvature must have 1 or num_heads entries")
    if np.any(c_host > 0):
        # TODO(synk): spherical branch (k > 0) needs tan/arctan lowering.
        raise NotImplementedError(
            "GeometricLinearizedAttention Pallas kernel supports k <= 0 only")

    if np.all(np.abs(c_host) <= 1e-8):
        mode = "euclidean"
    elif np.all(np.abs(c_host) > 1e-8):
        mode = "hyperbolic"
    else:
        mode = "mixed"

    q = jnp.asarray(q, f32)
    k = jnp.asarray(k, f32)
    v = jnp.asarray(v, f32)
    mask = jnp.asarray(mask, f32).reshape(n)

    # Pad the token axis up to a tile multiple. Padded rows have mask == 0 so
    # they are inert in the pass-1 accumulation; their outputs are sliced off.
    tile_n = max(8, min(int(tile_n), ((n + 7) // 8) * 8))
    n_pad = ((n + tile_n - 1) // tile_n) * tile_n
    if n_pad != n:
        pad2 = ((0, n_pad - n), (0, 0))
        q = jnp.pad(q, pad2)
        k = jnp.pad(k, pad2)
        v = jnp.pad(v, pad2)
        mask = jnp.pad(mask, (0, n_pad - n))
    m2 = mask.reshape(n_pad, 1)
    num_tiles = n_pad // tile_n

    kb = jnp.repeat(jnp.asarray(c_host, f32), head_dim).reshape(1, hd)
    head_id = jnp.arange(hd, dtype=jnp.int32) // head_dim
    seg = (head_id[:, None] == head_id[None, :]).astype(jnp.bfloat16)  # (HD,HD)

    tile_map = lambda i: (i, 0)
    full_map = lambda i: (0, 0)

    def cparams(sem):
        return pltpu.CompilerParams(dimension_semantics=(sem,),
                                    vmem_limit_bytes=32 * 1024 * 1024)

    # ---- pass 1: accumulate v2_sum (1, HD) and context (HD, HD) over tokens
    vsum, ctx = pl.pallas_call(
        _accum_kernel,
        out_shape=(jax.ShapeDtypeStruct((1, hd), f32),
                   jax.ShapeDtypeStruct((hd, hd), f32)),
        grid=(num_tiles,),
        in_specs=[
            pl.BlockSpec((tile_n, hd), tile_map),   # K
            pl.BlockSpec((tile_n, hd), tile_map),   # V
            pl.BlockSpec((tile_n, 1), tile_map),    # mask
            pl.BlockSpec((1, hd), full_map),        # kb
            pl.BlockSpec((hd, hd), full_map),       # S
        ],
        out_specs=(pl.BlockSpec((1, hd), full_map),
                   pl.BlockSpec((hd, hd), full_map)),
        compiler_params=cparams("arbitrary"),
    )(k, v, m2, kb, seg)

    # ---- pass 2: independent per-token output tiles ("parallel" for v7x 2 TCs)
    out = pl.pallas_call(
        functools.partial(_output_kernel, mode=mode),
        out_shape=jax.ShapeDtypeStruct((n_pad, hd), f32),
        grid=(num_tiles,),
        in_specs=[
            pl.BlockSpec((tile_n, hd), tile_map),   # Q
            pl.BlockSpec((tile_n, hd), tile_map),   # V
            pl.BlockSpec((1, hd), full_map),        # kb
            pl.BlockSpec((hd, hd), full_map),       # S
            pl.BlockSpec((1, hd), full_map),        # v2_sum
            pl.BlockSpec((hd, hd), full_map),       # context
        ],
        out_specs=pl.BlockSpec((tile_n, hd), tile_map),
        compiler_params=cparams("parallel"),
    )(q, v, kb, seg, vsum, ctx)

    return out[:n]


def geometric_linearized_attention_heads(q, k, v, mask, c):
    """Drop-in for the PyTorch module signature: q, k, v, out are (H, N, dh)."""
    h, n, dh = q.shape
    to_tok = lambda t: jnp.transpose(t, (1, 0, 2)).reshape(n, h * dh)
    out = geometric_linearized_attention(
        to_tok(q), to_tok(k), to_tok(v), mask, c, num_heads=h, head_dim=dh)
    return jnp.transpose(out.reshape(n, h, dh), (1, 0, 2))


# ----------------------------------------------------------------------------
# Pure-JAX reference (direct transcription of the PyTorch forward, (H, N, dh)).
# ----------------------------------------------------------------------------
def _ref_geometric_linearized_attention(q, k, v, mask, c, eps=1e-5):
    h = q.shape[0]
    c = jnp.asarray(c, jnp.float32).reshape(-1)
    if c.shape[0] == 1:
        c = jnp.broadcast_to(c, (h,))
    curv = c[:, None, None]
    m = mask[None, :, None]

    x = v
    gamma = 2.0 / jnp.maximum(1.0 + curv * jnp.sum(x * x, -1, keepdims=True), 1e-15)
    v1 = q * gamma / 2.0
    v2 = k * gamma / 2.0
    denom = _sign_nz(gamma - 1.0) * jnp.maximum(jnp.abs(gamma - 1.0), 1e-10)
    x = gamma / denom * x * m
    v1 = _elu1(v1)
    v2 = denom * _elu1(v2) * m
    v2_sum = jnp.sum(v2, axis=-2)
    d = jnp.einsum('hnd,hd->hn', v1, v2_sum)
    d_inv = 1.0 / jnp.where(d == 0.0, eps, d)
    context = jnp.einsum('hnd,hne->hde', v2, x)
    xo = jnp.einsum('hde,hnd,hn->hne', context, v1, d_inv)

    def proj(t):
        maxnorm = (1.0 - 4e-3) / jnp.sqrt(jnp.maximum(jnp.abs(curv), 1e-15))
        maxnorm = jnp.where(curv < 0, maxnorm, 1e15)
        nn_ = jnp.maximum(jnp.sqrt(jnp.sum(t * t, -1, keepdims=True)), 1e-15)
        return jnp.where(nn_ > maxnorm, t / nn_ * maxnorm, t)

    xo = proj(xo)
    nn_ = jnp.maximum(jnp.sqrt(jnp.sum(xo * xo, -1, keepdims=True)), 1e-15)
    xo = _tan_k(0.5 * _artan_k(nn_, curv), curv) * xo / nn_
    return proj(xo)


if __name__ == "__main__":
    # HD = num_heads * head_dim = 128 -> full 128-lane vregs, unmasked stores.
    N, NUM_HEADS, HEAD_DIM = 256, 4, 32
    HD = NUM_HEADS * HEAD_DIM

    key = jax.random.PRNGKey(0)
    kq, kk, kv, km = jax.random.split(key, 4)
    # Token-major Q/K/V exactly as the surrounding layer's projections would
    # emit; scaled so V stays inside the stereographic ball for k = -1.
    Q = 0.1 * jax.random.normal(kq, (N, HD), jnp.float32)
    K = 0.1 * jax.random.normal(kk, (N, HD), jnp.float32)
    V = 0.1 * jax.random.normal(kv, (N, HD), jnp.float32)
    mask = (jax.random.uniform(km, (N,)) > 0.25).astype(jnp.float32)

    to_heads = lambda t: jnp.transpose(t.reshape(N, NUM_HEADS, HEAD_DIM), (1, 0, 2))

    def check(c_attn, tile_n):
        fwd = jax.jit(functools.partial(
            geometric_linearized_attention, c=c_attn,
            num_heads=NUM_HEADS, head_dim=HEAD_DIM, tile_n=tile_n))
        out = jax.block_until_ready(fwd(Q, K, V, mask))
        assert out.shape == (N, HD) and out.dtype == jnp.float32
        assert bool(jnp.all(jnp.isfinite(out)))   # mirrors the module's isnan asserts
        ref = _ref_geometric_linearized_attention(
            to_heads(Q), to_heads(K), to_heads(V), mask, c_attn)
        ref = jnp.transpose(ref, (1, 0, 2)).reshape(N, HD)
        # Tolerance accounts for bf16 MXU operands and EUP approx reciprocals.
        np.testing.assert_allclose(np.asarray(out), np.asarray(ref),
                                   rtol=2e-2, atol=5e-3)

    # Per-head curvature: exercises the mixed hyperbolic + Euclidean branch.
    check(jnp.array([-1.0, -0.5, -0.25, 0.0], jnp.float32), tile_n=128)
    # Single shared curvature: trace-time hyperbolic specialization + token
    # padding path (256 -> 288 rows at tile_n=96).
    check(jnp.array([-1.0], jnp.float32), tile_n=96)

    print("KERNEL_OK")
</pallas_src>

<mosaic_0001>
module attributes {stable_mosaic.version = 11 : i64} {
  func.func @_accum_kernel(%arg0: i32, %arg1: memref<128x128xf32, #tpu.memory_space<vmem>>, %arg2: memref<128x128xf32, #tpu.memory_space<vmem>>, %arg3: memref<128x1xf32, #tpu.memory_space<vmem>>, %arg4: memref<1x128xf32, #tpu.memory_space<vmem>>, %arg5: memref<128x128xbf16, #tpu.memory_space<vmem>>, %arg6: memref<1x128xf32, #tpu.memory_space<vmem>>, %arg7: memref<128x128xf32, #tpu.memory_space<vmem>>) attributes {dimension_semantics = [#tpu.dimension_semantics<arbitrary>], iteration_bounds = array<i64: 2>, scalar_prefetch = 0 : i64, scratch_operands = 0 : i64, tpu.core_type = #tpu.core_type<tc>, window_params = [{transform_indices = @transform_0, window_bounds = array<i64: 128, 128>}, {transform_indices = @transform_1, window_bounds = array<i64: 128, 128>}, {transform_indices = @transform_2, window_bounds = array<i64: 128, 1>}, {pipeline_mode = #tpu.pipeline_mode<synchronous>, transform_indices = @transform_3, window_bounds = array<i64: 1, 128>}, {pipeline_mode = #tpu.pipeline_mode<synchronous>, transform_indices = @transform_4, window_bounds = array<i64: 128, 128>}, {pipeline_mode = #tpu.pipeline_mode<synchronous>, transform_indices = @transform_5, window_bounds = array<i64: 1, 128>}, {pipeline_mode = #tpu.pipeline_mode<synchronous>, transform_indices = @transform_6, window_bounds = array<i64: 128, 128>}]} {
    %c0_i32 = arith.constant 0 : i32
    %0 = arith.cmpi eq, %arg0, %c0_i32 : i32
    %1 = arith.extui %0 : i1 to i32
    %c0_i32_0 = arith.constant 0 : i32
    %2 = arith.cmpi ne, %1, %c0_i32_0 : i32
    scf.if %2 {
      %cst_32 = arith.constant 0.000000e+00 : f32
      %62 = vector.broadcast %cst_32 : f32 to vector<1x128xf32>
      %c0_33 = arith.constant 0 : index
      %c0_34 = arith.constant 0 : index
      %63 = vector.load %arg6[%c0_33, %c0_34] : memref<1x128xf32, #tpu.memory_space<vmem>>, vector<1x128xf32>
      tpu.vector_store %arg6[%c0_33, %c0_34], %62 {strides = array<i32>} : memref<1x128xf32, #tpu.memory_space<vmem>>, vector<1x128xf32>,
      %cst_35 = arith.constant 0.000000e+00 : f32
      %64 = vector.broadcast %cst_35 : f32 to vector<128x128xf32>
      %c0_36 = arith.constant 0 : index
      %c0_37 = arith.constant 0 : index
      %65 = vector.load %arg7[%c0_36, %c0_37] : memref<128x128xf32, #tpu.memory_space<vmem>>, vector<128x128xf32>
      tpu.vector_store %arg7[%c0_36, %c0_37], %64 {strides = array<i32>} : memref<128x128xf32, #tpu.memory_space<vmem>>, vector<128x128xf32>,
    } else {
    }
    %c0 = arith.constant 0 : index
    %c0_1 = arith.constant 0 : index
    %3 = vector.load %arg1[%c0, %c0_1] : memref<128x128xf32, #tpu.memory_space<vmem>>, vector<128x128xf32>
    %c0_2 = arith.constant 0 : index
    %c0_3 = arith.constant 0 : index
    %4 = vector.load %arg2[%c0_2, %c0_3] : memref<128x128xf32, #tpu.memory_space<vmem>>, vector<128x128xf32>
    %c0_4 = arith.constant 0 : index
    %c0_5 = arith.constant 0 : index
    %5 = vector.load %arg3[%c0_4, %c0_5] : memref<128x1xf32, #tpu.memory_space<vmem>>, vector<128x1xf32>
    %c0_6 = arith.constant 0 : index
    %c0_7 = arith.constant 0 : index
    %6 = vector.load %arg4[%c0_6, %c0_7] : memref<1x128xf32, #tpu.memory_space<vmem>>, vector<1x128xf32>
    %c0_8 = arith.constant 0 : index
    %c0_9 = arith.constant 0 : index
    %7 = vector.load %arg5[%c0_8, %c0_9] : memref<128x128xbf16, #tpu.memory_space<vmem>>, vector<128x128xbf16>
    %8 = arith.mulf %4, %4 : vector<128x128xf32>
    %9 = arith.truncf %8 : vector<128x128xf32> to vector<128x128xbf16>
    %cst = arith.constant dense<0.000000e+00> : vector<128x128xf32>
    %10 = tpu.matmul %9, %7, %cst {dimension_numbers = #tpu.dot_dimension_numbers<[1], [0], [0], [1], [0, 0, 1, 1], [], []>} : vector<128x128xbf16>, vector<128x128xbf16>, vector<128x128xf32> -> vector<128x128xf32>
    %11 = vector.broadcast %6 : vector<1x128xf32> to vector<128x128xf32>
    %12 = arith.mulf %11, %10 : vector<128x128xf32>
    %cst_10 = arith.constant 1.000000e+00 : f32
    %13 = vector.broadcast %cst_10 : f32 to vector<128x128xf32>
    %14 = arith.addf %13, %12 : vector<128x128xf32>
    %cst_11 = arith.constant 1.000000e-15 : f32
    %15 = vector.broadcast %cst_11 : f32 to vector<128x128xf32>
    %16 = arith.maximumf %14, %15 : vector<128x128xf32>
    %17 = tpu.reciprocal %16 {approx = true} : vector<128x128xf32> -> vector<128x128xf32>
    %cst_12 = arith.constant 2.000000e+00 : f32
    %18 = vector.broadcast %cst_12 : f32 to vector<128x128xf32>
    %19 = arith.mulf %18, %17 : vector<128x128xf32>
    %cst_13 = arith.constant 1.000000e+00 : f32
    %20 = vector.broadcast %cst_13 : f32 to vector<128x128xf32>
    %21 = arith.subf %19, %20 : vector<128x128xf32>
    %cst_14 = arith.constant 0.000000e+00 : f32
    %22 = vector.broadcast %cst_14 : f32 to vector<128x128xf32>
    %23 = arith.cmpf oge, %21, %22 : vector<128x128xf32>
    %cst_15 = arith.constant 1.000000e+00 : f32
    %cst_16 = arith.constant -1.000000e+00 : f32
    %24 = vector.broadcast %cst_15 : f32 to vector<128x128xf32>
    %25 = vector.broadcast %cst_16 : f32 to vector<128x128xf32>
    %26 = arith.select %23, %24, %25 : vector<128x128xi1>, vector<128x128xf32>
    %27 = math.absf %21 : vector<128x128xf32>
    %cst_17 = arith.constant 1.000000e-10 : f32
    %28 = vector.broadcast %cst_17 : f32 to vector<128x128xf32>
    %29 = arith.maximumf %27, %28 : vector<128x128xf32>
    %30 = arith.mulf %26, %29 : vector<128x128xf32>
    %cst_18 = arith.constant 5.000000e-01 : f32
    %31 = vector.broadcast %cst_18 : f32 to vector<128x128xf32>
    %32 = arith.mulf %31, %19 : vector<128x128xf32>
    %33 = arith.mulf %3, %32 : vector<128x128xf32>
    %cst_19 = arith.constant 0.000000e+00 : f32
    %34 = vector.broadcast %cst_19 : f32 to vector<128x128xf32>
    %35 = arith.cmpf ogt, %33, %34 : vector<128x128xf32>
    %cst_20 = arith.constant 1.000000e+00 : f32
    %36 = vector.broadcast %cst_20 : f32 to vector<128x128xf32>
    %37 = arith.addf %33, %36 : vector<128x128xf32>
    %38 = math.exp %33 : vector<128x128xf32>
    %39 = arith.select %35, %37, %38 : vector<128x128xi1>, vector<128x128xf32>
    %40 = arith.mulf %30, %39 : vector<128x128xf32>
    %41 = vector.broadcast %5 : vector<128x1xf32> to vector<128x128xf32>
    %42 = arith.mulf %40, %41 : vector<128x128xf32>
    %43 = tpu.reciprocal %30 {approx = true} : vector<128x128xf32> -> vector<128x128xf32>
    %44 = arith.mulf %19, %43 : vector<128x128xf32>
    %45 = arith.mulf %44, %4 : vector<128x128xf32>
    %46 = vector.broadcast %5 : vector<128x1xf32> to vector<128x128xf32>
    %47 = arith.mulf %45, %46 : vector<128x128xf32>
    %c0_21 = arith.constant 0 : index
    %c0_22 = arith.constant 0 : index
    %48 = vector.load %arg6[%c0_21, %c0_22] : memref<1x128xf32, #tpu.memory_space<vmem>>, vector<1x128xf32>
    %cst_23 = arith.constant dense<0.000000e+00> : vector<128xf32>
    %49 = vector.multi_reduction <add>, %42, %cst_23 [0] : vector<128x128xf32> to vector<128xf32>
    %50 = vector.shape_cast %49 : vector<128xf32> to vector<1x128xf32>
    %51 = arith.addf %48, %50 : vector<1x128xf32>
    %c0_24 = arith.constant 0 : index
    %c0_25 = arith.constant 0 : index
    %52 = vector.load %arg6[%c0_24, %c0_25] : memref<1x128xf32, #tpu.memory_space<vmem>>, vector<1x128xf32>
    tpu.vector_store %arg6[%c0_24, %c0_25], %51 {strides = array<i32>} : memref<1x128xf32, #tpu.memory_space<vmem>>, vector<1x128xf32>,
    %c0_26 = arith.constant 0 : index
    %c0_27 = arith.constant 0 : index
    %53 = vector.load %arg7[%c0_26, %c0_27] : memref<128x128xf32, #tpu.memory_space<vmem>>, vector<128x128xf32>
    %54 = arith.truncf %42 : vector<128x128xf32> to vector<128x128xbf16>
    %55 = arith.truncf %47 : vector<128x128xf32> to vector<128x128xbf16>
    %cst_28 = arith.constant dense<0.000000e+00> : vector<128x128xf32>
    %56 = tpu.matmul %54, %55, %cst_28 {dimension_numbers = #tpu.dot_dimension_numbers<[0], [0], [1], [1], [0, 1, 1, 1], [], []>} : vector<128x128xbf16>, vector<128x128xbf16>, vector<128x128xf32> -> vector<128x128xf32>
    %57 = arith.addf %53, %56 : vector<128x128xf32>
    %c0_29 = arith.constant 0 : index
    %c0_30 = arith.constant 0 : index
    %58 = vector.load %arg7[%c0_29, %c0_30] : memref<128x128xf32, #tpu.memory_space<vmem>>, vector<128x128xf32>
    tpu.vector_store %arg7[%c0_29, %c0_30], %57 {strides = array<i32>} : memref<128x128xf32, #tpu.memory_space<vmem>>, vector<128x128xf32>,
    %c1_i32 = arith.constant 1 : i32
    %59 = arith.cmpi eq, %arg0, %c1_i32 : i32
    %60 = arith.extui %59 : i1 to i32
    %c0_i32_31 = arith.constant 0 : i32
    %61 = arith.cmpi ne, %60, %c0_i32_31 : i32
    scf.if %61 {
      %c0_32 = arith.constant 0 : index
      %c0_33 = arith.constant 0 : index
      %62 = vector.load %arg7[%c0_32, %c0_33] : memref<128x128xf32, #tpu.memory_space<vmem>>, vector<128x128xf32>
      %63 = arith.extf %7 : vector<128x128xbf16> to vector<128x128xf32>
      %64 = arith.mulf %62, %63 : vector<128x128xf32>
      %c0_34 = arith.constant 0 : index
      %c0_35 = arith.constant 0 : index
      %65 = vector.load %arg7[%c0_34, %c0_35] : memref<128x128xf32, #tpu.memory_space<vmem>>, vector<128x128xf32>
      tpu.vector_store %arg7[%c0_34, %c0_35], %64 {strides = array<i32>} : memref<128x128xf32, #tpu.memory_space<vmem>>, vector<128x128xf32>,
    } else {
    }
    return
  }
  func.func @transform_0(%arg0: i32) -> (i32, i32) {
    %c0_i32 = arith.constant 0 : i32
    %c0_i32_0 = arith.constant 0 : i32
    return %arg0, %c0_i32 : i32, i32
  }
  func.func @transform_1(%arg0: i32) -> (i32, i32) {
    %c0_i32 = arith.constant 0 : i32
    %c0_i32_0 = arith.constant 0 : i32
    return %arg0, %c0_i32 : i32, i32
  }
  func.func @transform_2(%arg0: i32) -> (i32, i32) {
    %c0_i32 = arith.constant 0 : i32
    %c0_i32_0 = arith.constant 0 : i32
    return %arg0, %c0_i32 : i32, i32
  }
  func.func @transform_3(%arg0: i32) -> (i32, i32) {
    %c0_i32 = arith.constant 0 : i32
    %c0_i32_0 = arith.constant 0 : i32
    %c0_i32_1 = arith.constant 0 : i32
    return %c0_i32, %c0_i32_0 : i32, i32
  }
  func.func @transform_4(%arg0: i32) -> (i32, i32) {
    %c0_i32 = arith.constant 0 : i32
    %c0_i32_0 = arith.constant 0 : i32
    %c0_i32_1 = arith.constant 0 : i32
    return %c0_i32, %c0_i32_0 : i32, i32
  }
  func.func @transform_5(%arg0: i32) -> (i32, i32) {
    %c0_i32 = arith.constant 0 : i32
    %c0_i32_0 = arith.constant 0 : i32
    %c0_i32_1 = arith.constant 0 : i32
    return %c0_i32, %c0_i32_0 : i32, i32
  }
  func.func @transform_6(%arg0: i32) -> (i32, i32) {
    %c0_i32 = arith.constant 0 : i32
    %c0_i32_0 = arith.constant 0 : i32
    %c0_i32_1 = arith.constant 0 : i32
    return %c0_i32, %c0_i32_0 : i32, i32
  }
}

module attributes {stable_mosaic.version = 11 : i64} {
  func.func @_output_kernel(%arg0: i32, %arg1: memref<128x128xf32, #tpu.memory_space<vmem>>, %arg2: memref<128x128xf32, #tpu.memory_space<vmem>>, %arg3: memref<1x128xf32, #tpu.memory_space<vmem>>, %arg4: memref<128x128xbf16, #tpu.memory_space<vmem>>, %arg5: memref<1x128xf32, #tpu.memory_space<vmem>>, %arg6: memref<128x128xf32, #tpu.memory_space<vmem>>, %arg7: memref<128x128xf32, #tpu.memory_space<vmem>>) attributes {dimension_semantics = [#tpu.dimension_semantics<parallel>], iteration_bounds = array<i64: 2>, scalar_prefetch = 0 : i64, scratch_operands = 0 : i64, tpu.core_type = #tpu.core_type<tc>, window_params = [{transform_indices = @transform_0, window_bounds = array<i64: 128, 128>}, {transform_indices = @transform_1, window_bounds = array<i64: 128, 128>}, {pipeline_mode = #tpu.pipeline_mode<synchronous>, transform_indices = @transform_2, window_bounds = array<i64: 1, 128>}, {pipeline_mode = #tpu.pipeline_mode<synchronous>, transform_indices = @transform_3, window_bounds = array<i64: 128, 128>}, {pipeline_mode = #tpu.pipeline_mode<synchronous>, transform_indices = @transform_4, window_bounds = array<i64: 1, 128>}, {pipeline_mode = #tpu.pipeline_mode<synchronous>, transform_indices = @transform_5, window_bounds = array<i64: 128, 128>}, {transform_indices = @transform_6, window_bounds = array<i64: 128, 128>}]} {
    %c0 = arith.constant 0 : index
    %c0_0 = arith.constant 0 : index
    %0 = vector.load %arg1[%c0, %c0_0] : memref<128x128xf32, #tpu.memory_space<vmem>>, vector<128x128xf32>
    %c0_1 = arith.constant 0 : index
    %c0_2 = arith.constant 0 : index
    %1 = vector.load %arg2[%c0_1, %c0_2] : memref<128x128xf32, #tpu.memory_space<vmem>>, vector<128x128xf32>
    %c0_3 = arith.constant 0 : index
    %c0_4 = arith.constant 0 : index
    %2 = vector.load %arg3[%c0_3, %c0_4] : memref<1x128xf32, #tpu.memory_space<vmem>>, vector<1x128xf32>
    %c0_5 = arith.constant 0 : index
    %c0_6 = arith.constant 0 : index
    %3 = vector.load %arg4[%c0_5, %c0_6] : memref<128x128xbf16, #tpu.memory_space<vmem>>, vector<128x128xbf16>
    %c0_7 = arith.constant 0 : index
    %c0_8 = arith.constant 0 : index
    %4 = vector.load %arg5[%c0_7, %c0_8] : memref<1x128xf32, #tpu.memory_space<vmem>>, vector<1x128xf32>
    %c0_9 = arith.constant 0 : index
    %c0_10 = arith.constant 0 : index
    %5 = vector.load %arg6[%c0_9, %c0_10] : memref<128x128xf32, #tpu.memory_space<vmem>>, vector<128x128xf32>
    %6 = arith.truncf %5 : vector<128x128xf32> to vector<128x128xbf16>
    %7 = arith.mulf %1, %1 : vector<128x128xf32>
    %8 = arith.truncf %7 : vector<128x128xf32> to vector<128x128xbf16>
    %cst = arith.constant dense<0.000000e+00> : vector<128x128xf32>
    %9 = tpu.matmul %8, %3, %cst {dimension_numbers = #tpu.dot_dimension_numbers<[1], [0], [0], [1], [0, 0, 1, 1], [], []>} : vector<128x128xbf16>, vector<128x128xbf16>, vector<128x128xf32> -> vector<128x128xf32>
    %10 = vector.broadcast %2 : vector<1x128xf32> to vector<128x128xf32>
    %11 = arith.mulf %10, %9 : vector<128x128xf32>
    %cst_11 = arith.constant 1.000000e+00 : f32
    %12 = vector.broadcast %cst_11 : f32 to vector<128x128xf32>
    %13 = arith.addf %12, %11 : vector<128x128xf32>
    %cst_12 = arith.constant 1.000000e-15 : f32
    %14 = vector.broadcast %cst_12 : f32 to vector<128x128xf32>
    %15 = arith.maximumf %13, %14 : vector<128x128xf32>
    %16 = tpu.reciprocal %15 {approx = true} : vector<128x128xf32> -> vector<128x128xf32>
    %cst_13 = arith.constant 2.000000e+00 : f32
    %17 = vector.broadcast %cst_13 : f32 to vector<128x128xf32>
    %18 = arith.mulf %17, %16 : vector<128x128xf32>
    %cst_14 = arith.constant 5.000000e-01 : f32
    %19 = vector.broadcast %cst_14 : f32 to vector<128x128xf32>
    %20 = arith.mulf %19, %18 : vector<128x128xf32>
    %21 = arith.mulf %0, %20 : vector<128x128xf32>
    %cst_15 = arith.constant 0.000000e+00 : f32
    %22 = vector.broadcast %cst_15 : f32 to vector<128x128xf32>
    %23 = arith.cmpf ogt, %21, %22 : vector<128x128xf32>
    %cst_16 = arith.constant 1.000000e+00 : f32
    %24 = vector.broadcast %cst_16 : f32 to vector<128x128xf32>
    %25 = arith.addf %21, %24 : vector<128x128xf32>
    %26 = math.exp %21 : vector<128x128xf32>
    %27 = arith.select %23, %25, %26 : vector<128x128xi1>, vector<128x128xf32>
    %28 = vector.broadcast %4 : vector<1x128xf32> to vector<128x128xf32>
    %29 = arith.mulf %27, %28 : vector<128x128xf32>
    %30 = arith.truncf %29 : vector<128x128xf32> to vector<128x128xbf16>
    %cst_17 = arith.constant dense<0.000000e+00> : vector<128x128xf32>
    %31 = tpu.matmul %30, %3, %cst_17 {dimension_numbers = #tpu.dot_dimension_numbers<[1], [0], [0], [1], [0, 0, 1, 1], [], []>} : vector<128x128xbf16>, vector<128x128xbf16>, vector<128x128xf32> -> vector<128x128xf32>
    %cst_18 = arith.constant 0.000000e+00 : f32
    %32 = vector.broadcast %cst_18 : f32 to vector<128x128xf32>
    %33 = arith.cmpf oeq, %31, %32 : vector<128x128xf32>
    %cst_19 = arith.constant 9.99999974E-6 : f32
    %34 = vector.broadcast %cst_19 : f32 to vector<128x128xf32>
    %35 = arith.select %33, %34, %31 : vector<128x128xi1>, vector<128x128xf32>
    %cst_20 = arith.constant 1.000000e+00 : f32
    %36 = vector.broadcast %cst_20 : f32 to vector<128x128xf32>
    %37 = arith.divf %36, %35 : vector<128x128xf32>
    %38 = arith.truncf %27 : vector<128x128xf32> to vector<128x128xbf16>
    %cst_21 = arith.constant dense<0.000000e+00> : vector<128x128xf32>
    %39 = tpu.matmul %38, %6, %cst_21 {dimension_numbers = #tpu.dot_dimension_numbers<[1], [0], [0], [1], [0, 0, 1, 1], [], []>} : vector<128x128xbf16>, vector<128x128xbf16>, vector<128x128xf32> -> vector<128x128xf32>
    %40 = arith.mulf %39, %37 : vector<128x128xf32>
    %41 = math.absf %2 : vector<1x128xf32>
    %cst_22 = arith.constant 1.000000e-15 : f32
    %42 = vector.broadcast %cst_22 : f32 to vector<1x128xf32>
    %43 = arith.maximumf %41, %42 : vector<1x128xf32>
    %44 = math.sqrt %43 : vector<1x128xf32>
    %45 = tpu.reciprocal %44 {approx = true} : vector<1x128xf32> -> vector<1x128xf32>
    %cst_23 = arith.constant 0.995999991 : f32
    %46 = vector.broadcast %cst_23 : f32 to vector<1x128xf32>
    %47 = arith.mulf %46, %45 : vector<1x128xf32>
    %cst_24 = arith.constant 0.000000e+00 : f32
    %48 = vector.broadcast %cst_24 : f32 to vector<1x128xf32>
    %49 = arith.cmpf olt, %2, %48 : vector<1x128xf32>
    %cst_25 = arith.constant 9.99999986E+14 : f32
    %50 = vector.broadcast %cst_25 : f32 to vector<1x128xf32>
    %51 = arith.select %49, %47, %50 : vector<1x128xi1>, vector<1x128xf32>
    %52 = arith.mulf %40, %40 : vector<128x128xf32>
    %53 = arith.truncf %52 : vector<128x128xf32> to vector<128x128xbf16>
    %cst_26 = arith.constant dense<0.000000e+00> : vector<128x128xf32>
    %54 = tpu.matmul %53, %3, %cst_26 {dimension_numbers = #tpu.dot_dimension_numbers<[1], [0], [0], [1], [0, 0, 1, 1], [], []>} : vector<128x128xbf16>, vector<128x128xbf16>, vector<128x128xf32> -> vector<128x128xf32>
    %55 = math.sqrt %54 : vector<128x128xf32>
    %cst_27 = arith.constant 1.000000e-15 : f32
    %56 = vector.broadcast %cst_27 : f32 to vector<128x128xf32>
    %57 = arith.maximumf %55, %56 : vector<128x128xf32>
    %58 = vector.broadcast %51 : vector<1x128xf32> to vector<128x128xf32>
    %59 = arith.cmpf ogt, %57, %58 : vector<128x128xf32>
    %60 = tpu.reciprocal %57 {approx = true} : vector<128x128xf32> -> vector<128x128xf32>
    %61 = vector.broadcast %51 : vector<1x128xf32> to vector<128x128xf32>
    %62 = arith.mulf %61, %60 : vector<128x128xf32>
    %cst_28 = arith.constant 1.000000e+00 : f32
    %63 = vector.broadcast %cst_28 : f32 to vector<128x128xf32>
    %64 = arith.select %59, %62, %63 : vector<128x128xi1>, vector<128x128xf32>
    %65 = arith.mulf %64, %40 : vector<128x128xf32>
    %66 = vector.broadcast %51 : vector<1x128xf32> to vector<128x128xf32>
    %67 = arith.minimumf %57, %66 : vector<128x128xf32>
    %68 = math.absf %2 : vector<1x128xf32>
    %cst_29 = arith.constant 1.000000e-15 : f32
    %69 = vector.broadcast %cst_29 : f32 to vector<1x128xf32>
    %70 = arith.maximumf %68, %69 : vector<1x128xf32>
    %71 = math.sqrt %70 : vector<1x128xf32>
    %72 = vector.broadcast %71 : vector<1x128xf32> to vector<128x128xf32>
    %73 = arith.mulf %72, %67 : vector<128x128xf32>
    %cst_30 = arith.constant -0.99999988 : f32
    %cst_31 = arith.constant 0.99999988 : f32
    %74 = vector.broadcast %cst_30 : f32 to vector<128x128xf32>
    %75 = arith.maximumf %74, %73 : vector<128x128xf32>
    %76 = vector.broadcast %cst_31 : f32 to vector<128x128xf32>
    %77 = arith.minimumf %76, %75 : vector<128x128xf32>
    %78 = math.log1p %77 : vector<128x128xf32>
    %cst_32 = arith.constant 0.000000e+00 : f32
    %79 = vector.broadcast %cst_32 : f32 to vector<128x128xf32>
    %80 = arith.subf %79, %77 : vector<128x128xf32>
    %81 = math.log1p %80 : vector<128x128xf32>
    %82 = arith.subf %78, %81 : vector<128x128xf32>
    %cst_33 = arith.constant 5.000000e-01 : f32
    %83 = vector.broadcast %cst_33 : f32 to vector<128x128xf32>
    %84 = arith.mulf %83, %82 : vector<128x128xf32>
    %cst_34 = arith.constant 1.000000e+00 : f32
    %85 = vector.broadcast %cst_34 : f32 to vector<1x128xf32>
    %86 = arith.divf %85, %71 : vector<1x128xf32>
    %87 = vector.broadcast %86 : vector<1x128xf32> to vector<128x128xf32>
    %88 = arith.mulf %84, %87 : vector<128x128xf32>
    %89 = vector.broadcast %2 : vector<1x128xf32> to vector<128x128xf32>
    %90 = arith.mulf %89, %67 : vector<128x128xf32>
    %91 = arith.mulf %90, %67 : vector<128x128xf32>
    %92 = arith.mulf %91, %67 : vector<128x128xf32>
    %cst_35 = arith.constant 3.000000e+00 : f32
    %93 = vector.broadcast %cst_35 : f32 to vector<128x128xf32>
    %94 = arith.divf %92, %93 : vector<128x128xf32>
    %95 = arith.subf %67, %94 : vector<128x128xf32>
    %96 = math.absf %2 : vector<1x128xf32>
    %cst_36 = arith.constant 9.99999993E-9 : f32
    %97 = vector.broadcast %cst_36 : f32 to vector<1x128xf32>
    %98 = arith.cmpf ole, %96, %97 : vector<1x128xf32>
    %99 = vector.shape_cast %98 : vector<1x128xi1> to vector<1x128xi1>
    %100 = vector.broadcast %99 : vector<1x128xi1> to vector<128x128xi1>
    %101 = arith.select %100, %95, %88 : vector<128x128xi1>, vector<128x128xf32>
    %cst_37 = arith.constant 5.000000e-01 : f32
    %102 = vector.broadcast %cst_37 : f32 to vector<128x128xf32>
    %103 = arith.mulf %102, %101 : vector<128x128xf32>
    %104 = math.absf %2 : vector<1x128xf32>
    %cst_38 = arith.constant 1.000000e-15 : f32
    %105 = vector.broadcast %cst_38 : f32 to vector<1x128xf32>
    %106 = arith.maximumf %104, %105 : vector<1x128xf32>
    %107 = math.sqrt %106 : vector<1x128xf32>
    %108 = vector.broadcast %107 : vector<1x128xf32> to vector<128x128xf32>
    %109 = arith.mulf %108, %103 : vector<128x128xf32>
    %110 = math.tanh %109 : vector<128x128xf32>
    %cst_39 = arith.constant 1.000000e+00 : f32
    %111 = vector.broadcast %cst_39 : f32 to vector<1x128xf32>
    %112 = arith.divf %111, %107 : vector<1x128xf32>
    %113 = vector.broadcast %112 : vector<1x128xf32> to vector<128x128xf32>
    %114 = arith.mulf %110, %113 : vector<128x128xf32>
    %115 = vector.broadcast %2 : vector<1x128xf32> to vector<128x128xf32>
    %116 = arith.mulf %115, %103 : vector<128x128xf32>
    %117 = arith.mulf %116, %103 : vector<128x128xf32>
    %118 = arith.mulf %117, %103 : vector<128x128xf32>
    %cst_40 = arith.constant 3.000000e+00 : f32
    %119 = vector.broadcast %cst_40 : f32 to vector<128x128xf32>
    %120 = arith.divf %118, %119 : vector<128x128xf32>
    %121 = arith.addf %103, %120 : vector<128x128xf32>
    %122 = math.absf %2 : vector<1x128xf32>
    %cst_41 = arith.constant 9.99999993E-9 : f32
    %123 = vector.broadcast %cst_41 : f32 to vector<1x128xf32>
    %124 = arith.cmpf ole, %122, %123 : vector<1x128xf32>
    %125 = vector.shape_cast %124 : vector<1x128xi1> to vector<1x128xi1>
    %126 = vector.broadcast %125 : vector<1x128xi1> to vector<128x128xi1>
    %127 = arith.select %126, %121, %114 : vector<128x128xi1>, vector<128x128xf32>
    %128 = tpu.reciprocal %67 {approx = true} : vector<128x128xf32> -> vector<128x128xf32>
    %129 = arith.mulf %127, %128 : vector<128x128xf32>
    %130 = arith.mulf %129, %65 : vector<128x128xf32>
    %c0_42 = arith.constant 0 : index
    %c0_43 = arith.constant 0 : index
    %131 = vector.load %arg7[%c0_42, %c0_43] : memref<128x128xf32, #tpu.memory_space<vmem>>, vector<128x128xf32>
    tpu.vector_store %arg7[%c0_42, %c0_43], %130 {strides = array<i32>} : memref<128x128xf32, #tpu.memory_space<vmem>>, vector<128x128xf32>,
    return
  }
  func.func @transform_0(%arg0: i32) -> (i32, i32) {
    %c0_i32 = arith.constant 0 : i32
    %c0_i32_0 = arith.constant 0 : i32
    return %arg0, %c0_i32 : i32, i32
  }
  func.func @transform_1(%arg0: i32) -> (i32, i32) {
    %c0_i32 = arith.constant 0 : i32
    %c0_i32_0 = arith.constant 0 : i32
    return %arg0, %c0_i32 : i32, i32
  }
  func.func @transform_2(%arg0: i32) -> (i32, i32) {
    %c0_i32 = arith.constant 0 : i32
    %c0_i32_0 = arith.constant 0 : i32
    %c0_i32_1 = arith.constant 0 : i32
    return %c0_i32, %c0_i32_0 : i32, i32
  }
  func.func @transform_3(%arg0: i32) -> (i32, i32) {
    %c0_i32 = arith.constant 0 : i32
    %c0_i32_0 = arith.constant 0 : i32
    %c0_i32_1 = arith.constant 0 : i32
    return %c0_i32, %c0_i32_0 : i32, i32
  }
  func.func @transform_4(%arg0: i32) -> (i32, i32) {
    %c0_i32 = arith.constant 0 : i32
    %c0_i32_0 = arith.constant 0 : i32
    %c0_i32_1 = arith.constant 0 : i32
    return %c0_i32, %c0_i32_0 : i32, i32
  }
  func.func @transform_5(%arg0: i32) -> (i32, i32) {
    %c0_i32 = arith.constant 0 : i32
    %c0_i32_0 = arith.constant 0 : i32
    %c0_i32_1 = arith.constant 0 : i32
    return %c0_i32, %c0_i32_0 : i32, i32
  }
  func.func @transform_6(%arg0: i32) -> (i32, i32) {
    %c0_i32 = arith.constant 0 : i32
    %c0_i32_0 = arith.constant 0 : i32
    return %arg0, %c0_i32 : i32, i32
  }
}

</mosaic_0001>

<llo_original>
// kernel: geometric_linearized_attention.2
$region0: #{geometric_linearized_attention.2}
  #allocation0 [shape = 'u32[]', space=smem, size = 0x4, offset = 0x4, fixed_abs, tag = 'smem constant byte address 0x4 - core index']
  #allocation1 [shape = 'u32[144,128]{1,0:T(1,128)}', space=vmem, size = 0x12000, scoped, tag = 'internal scratch']
  %s0 = inlined_call_operand.hbm [shape: f32[256,128], index: 0, kind: input, shape index: {}]
  %s1 = inlined_call_operand.vmem [shape: f32[256,128], index: 1, kind: input, shape index: {}]
  %s2 = inlined_call_operand.vmem [shape: f32[256,1], index: 2, kind: input, shape index: {}]
  %s3 = inlined_call_operand.vmem [shape: f32[1,128], index: 3, kind: input, shape index: {}]
  %s4 = inlined_call_operand.vmem [shape: bf16[128,128], index: 4, kind: input, shape index: {}]
  %s5 = inlined_call_operand.vmem [shape: f32[1,128], index: 5, kind: output, shape index: {0}]
  %s6 = inlined_call_operand.vmem [shape: f32[128,128], index: 6, kind: output, shape index: {1}]
  %7 = xla_tuple %s5, %s6
  %s8 = sld [smem:[#allocation0]]
  $region73: #{geometric_linearized_attention.2} parent=0
    _
  %s10 = ssub.s32 1, %s8
  %s11 = scalar_select 0, %s10, %s8
  $region1: #{geometric_linearized_attention.2} parent=0
    #allocation2 [shape = 'u8[131072]{0}', space=vmem, size = 0x20000, scoped, tag = 'input window, operand 0']
    #allocation3 [shape = 's32[2]{0}', space=sflag, size = 0x8, scoped, tag = 'scoped memory for geometric_linearized_attention.2']
    %12 = vsyncpa [#allocation3], 0
    %s13 = scalar_lea.sflag [#allocation3], 1
    %14 = vsyncpa %s13, 0
    loop: start=0, step=1, limit=4
    $region2: #{geometric_linearized_attention.2} parent=1 // loop_pre_header
      _
    $region3: #{geometric_linearized_attention.2} parent=1 // loop_header
      %s16 = sphi 0, %s20
      %p17 = scmp.ge.s32.totalorder %s16, 4
      %s26 = sphi 0, %s28
      %s29 = sphi 0, %s26
      %s30 = sphi 0, %s29
      %s46 = sphi 0, %s30
      %s52 = sphi 0, %s54
      %s55 = sphi 0, %s52
      %s56 = sphi 0, %s55
      %s72 = sphi 0, %s56
      %s78 = sphi 0, %s80
      %s81 = sphi 0, %s78
      %s82 = sphi 0, %s81
      %s98 = sphi 0, %s82
      %s102 = sphi 0, %s102
      %s104 = sphi 0, %s102
      %s105 = sphi 0, %s104
      %s119 = sphi 0, %s105
      %s123 = sphi 0, %s123
      %s125 = sphi 0, %s123
      %s126 = sphi 0, %s125
      %s140 = sphi 0, %s126
      %s144 = sphi 0, %s144
      %s146 = sphi 0, %s144
      %s147 = sphi 0, %s146
      %s161 = sphi 0, %s147
      %s165 = sphi 0, %s165
      %s167 = sphi 0, %s165
      %s168 = sphi 0, %s167
      %s182 = sphi 0, %s168
    $region4: #{geometric_linearized_attention.2} parent=1 // loop_header_branch
      %19 = sbr.rel (%p17) target = $region8
    $region5: #{geometric_linearized_attention.2} parent=1 // loop_body
      %s21 = ssub.s32 %s16, 1
      %s22 = ssub.s32 %s16, 2
      %s23 = sadd.s32 %s16, 1
      %s24 = ssub.s32 %s16, %s23
      %p25 = scmp.eq.s32.totalorder %s24, 0
      %s27 = sadd.s32 %s26, 1
      %s28 = scalar_select %p25, %s26, %s27
      %p31 = pneg %p25
      %p32 = scmp.eq.s32.totalorder %s16, 1
      %p33 = por %p31, %p32
      %p34 = scmp.ne.s32.totalorder %s26, %s29
      %p35 = scmp.eq.s32.totalorder %s16, 0
      %p36 = por %p34, %p35
      %p37 = scmp.ne.s32.totalorder %s26, %s29
      %p38 = scmp.eq.s32.totalorder %s21, 1
      %p39 = por %p37, %p38
      %p40 = scmp.ne.s32.totalorder %s29, %s30
      %p41 = scmp.eq.s32.totalorder %s21, 0
      %p42 = por %p40, %p41
      %p43 = scmp.ne.s32.totalorder %s29, %s30
      %p44 = scmp.eq.s32.totalorder %s22, 1
      %p45 = por %p43, %p44
      %p47 = scmp.ne.s32.totalorder %s30, %s46
      %p48 = scmp.eq.s32.totalorder %s22, 0
      %p49 = por %p47, %p48
      %s50 = ssub.s32 %s16, %s23
      %p51 = scmp.eq.s32.totalorder %s50, 0
      %s53 = sadd.s32 %s52, 1
      %s54 = scalar_select %p51, %s52, %s53
      %p57 = pneg %p51
      %p58 = scmp.eq.s32.totalorder %s16, 1
      %p59 = por %p57, %p58
      %p60 = scmp.ne.s32.totalorder %s52, %s55
      %p61 = scmp.eq.s32.totalorder %s16, 0
      %p62 = por %p60, %p61
      %p63 = scmp.ne.s32.totalorder %s52, %s55
      %p64 = scmp.eq.s32.totalorder %s21, 1
      %p65 = por %p63, %p64
      %p66 = scmp.ne.s32.totalorder %s55, %s56
      %p67 = scmp.eq.s32.totalorder %s21, 0
      %p68 = por %p66, %p67
      %p69 = scmp.ne.s32.totalorder %s55, %s56
      %p70 = scmp.eq.s32.totalorder %s22, 1
      %p71 = por %p69, %p70
      %p73 = scmp.ne.s32.totalorder %s56, %s72
      %p74 = scmp.eq.s32.totalorder %s22, 0
      %p75 = por %p73, %p74
      %s76 = ssub.s32 %s16, %s23
      %p77 = scmp.eq.s32.totalorder %s76, 0
      %s79 = sadd.s32 %s78, 1
      %s80 = scalar_select %p77, %s78, %s79
      %p83 = pneg %p77
      %p84 = scmp.eq.s32.totalorder %s16, 1
      %p85 = por %p83, %p84
      %p86 = scmp.ne.s32.totalorder %s78, %s81
      %p87 = scmp.eq.s32.totalorder %s16, 0
      %p88 = por %p86, %p87
      %p89 = scmp.ne.s32.totalorder %s78, %s81
      %p90 = scmp.eq.s32.totalorder %s21, 1
      %p91 = por %p89, %p90
      %p92 = scmp.ne.s32.totalorder %s81, %s82
      %p93 = scmp.eq.s32.totalorder %s21, 0
      %p94 = por %p92, %p93
      %p95 = scmp.ne.s32.totalorder %s81, %s82
      %p96 = scmp.eq.s32.totalorder %s22, 1
      %p97 = por %p95, %p96
      %p99 = scmp.ne.s32.totalorder %s82, %s98
      %p100 = scmp.eq.s32.totalorder %s22, 0
      %p101 = por %p99, %p100
      %s103 = sadd.s32 %s102, 1
      %p106 = scmp.eq.s32.totalorder %s16, 1
      %p107 = scmp.ne.s32.totalorder %s102, %s104
      %p108 = scmp.eq.s32.totalorder %s16, 0
      %p109 = por %p107, %p108
      %p110 = scmp.ne.s32.totalorder %s102, %s104
      %p111 = scmp.eq.s32.totalorder %s21, 1
      %p112 = por %p110, %p111
      %p113 = scmp.ne.s32.totalorder %s104, %s105
      %p114 = scmp.eq.s32.totalorder %s21, 0
      %p115 = por %p113, %p114
      %p116 = scmp.ne.s32.totalorder %s104, %s105
      %p117 = scmp.eq.s32.totalorder %s22, 1
      %p118 = por %p116, %p117
      %p120 = scmp.ne.s32.totalorder %s105, %s119
      %p121 = scmp.eq.s32.totalorder %s22, 0
      %p122 = por %p120, %p121
      %s124 = sadd.s32 %s123, 1
      %p127 = scmp.eq.s32.totalorder %s16, 1
      %p128 = scmp.ne.s32.totalorder %s123, %s125
      %p129 = scmp.eq.s32.totalorder %s16, 0
      %p130 = por %p128, %p129
      %p131 = scmp.ne.s32.totalorder %s123, %s125
      %p132 = scmp.eq.s32.totalorder %s21, 1
      %p133 = por %p131, %p132
      %p134 = scmp.ne.s32.totalorder %s125, %s126
      %p135 = scmp.eq.s32.totalorder %s21, 0
      %p136 = por %p134, %p135
      %p137 = scmp.ne.s32.totalorder %s125, %s126
      %p138 = scmp.eq.s32.totalorder %s22, 1
      %p139 = por %p137, %p138
      %p141 = scmp.ne.s32.totalorder %s126, %s140
      %p142 = scmp.eq.s32.totalorder %s22, 0
      %p143 = por %p141, %p142
      %s145 = sadd.s32 %s144, 1
      %p148 = scmp.eq.s32.totalorder %s16, 1
      %p149 = scmp.ne.s32.totalorder %s144, %s146
      %p150 = scmp.eq.s32.totalorder %s16, 0
      %p151 = por %p149, %p150
      %p152 = scmp.ne.s32.totalorder %s144, %s146
      %p153 = scmp.eq.s32.totalorder %s21, 1
      %p154 = por %p152, %p153
      %p155 = scmp.ne.s32.totalorder %s146, %s147
      %p156 = scmp.eq.s32.totalorder %s21, 0
      %p157 = por %p155, %p156
      %p158 = scmp.ne.s32.totalorder %s146, %s147
      %p159 = scmp.eq.s32.totalorder %s22, 1
      %p160 = por %p158, %p159
      %p162 = scmp.ne.s32.totalorder %s147, %s161
      %p163 = scmp.eq.s32.totalorder %s22, 0
      %p164 = por %p162, %p163
      %s166 = sadd.s32 %s165, 1
      %p169 = scmp.eq.s32.totalorder %s16, 1
      %p170 = scmp.ne.s32.totalorder %s165, %s167
      %p171 = scmp.eq.s32.totalorder %s16, 0
      %p172 = por %p170, %p171
      %p173 = scmp.ne.s32.totalorder %s165, %s167
      %p174 = scmp.eq.s32.totalorder %s21, 1
      %p175 = por %p173, %p174
      %p176 = scmp.ne.s32.totalorder %s167, %s168
      %p177 = scmp.eq.s32.totalorder %s21, 0
      %p178 = por %p176, %p177
      %p179 = scmp.ne.s32.totalorder %s167, %s168
      %p180 = scmp.eq.s32.totalorder %s22, 1
      %p181 = por %p179, %p180
      %p183 = scmp.ne.s32.totalorder %s168, %s182
      %p184 = scmp.eq.s32.totalorder %s22, 0
      %p185 = por %p183, %p184
      %p186 = scmp.le.s32.totalorder 1, %s16
      %p187 = scmp.lt.s32.totalorder %s16, 3
      %p188 = pnand %p186, %p187
      %p189 = pneg %p188
      // Predicated region
      $region9: #{geometric_linearized_attention.2} parent=5 // pred_check
        _
      $region10: #{geometric_linearized_attention.2} parent=5 // pred_check_branch
        %191 = sbr.rel (%p188) target = $region12
      $region11: #{geometric_linearized_attention.2} parent=5 // pred_region
        %s192 = ssub.s32 %s16, 1
        // Predicated region
        $region13: #{geometric_linearized_attention.2} parent=11 // pred_check
          %p193 = pneg %p115
        $region14: #{geometric_linearized_attention.2} parent=11 // pred_check_branch
          %195 = sbr.rel (%p193) target = $region16
        $region15: #{geometric_linearized_attention.2} parent=11 // pred_region
          _
        $region16: #{geometric_linearized_attention.2} parent=11 // pred_fallthru
          _
        // Predicated region
        $region17: #{geometric_linearized_attention.2} parent=11 // pred_check
          %p196 = pneg %p136
        $region18: #{geometric_linearized_attention.2} parent=11 // pred_check_branch
          %198 = sbr.rel (%p196) target = $region20
        $region19: #{geometric_linearized_attention.2} parent=11 // pred_region
          _
        $region20: #{geometric_linearized_attention.2} parent=11 // pred_fallthru
          _
      $region12: #{geometric_linearized_attention.2} parent=5 // pred_fallthru
        _
      %p199 = scmp.lt.s32.totalorder %s16, 2
      // Predicated region
      $region21: #{geometric_linearized_attention.2} parent=5 // pred_check
        %p200 = pneg %p199
      $region22: #{geometric_linearized_attention.2} parent=5 // pred_check_branch
        %202 = sbr.rel (%p200) target = $region24
      $region23: #{geometric_linearized_attention.2} parent=5 // pred_region
        // Predicated region
        $region25: #{geometric_linearized_attention.2} parent=23 // pred_check
          %p203 = pneg %p36
        $region26: #{geometric_linearized_attention.2} parent=23 // pred_check_branch
          %205 = sbr.rel (%p203) target = $region28
        $region27: #{geometric_linearized_attention.2} parent=23 // pred_region
          %s206 = sand.u32 %s26, 1
          %s207 = scalar_lea.sflag [#allocation3], %s206
          %s208 = sand.u32 %s26, 1
          %s209 = smul.addr %s208, 128
          %s210 = scalar_lea.vmem [#allocation2], %s209
          %s211 = smul.u32 16, %s16
          %s213 = ssub.s32 2048, 2048
          %214 = vsyncadd %s207, %s213
          %s215 = smul.addr %s211, 128
          %s216 = scalar_lea.hbm %s0, %s215
          %s217 = sshll.u32 %s210, 4
          %s218 = int_to_ptr.vmem [resolvable:$true] %s217
          %223 = dma.hbm_to_vmem [thread:$0]  %s216, 2048, %s218, %s207, 128, 128, 8
        $region28: #{geometric_linearized_attention.2} parent=23 // pred_fallthru
          _
        // Predicated region
        $region29: #{geometric_linearized_attention.2} parent=23 // pred_check
          %p224 = pneg %p62
        $region30: #{geometric_linearized_attention.2} parent=23 // pred_check_branch
          %226 = sbr.rel (%p224) target = $region32
        $region31: #{geometric_linearized_attention.2} parent=23 // pred_region
          %s227 = smul.u32 16, %s16
          %p228 = scmp.lt.s32.totalorder %s227, 31
          %s229 = scalar_select %p228, %s227, 31
          %s230 = smul.addr %s229, 8
          %s231 = scalar_lea.vmem %s1, %s230
          %s232 = smul.u32 16, %s16
        $region32: #{geometric_linearized_attention.2} parent=23 // pred_fallthru
          _
        // Predicated region
        $region33: #{geometric_linearized_attention.2} parent=23 // pred_check
          %p233 = pneg %p88
        $region34: #{geometric_linearized_attention.2} parent=23 // pred_check_branch
          %235 = sbr.rel (%p233) target = $region36
        $region35: #{geometric_linearized_attention.2} parent=23 // pred_region
          %s236 = smul.u32 16, %s16
          %p237 = scmp.lt.s32.totalorder %s236, 31
          %s238 = scalar_select %p237, %s236, 31
          %s239 = smul.addr %s238, 8
          %s240 = scalar_lea.vmem %s2, %s239
          %s241 = smul.u32 16, %s16
        $region36: #{geometric_linearized_attention.2} parent=23 // pred_fallthru
          _
      $region24: #{geometric_linearized_attention.2} parent=5 // pred_fallthru
        _
      %p242 = scmp.le.s32.totalorder 1, %s16
      %p243 = scmp.lt.s32.totalorder %s16, 3
      %p244 = pnand %p242, %p243
      %p245 = pneg %p244
      // Predicated region
      $region37: #{geometric_linearized_attention.2} parent=5 // pred_check
        _
      $region38: #{geometric_linearized_attention.2} parent=5 // pred_check_branch
        %247 = sbr.rel (%p244) target = $region40
      $region39: #{geometric_linearized_attention.2} parent=5 // pred_region
        %s248 = ssub.s32 %s16, 1
        %s249 = sand.u32 %s29, 1
        %s250 = scalar_lea.sflag [#allocation3], %s249
        %s251 = sand.u32 %s29, 1
        %s252 = smul.addr %s251, 128
        %s253 = scalar_lea.vmem [#allocation2], %s252
        // Predicated region
        $region41: #{geometric_linearized_attention.2} parent=39 // pred_check
          %p254 = pneg %p42
        $region42: #{geometric_linearized_attention.2} parent=39 // pred_check_branch
          %256 = sbr.rel (%p254) target = $region44
        $region43: #{geometric_linearized_attention.2} parent=39 // pred_region
          %257 = dma.done %s250, 2048
        $region44: #{geometric_linearized_attention.2} parent=39 // pred_fallthru
          _
        %s258 = sand.u32 %s29, 1
        %s259 = scalar_lea.sflag [#allocation3], %s258
        %s260 = sand.u32 %s29, 1
        %s261 = smul.addr %s260, 128
        %s262 = scalar_lea.vmem [#allocation2], %s261
        %p263 = pneg %p42
        %p264 = pneg %p39
        %s265 = smul.u32 16, %s21
        %p266 = scmp.lt.s32.totalorder %s265, 31
        %s267 = scalar_select %p266, %s265, 31
        %s268 = smul.addr %s267, 8
        %s269 = scalar_lea.vmem %s1, %s268
        %p270 = pneg %p68
        %p271 = pneg %p65
        %s272 = smul.u32 16, %s21
        %p273 = scmp.lt.s32.totalorder %s272, 31
        %s274 = scalar_select %p273, %s272, 31
        %s275 = smul.addr %s274, 8
        %s276 = scalar_lea.vmem %s2, %s275
        %p277 = pneg %p94
        %p278 = pneg %p91
        %p279 = pneg %p115
        %p280 = pneg %p112
        %p281 = pneg %p136
        %p282 = pneg %p133
        %p283 = pneg %p157
        %p284 = pneg %p154
        %p285 = pneg %p178
        %p286 = pneg %p175
        %s287 = smul.u32 16, %s21
        %s288 = smul.u32 16, %s21
        %p289 = scmp.lt.s32.totalorder %s288, 31
        %s290 = scalar_select %p289, %s288, 31
        %s291 = smul.addr %s290, 8
        %s292 = scalar_lea.vmem %s1, %s291
        %s293 = smul.u32 16, %s21
        %s294 = smul.u32 16, %s21
        %p295 = scmp.lt.s32.totalorder %s294, 31
        %s296 = scalar_select %p295, %s294, 31
        %s297 = smul.addr %s296, 8
        %s298 = scalar_lea.vmem %s2, %s297
        %s299 = smul.u32 16, %s21
        %p301 = scmp.eq.s32.totalorder %s21, 0
        // Predicated region
        $region45: #{geometric_linearized_attention.2} parent=39 // pred_check
          %p302 = pneg %p301
        $region46: #{geometric_linearized_attention.2} parent=39 // pred_check_branch
          %304 = sbr.rel (%p302) target = $region48
        $region47: #{geometric_linearized_attention.2} parent=39 // pred_region
          %305 = vst [vmem:[%s5] sm:$0x1] 0.0
          %306 = vst [vmem:[%s6] sm:$0xff] 0.0
          %307 = vst [vmem:[%s6 + $0x8] sm:$0xff] 0.0
          %308 = vst [vmem:[%s6 + $0x10] sm:$0xff] 0.0
          %309 = vst [vmem:[%s6 + $0x18] sm:$0xff] 0.0
          %310 = vst [vmem:[%s6 + $0x20] sm:$0xff] 0.0
          %311 = vst [vmem:[%s6 + $0x28] sm:$0xff] 0.0
          %312 = vst [vmem:[%s6 + $0x30] sm:$0xff] 0.0
          %313 = vst [vmem:[%s6 + $0x38] sm:$0xff] 0.0
          %314 = vst [vmem:[%s6 + $0x40] sm:$0xff] 0.0
          %315 = vst [vmem:[%s6 + $0x48] sm:$0xff] 0.0
          %316 = vst [vmem:[%s6 + $0x50] sm:$0xff] 0.0
          %317 = vst [vmem:[%s6 + $0x58] sm:$0xff] 0.0
          %318 = vst [vmem:[%s6 + $0x60] sm:$0xff] 0.0
          %319 = vst [vmem:[%s6 + $0x68] sm:$0xff] 0.0
          %320 = vst [vmem:[%s6 + $0x70] sm:$0xff] 0.0
          %321 = vst [vmem:[%s6 + $0x78] sm:$0xff] 0.0
        $region48: #{geometric_linearized_attention.2} parent=39 // pred_fallthru
          _
        %v322 = vld [vmem:[%s253] sm:$0xff]
        %v323 = vld [vmem:[%s253 + $0x8] sm:$0xff]
        %v324 = vld [vmem:[%s253 + $0x10] sm:$0xff]
        %v325 = vld [vmem:[%s253 + $0x18] sm:$0xff]
        %v326 = vld [vmem:[%s253 + $0x20] sm:$0xff]
        %v327 = vld [vmem:[%s253 + $0x28] sm:$0xff]
        %v328 = vld [vmem:[%s253 + $0x30] sm:$0xff]
        %v329 = vld [vmem:[%s253 + $0x38] sm:$0xff]
        %v330 = vld [vmem:[%s253 + $0x40] sm:$0xff]
        %v331 = vld [vmem:[%s253 + $0x48] sm:$0xff]
        %v332 = vld [vmem:[%s253 + $0x50] sm:$0xff]
        %v333 = vld [vmem:[%s253 + $0x58] sm:$0xff]
        %v334 = vld [vmem:[%s253 + $0x60] sm:$0xff]
        %v335 = vld [vmem:[%s253 + $0x68] sm:$0xff]
        %v336 = vld [vmem:[%s253 + $0x70] sm:$0xff]
        %v337 = vld [vmem:[%s253 + $0x78] sm:$0xff]
        %v338 = vld [vmem:[%s292] sm:$0xff]
        %v339 = vld [vmem:[%s292 + $0x8] sm:$0xff]
        %v340 = vld [vmem:[%s292 + $0x10] sm:$0xff]
        %v341 = vld [vmem:[%s292 + $0x18] sm:$0xff]
        %v342 = vld [vmem:[%s292 + $0x20] sm:$0xff]
        %v343 = vld [vmem:[%s292 + $0x28] sm:$0xff]
        %v344 = vld [vmem:[%s292 + $0x30] sm:$0xff]
        %v345 = vld [vmem:[%s292 + $0x38] sm:$0xff]
        %v346 = vld [vmem:[%s292 + $0x40] sm:$0xff]
        %v347 = vld [vmem:[%s292 + $0x48] sm:$0xff]
        %v348 = vld [vmem:[%s292 + $0x50] sm:$0xff]
        %v349 = vld [vmem:[%s292 + $0x58] sm:$0xff]
        %v350 = vld [vmem:[%s292 + $0x60] sm:$0xff]
        %v351 = vld [vmem:[%s292 + $0x68] sm:$0xff]
        %v352 = vld [vmem:[%s292 + $0x70] sm:$0xff]
        %v353 = vld [vmem:[%s292 + $0x78] sm:$0xff]
        %v354 = vld [vmem:[%s298] sm:$0xff]
        %v355 = vld [vmem:[%s298 + $0x8] sm:$0xff]
        %v356 = vld [vmem:[%s298 + $0x10] sm:$0xff]
        %v357 = vld [vmem:[%s298 + $0x18] sm:$0xff]
        %v358 = vld [vmem:[%s298 + $0x20] sm:$0xff]
        %v359 = vld [vmem:[%s298 + $0x28] sm:$0xff]
        %v360 = vld [vmem:[%s298 + $0x30] sm:$0xff]
        %v361 = vld [vmem:[%s298 + $0x38] sm:$0xff]
        %v362 = vld [vmem:[%s298 + $0x40] sm:$0xff]
        %v363 = vld [vmem:[%s298 + $0x48] sm:$0xff]
        %v364 = vld [vmem:[%s298 + $0x50] sm:$0xff]
        %v365 = vld [vmem:[%s298 + $0x58] sm:$0xff]
        %v366 = vld [vmem:[%s298 + $0x60] sm:$0xff]
        %v367 = vld [vmem:[%s298 + $0x68] sm:$0xff]
        %v368 = vld [vmem:[%s298 + $0x70] sm:$0xff]
        %v369 = vld [vmem:[%s298 + $0x78] sm:$0xff]
        %v370 = vld [vmem:[%s3] sm:$0x1]
        %v371 = vld [vmem:[%s4] sm:$0xf]
        %v372 = vld [vmem:[%s4 + $0x4] sm:$0xf]
        %v373 = vld [vmem:[%s4 + $0x8] sm:$0xf]
        %v374 = vld [vmem:[%s4 + $0xc] sm:$0xf]
        %v375 = vld [vmem:[%s4 + $0x10] sm:$0xf]
        %v376 = vld [vmem:[%s4 + $0x14] sm:$0xf]
        %v377 = vld [vmem:[%s4 + $0x18] sm:$0xf]
        %v378 = vld [vmem:[%s4 + $0x1c] sm:$0xf]
        %v379 = vld [vmem:[%s4 + $0x20] sm:$0xf]
        %v380 = vld [vmem:[%s4 + $0x24] sm:$0xf]
        %v381 = vld [vmem:[%s4 + $0x28] sm:$0xf]
        %v382 = vld [vmem:[%s4 + $0x2c] sm:$0xf]
        %v383 = vld [vmem:[%s4 + $0x30] sm:$0xf]
        %v384 = vld [vmem:[%s4 + $0x34] sm:$0xf]
        %v385 = vld [vmem:[%s4 + $0x38] sm:$0xf]
        %v386 = vld [vmem:[%s4 + $0x3c] sm:$0xf]
        %v387 = vmul.f32 %v338, %v338
        %v388 = vmul.f32 %v339, %v339
        %v389 = vmul.f32 %v340, %v340
        %v390 = vmul.f32 %v341, %v341
        %v391 = vmul.f32 %v342, %v342
        %v392 = vmul.f32 %v343, %v343
        %v393 = vmul.f32 %v344, %v344
        %v394 = vmul.f32 %v345, %v345
        %v395 = vmul.f32 %v346, %v346
        %v396 = vmul.f32 %v347, %v347
        %v397 = vmul.f32 %v348, %v348
        %v398 = vmul.f32 %v349, %v349
        %v399 = vmul.f32 %v350, %v350
        %v400 = vmul.f32 %v351, %v351
        %v401 = vmul.f32 %v352, %v352
        %v402 = vmul.f32 %v353, %v353
        %v403 = vpack.c.bf16 %v388, %v387
        %v404 = vpack.c.bf16 %v390, %v389
        %v405 = vpack.c.bf16 %v392, %v391
        %v406 = vpack.c.bf16 %v394, %v393
        %v407 = vpack.c.bf16 %v396, %v395
        %v408 = vpack.c.bf16 %v398, %v397
        %v409 = vpack.c.bf16 %v400, %v399
        %v410 = vpack.c.bf16 %v402, %v401
        %v427 = vunpack.c.l.b16 %v371
        %v428 = vunpack.c.l.b16 %v372
        %v429 = vunpack.c.l.b16 %v373
        %v430 = vunpack.c.l.b16 %v374
        %v431 = vunpack.c.l.b16 %v375
        %v432 = vunpack.c.l.b16 %v376
        %v433 = vunpack.c.l.b16 %v377
        %v434 = vunpack.c.l.b16 %v378
        %v435 = vunpack.c.l.b16 %v379
        %v436 = vunpack.c.l.b16 %v380
        %v437 = vunpack.c.l.b16 %v381
        %v438 = vunpack.c.l.b16 %v382
        %v439 = vunpack.c.l.b16 %v383
        %v440 = vunpack.c.l.b16 %v384
        %v441 = vunpack.c.l.b16 %v385
        %v442 = vunpack.c.l.b16 %v386
        %v443 = vpack.c.b16 %v428, %v427
        %v444 = vpack.c.b16 %v430, %v429
        %v445 = vpack.c.b16 %v432, %v431
        %v446 = vpack.c.b16 %v434, %v433
        %v447 = vpack.c.b16 %v436, %v435
        %v448 = vpack.c.b16 %v438, %v437
        %v449 = vpack.c.b16 %v440, %v439
        %v450 = vpack.c.b16 %v442, %v441
        %459 = vmatprep.subr.bf16.mxu0 0
        %460 = vmatpush1.bf16.msra.mxu0 %v450
        %461 = vmatprep.subr.bf16.mxu0 0
        %462 = vmatpush1.bf16.msra.mxu0 %v449
        %463 = vmatprep.subr.bf16.mxu0 0
        %464 = vmatpush1.bf16.msra.mxu0 %v448
        %465 = vmatprep.subr.bf16.mxu0 0
        %466 = vmatpush1.bf16.msra.mxu0 %v447
        %467 = vmatprep.subr.bf16.mxu0 0
        %468 = vmatpush1.bf16.msra.mxu0 %v446
        %469 = vmatprep.subr.bf16.mxu0 0
        %470 = vmatpush1.bf16.msra.mxu0 %v445
        %471 = vmatprep.subr.bf16.mxu0 0
        %472 = vmatpush1.bf16.msra.mxu0 %v444
        %473 = vmatprep.subr.bf16.mxu0 0
        %474 = vmatpush1.bf16.msra.mxu0 %v443
        %475 = vmatprep.subr.bf16.mxu0 0
        %476 = vmatpush2.bf16.msra.mxu0 0
        %477 = vmatprep.subr.bf16.mxu0 0
        %478 = vmatpush2.bf16.msra.mxu0 0
        %479 = vmatprep.subr.bf16.mxu0 0
        %480 = vmatpush2.bf16.msra.mxu0 0
        %481 = vmatprep.subr.bf16.mxu0 0
        %482 = vmatpush2.bf16.msra.mxu0 0
        %483 = vmatprep.subr.bf16.mxu0 0
        %484 = vmatpush2.bf16.msra.mxu0 0
        %485 = vmatprep.subr.bf16.mxu0 0
        %486 = vmatpush2.bf16.msra.mxu0 0
        %487 = vmatprep.subr.bf16.mxu0 0
        %488 = vmatpush2.bf16.msra.mxu0 0
        %489 = vmatprep.subr.bf16.mxu0 0
        %490 = vmatpush2.bf16.msra.mxu0 0
        %491 = vmatprep.mubr.bf16.mxu0 0
        %492 = vmatmul.mubr.bf16.gmra.mxu0 %v403
        %v493 = vpop.f32.mrf.mxu0
        %v494 = vadd.f32 0.0, %v493
        %v495 = vpop.f32.mrf.mxu0
        %v496 = vpop.f32.mrf.mxu0
        %v497 = vadd.f32 0.0, %v496
        %v498 = vpop.f32.mrf.mxu0
        %499 = vmatprep.mubr.bf16.mxu0 0
        %500 = vmatmul.mubr.bf16.gmra.mxu0 %v404
        %v501 = vpop.f32.mrf.mxu0
        %v502 = vadd.f32 0.0, %v501
        %v503 = vpop.f32.mrf.mxu0
        %v504 = vpop.f32.mrf.mxu0
        %v505 = vadd.f32 0.0, %v504
        %v506 = vpop.f32.mrf.mxu0
        %507 = vmatprep.mubr.bf16.mxu0 0
        %508 = vmatmul.mubr.bf16.gmra.mxu0 %v405
        %v509 = vpop.f32.mrf.mxu0
        %v510 = vadd.f32 0.0, %v509
        %v511 = vpop.f32.mrf.mxu0
        %v512 = vpop.f32.mrf.mxu0
        %v513 = vadd.f32 0.0, %v512
        %v514 = vpop.f32.mrf.mxu0
        %515 = vmatprep.mubr.bf16.mxu0 0
        %516 = vmatmul.mubr.bf16.gmra.mxu0 %v406
        %v517 = vpop.f32.mrf.mxu0
        %v518 = vadd.f32 0.0, %v517
        %v519 = vpop.f32.mrf.mxu0
        %v520 = vpop.f32.mrf.mxu0
        %v521 = vadd.f32 0.0, %v520
        %v522 = vpop.f32.mrf.mxu0
        %523 = vmatprep.mubr.bf16.mxu0 0
        %524 = vmatmul.mubr.bf16.gmra.mxu0 %v407
        %v525 = vpop.f32.mrf.mxu0
        %v526 = vadd.f32 0.0, %v525
        %v527 = vpop.f32.mrf.mxu0
        %v528 = vpop.f32.mrf.mxu0
        %v529 = vadd.f32 0.0, %v528
        %v530 = vpop.f32.mrf.mxu0
        %531 = vmatprep.mubr.bf16.mxu0 0
        %532 = vmatmul.mubr.bf16.gmra.mxu0 %v408
        %v533 = vpop.f32.mrf.mxu0
        %v534 = vadd.f32 0.0, %v533
        %v535 = vpop.f32.mrf.mxu0
        %v536 = vpop.f32.mrf.mxu0
        %v537 = vadd.f32 0.0, %v536
        %v538 = vpop.f32.mrf.mxu0
        %539 = vmatprep.mubr.bf16.mxu0 0
        %540 = vmatmul.mubr.bf16.gmra.mxu0 %v409
        %v541 = vpop.f32.mrf.mxu0
        %v542 = vadd.f32 0.0, %v541
        %v543 = vpop.f32.mrf.mxu0
        %v544 = vpop.f32.mrf.mxu0
        %v545 = vadd.f32 0.0, %v544
        %v546 = vpop.f32.mrf.mxu0
        %547 = vmatprep.mubr.bf16.mxu0 0
        %548 = vmatmul.mubr.bf16.gmra.mxu0 %v410
        %v549 = vpop.f32.mrf.mxu0
        %v550 = vadd.f32 0.0, %v549
        %v551 = vpop.f32.mrf.mxu0
        %v552 = vpop.f32.mrf.mxu0
        %v553 = vadd.f32 0.0, %v552
        %v554 = vpop.f32.mrf.mxu0
        %555 = vdwg.mxu0
        %v557 = vlaneseq
        %v558 = vshrl.u32 %v557, 7
        %v559 = vsub.s32 0, %v558
        %v560 = vrot.slane %v370, %v559
        %v562 = vmul.f32 %v560, %v494
        %v563 = vmul.f32 %v560, %v497
        %v564 = vmul.f32 %v560, %v502
        %v565 = vmul.f32 %v560, %v505
        %v566 = vmul.f32 %v560, %v510
        %v567 = vmul.f32 %v560, %v513
        %v568 = vmul.f32 %v560, %v518
        %v569 = vmul.f32 %v560, %v521
        %v570 = vmul.f32 %v560, %v526
        %v571 = vmul.f32 %v560, %v529
        %v572 = vmul.f32 %v560, %v534
        %v573 = vmul.f32 %v560, %v537
        %v574 = vmul.f32 %v560, %v542
        %v575 = vmul.f32 %v560, %v545
        %v576 = vmul.f32 %v560, %v550
        %v577 = vmul.f32 %v560, %v553
        %v578 = vadd.f32 %v562, 1.0
        %v579 = vadd.f32 %v563, 1.0
        %v580 = vadd.f32 %v564, 1.0
        %v581 = vadd.f32 %v565, 1.0
        %v582 = vadd.f32 %v566, 1.0
        %v583 = vadd.f32 %v567, 1.0
        %v584 = vadd.f32 %v568, 1.0
        %v585 = vadd.f32 %v569, 1.0
        %v586 = vadd.f32 %v570, 1.0
        %v587 = vadd.f32 %v571, 1.0
        %v588 = vadd.f32 %v572, 1.0
        %v589 = vadd.f32 %v573, 1.0
        %v590 = vadd.f32 %v574, 1.0
        %v591 = vadd.f32 %v575, 1.0
        %v592 = vadd.f32 %v576, 1.0
        %v593 = vadd.f32 %v577, 1.0
        %v594 = vmax.f32 %v578, 1e-15
        %v595 = vmax.f32 %v579, 1e-15
        %v596 = vmax.f32 %v580, 1e-15
        %v597 = vmax.f32 %v581, 1e-15
        %v598 = vmax.f32 %v582, 1e-15
        %v599 = vmax.f32 %v583, 1e-15
        %v600 = vmax.f32 %v584, 1e-15
        %v601 = vmax.f32 %v585, 1e-15
        %v602 = vmax.f32 %v586, 1e-15
        %v603 = vmax.f32 %v587, 1e-15
        %v604 = vmax.f32 %v588, 1e-15
        %v605 = vmax.f32 %v589, 1e-15
        %v606 = vmax.f32 %v590, 1e-15
        %v607 = vmax.f32 %v591, 1e-15
        %v608 = vmax.f32 %v592, 1e-15
        %v609 = vmax.f32 %v593, 1e-15
        %v610 = vrcp.pop %v594
        %v611 = vrcp.pop %v595
        %v612 = vrcp.pop %v596
        %v613 = vrcp.pop %v597
        %v614 = vrcp.pop %v598
        %v615 = vrcp.pop %v599
        %v616 = vrcp.pop %v600
        %v617 = vrcp.pop %v601
        %v618 = vrcp.pop %v602
        %v619 = vrcp.pop %v603
        %v620 = vrcp.pop %v604
        %v621 = vrcp.pop %v605
        %v622 = vrcp.pop %v606
        %v623 = vrcp.pop %v607
        %v624 = vrcp.pop %v608
        %v625 = vrcp.pop %v609
        %v626 = vmul.f32 %v610, 2.0
        %v627 = vmul.f32 %v611, 2.0
        %v628 = vmul.f32 %v612, 2.0
        %v629 = vmul.f32 %v613, 2.0
        %v630 = vmul.f32 %v614, 2.0
        %v631 = vmul.f32 %v615, 2.0
        %v632 = vmul.f32 %v616, 2.0
        %v633 = vmul.f32 %v617, 2.0
        %v634 = vmul.f32 %v618, 2.0
        %v635 = vmul.f32 %v619, 2.0
        %v636 = vmul.f32 %v620, 2.0
        %v637 = vmul.f32 %v621, 2.0
        %v638 = vmul.f32 %v622, 2.0
        %v639 = vmul.f32 %v623, 2.0
        %v640 = vmul.f32 %v624, 2.0
        %v641 = vmul.f32 %v625, 2.0
        %v642 = vsub.f32 %v626, 1.0
        %v643 = vsub.f32 %v627, 1.0
        %v644 = vsub.f32 %v628, 1.0
        %v645 = vsub.f32 %v629, 1.0
        %v646 = vsub.f32 %v630, 1.0
        %v647 = vsub.f32 %v631, 1.0
        %v648 = vsub.f32 %v632, 1.0
        %v649 = vsub.f32 %v633, 1.0
        %v650 = vsub.f32 %v634, 1.0
        %v651 = vsub.f32 %v635, 1.0
        %v652 = vsub.f32 %v636, 1.0
        %v653 = vsub.f32 %v637, 1.0
        %v654 = vsub.f32 %v638, 1.0
        %v655 = vsub.f32 %v639, 1.0
        %v656 = vsub.f32 %v640, 1.0
        %v657 = vsub.f32 %v641, 1.0
        %vm658 = vcmp.ge.f32.partialorder %v642, 0.0
        %vm659 = vcmp.ge.f32.partialorder %v643, 0.0
        %vm660 = vcmp.ge.f32.partialorder %v644, 0.0
        %vm661 = vcmp.ge.f32.partialorder %v645, 0.0
        %vm662 = vcmp.ge.f32.partialorder %v646, 0.0
        %vm663 = vcmp.ge.f32.partialorder %v647, 0.0
        %vm664 = vcmp.ge.f32.partialorder %v648, 0.0
        %vm665 = vcmp.ge.f32.partialorder %v649, 0.0
        %vm666 = vcmp.ge.f32.partialorder %v650, 0.0
        %vm667 = vcmp.ge.f32.partialorder %v651, 0.0
        %vm668 = vcmp.ge.f32.partialorder %v652, 0.0
        %vm669 = vcmp.ge.f32.partialorder %v653, 0.0
        %vm670 = vcmp.ge.f32.partialorder %v654, 0.0
        %vm671 = vcmp.ge.f32.partialorder %v655, 0.0
        %vm672 = vcmp.ge.f32.partialorder %v656, 0.0
        %vm673 = vcmp.ge.f32.partialorder %v657, 0.0
        %v674 = vsel %vm658, 1.0, -1.0
        %v675 = vsel %vm659, 1.0, -1.0
        %v676 = vsel %vm660, 1.0, -1.0
        %v677 = vsel %vm661, 1.0, -1.0
        %v678 = vsel %vm662, 1.0, -1.0
        %v679 = vsel %vm663, 1.0, -1.0
        %v680 = vsel %vm664, 1.0, -1.0
        %v681 = vsel %vm665, 1.0, -1.0
        %v682 = vsel %vm666, 1.0, -1.0
        %v683 = vsel %vm667, 1.0, -1.0
        %v684 = vsel %vm668, 1.0, -1.0
        %v685 = vsel %vm669, 1.0, -1.0
        %v686 = vsel %vm670, 1.0, -1.0
        %v687 = vsel %vm671, 1.0, -1.0
        %v688 = vsel %vm672, 1.0, -1.0
        %v689 = vsel %vm673, 1.0, -1.0
        %v690 = vand.u32 2147483647, %v642
        %v691 = vand.u32 2147483647, %v643
        %v692 = vand.u32 2147483647, %v644
        %v693 = vand.u32 2147483647, %v645
        %v694 = vand.u32 2147483647, %v646
        %v695 = vand.u32 2147483647, %v647
        %v696 = vand.u32 2147483647, %v648
        %v697 = vand.u32 2147483647, %v649
        %v698 = vand.u32 2147483647, %v650
        %v699 = vand.u32 2147483647, %v651
        %v700 = vand.u32 2147483647, %v652
        %v701 = vand.u32 2147483647, %v653
        %v702 = vand.u32 2147483647, %v654
        %v703 = vand.u32 2147483647, %v655
        %v704 = vand.u32 2147483647, %v656
        %v705 = vand.u32 2147483647, %v657
        %v706 = vmax.f32 %v690, 1e-10
        %v707 = vmax.f32 %v691, 1e-10
        %v708 = vmax.f32 %v692, 1e-10
        %v709 = vmax.f32 %v693, 1e-10
        %v710 = vmax.f32 %v694, 1e-10
        %v711 = vmax.f32 %v695, 1e-10
        %v712 = vmax.f32 %v696, 1e-10
        %v713 = vmax.f32 %v697, 1e-10
        %v714 = vmax.f32 %v698, 1e-10
        %v715 = vmax.f32 %v699, 1e-10
        %v716 = vmax.f32 %v700, 1e-10
        %v717 = vmax.f32 %v701, 1e-10
        %v718 = vmax.f32 %v702, 1e-10
        %v719 = vmax.f32 %v703, 1e-10
        %v720 = vmax.f32 %v704, 1e-10
        %v721 = vmax.f32 %v705, 1e-10
        %v722 = vmul.f32 %v674, %v706
        %v723 = vmul.f32 %v675, %v707
        %v724 = vmul.f32 %v676, %v708
        %v725 = vmul.f32 %v677, %v709
        %v726 = vmul.f32 %v678, %v710
        %v727 = vmul.f32 %v679, %v711
        %v728 = vmul.f32 %v680, %v712
        %v729 = vmul.f32 %v681, %v713
        %v730 = vmul.f32 %v682, %v714
        %v731 = vmul.f32 %v683, %v715
        %v732 = vmul.f32 %v684, %v716
        %v733 = vmul.f32 %v685, %v717
        %v734 = vmul.f32 %v686, %v718
        %v735 = vmul.f32 %v687, %v719
        %v736 = vmul.f32 %v688, %v720
        %v737 = vmul.f32 %v689, %v721
        %v738 = vmul.f32 %v626, 0.5
        %v739 = vmul.f32 %v627, 0.5
        %v740 = vmul.f32 %v628, 0.5
        %v741 = vmul.f32 %v629, 0.5
        %v742 = vmul.f32 %v630, 0.5
        %v743 = vmul.f32 %v631, 0.5
        %v744 = vmul.f32 %v632, 0.5
        %v745 = vmul.f32 %v633, 0.5
        %v746 = vmul.f32 %v634, 0.5
        %v747 = vmul.f32 %v635, 0.5
        %v748 = vmul.f32 %v636, 0.5
        %v749 = vmul.f32 %v637, 0.5
        %v750 = vmul.f32 %v638, 0.5
        %v751 = vmul.f32 %v639, 0.5
        %v752 = vmul.f32 %v640, 0.5
        %v753 = vmul.f32 %v641, 0.5
        %v754 = vmul.f32 %v322, %v738
        %v755 = vmul.f32 %v323, %v739
        %v756 = vmul.f32 %v324, %v740
        %v757 = vmul.f32 %v325, %v741
        %v758 = vmul.f32 %v326, %v742
        %v759 = vmul.f32 %v327, %v743
        %v760 = vmul.f32 %v328, %v744
        %v761 = vmul.f32 %v329, %v745
        %v762 = vmul.f32 %v330, %v746
        %v763 = vmul.f32 %v331, %v747
        %v764 = vmul.f32 %v332, %v748
        %v765 = vmul.f32 %v333, %v749
        %v766 = vmul.f32 %v334, %v750
        %v767 = vmul.f32 %v335, %v751
        %v768 = vmul.f32 %v336, %v752
        %v769 = vmul.f32 %v337, %v753
        %vm770 = vcmp.gt.f32.partialorder %v754, 0.0
        %vm771 = vcmp.gt.f32.partialorder %v755, 0.0
        %vm772 = vcmp.gt.f32.partialorder %v756, 0.0
        %vm773 = vcmp.gt.f32.partialorder %v757, 0.0
        %vm774 = vcmp.gt.f32.partialorder %v758, 0.0
        %vm775 = vcmp.gt.f32.partialorder %v759, 0.0
        %vm776 = vcmp.gt.f32.partialorder %v760, 0.0
        %vm777 = vcmp.gt.f32.partialorder %v761, 0.0
        %vm778 = vcmp.gt.f32.partialorder %v762, 0.0
        %vm779 = vcmp.gt.f32.partialorder %v763, 0.0
        %vm780 = vcmp.gt.f32.partialorder %v764, 0.0
        %vm781 = vcmp.gt.f32.partialorder %v765, 0.0
        %vm782 = vcmp.gt.f32.partialorder %v766, 0.0
        %vm783 = vcmp.gt.f32.partialorder %v767, 0.0
        %vm784 = vcmp.gt.f32.partialorder %v768, 0.0
        %vm785 = vcmp.gt.f32.partialorder %v769, 0.0
        %v786 = vadd.f32 %v754, 1.0
        %v787 = vadd.f32 %v755, 1.0
        %v788 = vadd.f32 %v756, 1.0
        %v789 = vadd.f32 %v757, 1.0
        %v790 = vadd.f32 %v758, 1.0
        %v791 = vadd.f32 %v759, 1.0
        %v792 = vadd.f32 %v760, 1.0
        %v793 = vadd.f32 %v761, 1.0
        %v794 = vadd.f32 %v762, 1.0
        %v795 = vadd.f32 %v763, 1.0
        %v796 = vadd.f32 %v764, 1.0
        %v797 = vadd.f32 %v765, 1.0
        %v798 = vadd.f32 %v766, 1.0
        %v799 = vadd.f32 %v767, 1.0
        %v800 = vadd.f32 %v768, 1.0
        %v801 = vadd.f32 %v769, 1.0
        %v802 = vmul.f32 %v754, 1.442695
        %v803 = vpow.pop %v802
        %v804 = vmul.f32 %v755, 1.442695
        %v805 = vpow.pop %v804
        %v806 = vmul.f32 %v756, 1.442695
        %v807 = vpow.pop %v806
        %v808 = vmul.f32 %v757, 1.442695
        %v809 = vpow.pop %v808
        %v810 = vmul.f32 %v758, 1.442695
        %v811 = vpow.pop %v810
        %v812 = vmul.f32 %v759, 1.442695
        %v813 = vpow.pop %v812
        %v814 = vmul.f32 %v760, 1.442695
        %v815 = vpow.pop %v814
        %v816 = vmul.f32 %v761, 1.442695
        %v817 = vpow.pop %v816
        %v818 = vmul.f32 %v762, 1.442695
        %v819 = vpow.pop %v818
        %v820 = vmul.f32 %v763, 1.442695
        %v821 = vpow.pop %v820
        %v822 = vmul.f32 %v764, 1.442695
        %v823 = vpow.pop %v822
        %v824 = vmul.f32 %v765, 1.442695
        %v825 = vpow.pop %v824
        %v826 = vmul.f32 %v766, 1.442695
        %v827 = vpow.pop %v826
        %v828 = vmul.f32 %v767, 1.442695
        %v829 = vpow.pop %v828
        %v830 = vmul.f32 %v768, 1.442695
        %v831 = vpow.pop %v830
        %v832 = vmul.f32 %v769, 1.442695
        %v833 = vpow.pop %v832
        %v834 = vsel %vm770, %v786, %v803
        %v835 = vsel %vm771, %v787, %v805
        %v836 = vsel %vm772, %v788, %v807
        %v837 = vsel %vm773, %v789, %v809
        %v838 = vsel %vm774, %v790, %v811
        %v839 = vsel %vm775, %v791, %v813
        %v840 = vsel %vm776, %v792, %v815
        %v841 = vsel %vm777, %v793, %v817
        %v842 = vsel %vm778, %v794, %v819
        %v843 = vsel %vm779, %v795, %v821
        %v844 = vsel %vm780, %v796, %v823
        %v845 = vsel %vm781, %v797, %v825
        %v846 = vsel %vm782, %v798, %v827
        %v847 = vsel %vm783, %v799, %v829
        %v848 = vsel %vm784, %v800, %v831
        %v849 = vsel %vm785, %v801, %v833
        %v850 = vmul.f32 %v722, %v834
        %v851 = vmul.f32 %v723, %v835
        %v852 = vmul.f32 %v724, %v836
        %v853 = vmul.f32 %v725, %v837
        %v854 = vmul.f32 %v726, %v838
        %v855 = vmul.f32 %v727, %v839
        %v856 = vmul.f32 %v728, %v840
        %v857 = vmul.f32 %v729, %v841
        %v858 = vmul.f32 %v730, %v842
        %v859 = vmul.f32 %v731, %v843
        %v860 = vmul.f32 %v732, %v844
        %v861 = vmul.f32 %v733, %v845
        %v862 = vmul.f32 %v734, %v846
        %v863 = vmul.f32 %v735, %v847
        %v864 = vmul.f32 %v736, %v848
        %v865 = vmul.f32 %v737, %v849
        %867 = vset.pattern.permute.xlu0 0
        %868 = vperm.xlu0 %867, %v354
        %v869 = vpop.permute.xlu0 %868
        %872 = vset.pattern.permute.xlu0 0
        %873 = vperm.xlu0 %872, %v355
        %v874 = vpop.permute.xlu0 %873
        %877 = vset.pattern.permute.xlu0 0
        %878 = vperm.xlu0 %877, %v356
        %v879 = vpop.permute.xlu0 %878
        %882 = vset.pattern.permute.xlu0 0
        %883 = vperm.xlu0 %882, %v357
        %v884 = vpop.permute.xlu0 %883
        %887 = vset.pattern.permute.xlu0 0
        %888 = vperm.xlu0 %887, %v358
        %v889 = vpop.permute.xlu0 %888
        %892 = vset.pattern.permute.xlu0 0
        %893 = vperm.xlu0 %892, %v359
        %v894 = vpop.permute.xlu0 %893
        %897 = vset.pattern.permute.xlu0 0
        %898 = vperm.xlu0 %897, %v360
        %v899 = vpop.permute.xlu0 %898
        %902 = vset.pattern.permute.xlu0 0
        %903 = vperm.xlu0 %902, %v361
        %v904 = vpop.permute.xlu0 %903
        %907 = vset.pattern.permute.xlu0 0
        %908 = vperm.xlu0 %907, %v362
        %v909 = vpop.permute.xlu0 %908
        %912 = vset.pattern.permute.xlu0 0
        %913 = vperm.xlu0 %912, %v363
        %v914 = vpop.permute.xlu0 %913
        %917 = vset.pattern.permute.xlu0 0
        %918 = vperm.xlu0 %917, %v364
        %v919 = vpop.permute.xlu0 %918
        %922 = vset.pattern.permute.xlu0 0
        %923 = vperm.xlu0 %922, %v365
        %v924 = vpop.permute.xlu0 %923
        %927 = vset.pattern.permute.xlu0 0
        %928 = vperm.xlu0 %927, %v366
        %v929 = vpop.permute.xlu0 %928
        %932 = vset.pattern.permute.xlu0 0
        %933 = vperm.xlu0 %932, %v367
        %v934 = vpop.permute.xlu0 %933
        %937 = vset.pattern.permute.xlu0 0
        %938 = vperm.xlu0 %937, %v368
        %v939 = vpop.permute.xlu0 %938
        %942 = vset.pattern.permute.xlu0 0
        %943 = vperm.xlu0 %942, %v369
        %v944 = vpop.permute.xlu0 %943
        %v946 = vmul.f32 %v850, %v869
        %v947 = vmul.f32 %v851, %v874
        %v948 = vmul.f32 %v852, %v879
        %v949 = vmul.f32 %v853, %v884
        %v950 = vmul.f32 %v854, %v889
        %v951 = vmul.f32 %v855, %v894
        %v952 = vmul.f32 %v856, %v899
        %v953 = vmul.f32 %v857, %v904
        %v954 = vmul.f32 %v858, %v909
        %v955 = vmul.f32 %v859, %v914
        %v956 = vmul.f32 %v860, %v919
        %v957 = vmul.f32 %v861, %v924
        %v958 = vmul.f32 %v862, %v929
        %v959 = vmul.f32 %v863, %v934
        %v960 = vmul.f32 %v864, %v939
        %v961 = vmul.f32 %v865, %v944
        %v962 = vrcp.pop %v722
        %v963 = vrcp.pop %v723
        %v964 = vrcp.pop %v724
        %v965 = vrcp.pop %v725
        %v966 = vrcp.pop %v726
        %v967 = vrcp.pop %v727
        %v968 = vrcp.pop %v728
        %v969 = vrcp.pop %v729
        %v970 = vrcp.pop %v730
        %v971 = vrcp.pop %v731
        %v972 = vrcp.pop %v732
        %v973 = vrcp.pop %v733
        %v974 = vrcp.pop %v734
        %v975 = vrcp.pop %v735
        %v976 = vrcp.pop %v736
        %v977 = vrcp.pop %v737
        %v978 = vmul.f32 %v626, %v962
        %v979 = vmul.f32 %v627, %v963
        %v980 = vmul.f32 %v628, %v964
        %v981 = vmul.f32 %v629, %v965
        %v982 = vmul.f32 %v630, %v966
        %v983 = vmul.f32 %v631, %v967
        %v984 = vmul.f32 %v632, %v968
        %v985 = vmul.f32 %v633, %v969
        %v986 = vmul.f32 %v634, %v970
        %v987 = vmul.f32 %v635, %v971
        %v988 = vmul.f32 %v636, %v972
        %v989 = vmul.f32 %v637, %v973
        %v990 = vmul.f32 %v638, %v974
        %v991 = vmul.f32 %v639, %v975
        %v992 = vmul.f32 %v640, %v976
        %v993 = vmul.f32 %v641, %v977
        %v994 = vmul.f32 %v978, %v338
        %v995 = vmul.f32 %v979, %v339
        %v996 = vmul.f32 %v980, %v340
        %v997 = vmul.f32 %v981, %v341
        %v998 = vmul.f32 %v982, %v342
        %v999 = vmul.f32 %v983, %v343
        %v1000 = vmul.f32 %v984, %v344
        %v1001 = vmul.f32 %v985, %v345
        %v1002 = vmul.f32 %v986, %v346
        %v1003 = vmul.f32 %v987, %v347
        %v1004 = vmul.f32 %v988, %v348
        %v1005 = vmul.f32 %v989, %v349
        %v1006 = vmul.f32 %v990, %v350
        %v1007 = vmul.f32 %v991, %v351
        %v1008 = vmul.f32 %v992, %v352
        %v1009 = vmul.f32 %v993, %v353
        %v1010 = vmul.f32 %v994, %v869
        %v1011 = vmul.f32 %v995, %v874
        %v1012 = vmul.f32 %v996, %v879
        %v1013 = vmul.f32 %v997, %v884
        %v1014 = vmul.f32 %v998, %v889
        %v1015 = vmul.f32 %v999, %v894
        %v1016 = vmul.f32 %v1000, %v899
        %v1017 = vmul.f32 %v1001, %v904
        %v1018 = vmul.f32 %v1002, %v909
        %v1019 = vmul.f32 %v1003, %v914
        %v1020 = vmul.f32 %v1004, %v919
        %v1021 = vmul.f32 %v1005, %v924
        %v1022 = vmul.f32 %v1006, %v929
        %v1023 = vmul.f32 %v1007, %v934
        %v1024 = vmul.f32 %v1008, %v939
        %v1025 = vmul.f32 %v1009, %v944
        %v1026 = vld [vmem:[%s5] sm:$0x1]
        %v1027 = vadd.f32 %v946, %v947
        %v1028 = vadd.f32 %v1027, %v948
        %v1029 = vadd.f32 %v1028, %v949
        %v1030 = vadd.f32 %v1029, %v950
        %v1031 = vadd.f32 %v1030, %v951
        %v1032 = vadd.f32 %v1031, %v952
        %v1033 = vadd.f32 %v1032, %v953
        %v1034 = vadd.f32 %v1033, %v954
        %v1035 = vadd.f32 %v1034, %v955
        %v1036 = vadd.f32 %v1035, %v956
        %v1037 = vadd.f32 %v1036, %v957
        %v1038 = vadd.f32 %v1037, %v958
        %v1039 = vadd.f32 %v1038, %v959
        %v1040 = vadd.f32 %v1039, %v960
        %v1041 = vadd.f32 %v1040, %v961
        %v1042 = vrot.slane %v1041, 4
        %v1043 = vadd.f32 %v1041, %v1042
        %v1044 = vrot.slane %v1043, 2
        %v1045 = vadd.f32 %v1043, %v1044
        %v1046 = vrot.slane %v1045, 1
        %v1047 = vadd.f32 %v1045, %v1046
        %v1048 = vadd.f32 %v1026, %v1047
        %1049 = vst [vmem:[%s5] sm:$0x1] %v1048
        %v1050 = vld [vmem:[%s6] sm:$0xff]
        %v1051 = vld [vmem:[%s6 + $0x8] sm:$0xff]
        %v1052 = vld [vmem:[%s6 + $0x10] sm:$0xff]
        %v1053 = vld [vmem:[%s6 + $0x18] sm:$0xff]
        %v1054 = vld [vmem:[%s6 + $0x20] sm:$0xff]
        %v1055 = vld [vmem:[%s6 + $0x28] sm:$0xff]
        %v1056 = vld [vmem:[%s6 + $0x30] sm:$0xff]
        %v1057 = vld [vmem:[%s6 + $0x38] sm:$0xff]
        %v1058 = vld [vmem:[%s6 + $0x40] sm:$0xff]
        %v1059 = vld [vmem:[%s6 + $0x48] sm:$0xff]
        %v1060 = vld [vmem:[%s6 + $0x50] sm:$0xff]
        %v1061 = vld [vmem:[%s6 + $0x58] sm:$0xff]
        %v1062 = vld [vmem:[%s6 + $0x60] sm:$0xff]
        %v1063 = vld [vmem:[%s6 + $0x68] sm:$0xff]
        %v1064 = vld [vmem:[%s6 + $0x70] sm:$0xff]
        %v1065 = vld [vmem:[%s6 + $0x78] sm:$0xff]
        %v1066 = vpack.c.bf16 %v947, %v946
        %v1067 = vpack.c.bf16 %v949, %v948
        %v1068 = vpack.c.bf16 %v951, %v950
        %v1069 = vpack.c.bf16 %v953, %v952
        %v1070 = vpack.c.bf16 %v955, %v954
        %v1071 = vpack.c.bf16 %v957, %v956
        %v1072 = vpack.c.bf16 %v959, %v958
        %v1073 = vpack.c.bf16 %v961, %v960
        %v1074 = vpack.c.bf16 %v1011, %v1010
        %v1075 = vpack.c.bf16 %v1013, %v1012
        %v1076 = vpack.c.bf16 %v1015, %v1014
        %v1077 = vpack.c.bf16 %v1017, %v1016
        %v1078 = vpack.c.bf16 %v1019, %v1018
        %v1079 = vpack.c.bf16 %v1021, %v1020
        %v1080 = vpack.c.bf16 %v1023, %v1022
        %v1081 = vpack.c.bf16 %v1025, %v1024
        %1082 = vxpose.xlu0.c.b16.start [1/8] %v1066, 128
        %1083 = vxpose.xlu0.c.b16.cont [2/8] %v1067, 128
        %1084 = vxpose.xlu0.c.b16.cont [3/8] %v1068, 128
        %1085 = vxpose.xlu0.c.b16.cont [4/8] %v1069, 128
        %1086 = vxpose.xlu0.c.b16.cont [5/8] %v1070, 128
        %1087 = vxpose.xlu0.c.b16.cont [6/8] %v1071, 128
        %1088 = vxpose.xlu0.c.b16.cont [7/8] %v1072, 128
        %1089 = vxpose.xlu0.c.b16.end [8/8] %v1073, 128
        %v1090 = vpop.trf.xlu0
        %v1091 = vpop.trf.xlu0
        %v1092 = vpop.trf.xlu0
        %v1093 = vpop.trf.xlu0
        %v1094 = vpop.trf.xlu0
        %v1095 = vpop.trf.xlu0
        %v1096 = vpop.trf.xlu0
        %v1097 = vpop.trf.xlu0
        %1098 = vmatprep.subr.bf16.mxu0 0
        %1099 = vmatpush1.bf16.msra.mxu0 %v1081
        %1100 = vmatprep.subr.bf16.mxu0 0
        %1101 = vmatpush1.bf16.msra.mxu0 %v1080
        %1102 = vmatprep.subr.bf16.mxu0 0
        %1103 = vmatpush1.bf16.msra.mxu0 %v1079
        %1104 = vmatprep.subr.bf16.mxu0 0
        %1105 = vmatpush1.bf16.msra.mxu0 %v1078
        %1106 = vmatprep.subr.bf16.mxu0 0
        %1107 = vmatpush1.bf16.msra.mxu0 %v1077
        %1108 = vmatprep.subr.bf16.mxu0 0
        %1109 = vmatpush1.bf16.msra.mxu0 %v1076
        %1110 = vmatprep.subr.bf16.mxu0 0
        %1111 = vmatpush1.bf16.msra.mxu0 %v1075
        %1112 = vmatprep.subr.bf16.mxu0 0
        %1113 = vmatpush1.bf16.msra.mxu0 %v1074
        %1114 = vmatprep.subr.bf16.mxu0 0
        %1115 = vmatpush2.bf16.msra.mxu0 0
        %1116 = vmatprep.subr.bf16.mxu0 0
        %1117 = vmatpush2.bf16.msra.mxu0 0
        %1118 = vmatprep.subr.bf16.mxu0 0
        %1119 = vmatpush2.bf16.msra.mxu0 0
        %1120 = vmatprep.subr.bf16.mxu0 0
        %1121 = vmatpush2.bf16.msra.mxu0 0
        %1122 = vmatprep.subr.bf16.mxu0 0
        %1123 = vmatpush2.bf16.msra.mxu0 0
        %1124 = vmatprep.subr.bf16.mxu0 0
        %1125 = vmatpush2.bf16.msra.mxu0 0
        %1126 = vmatprep.subr.bf16.mxu0 0
        %1127 = vmatpush2.bf16.msra.mxu0 0
        %1128 = vmatprep.subr.bf16.mxu0 0
        %1129 = vmatpush2.bf16.msra.mxu0 0
        %1130 = vmatprep.mubr.bf16.mxu0 0
        %1131 = vmatmul.mubr.bf16.gmra.mxu0 %v1090
        %v1132 = vpop.f32.mrf.mxu0
        %v1133 = vadd.f32 0.0, %v1132
        %v1134 = vpop.f32.mrf.mxu0
        %v1135 = vpop.f32.mrf.mxu0
        %v1136 = vadd.f32 0.0, %v1135
        %v1137 = vpop.f32.mrf.mxu0
        %1138 = vmatprep.mubr.bf16.mxu0 0
        %1139 = vmatmul.mubr.bf16.gmra.mxu0 %v1091
        %v1140 = vpop.f32.mrf.mxu0
        %v1141 = vadd.f32 0.0, %v1140
        %v1142 = vpop.f32.mrf.mxu0
        %v1143 = vpop.f32.mrf.mxu0
        %v1144 = vadd.f32 0.0, %v1143
        %v1145 = vpop.f32.mrf.mxu0
        %1146 = vmatprep.mubr.bf16.mxu0 0
        %1147 = vmatmul.mubr.bf16.gmra.mxu0 %v1092
        %v1148 = vpop.f32.mrf.mxu0
        %v1149 = vadd.f32 0.0, %v1148
        %v1150 = vpop.f32.mrf.mxu0
        %v1151 = vpop.f32.mrf.mxu0
        %v1152 = vadd.f32 0.0, %v1151
        %v1153 = vpop.f32.mrf.mxu0
        %1154 = vmatprep.mubr.bf16.mxu0 0
        %1155 = vmatmul.mubr.bf16.gmra.mxu0 %v1093
        %v1156 = vpop.f32.mrf.mxu0
        %v1157 = vadd.f32 0.0, %v1156
        %v1158 = vpop.f32.mrf.mxu0
        %v1159 = vpop.f32.mrf.mxu0
        %v1160 = vadd.f32 0.0, %v1159
        %v1161 = vpop.f32.mrf.mxu0
        %1162 = vmatprep.mubr.bf16.mxu0 0
        %1163 = vmatmul.mubr.bf16.gmra.mxu0 %v1094
        %v1164 = vpop.f32.mrf.mxu0
        %v1165 = vadd.f32 0.0, %v1164
        %v1166 = vpop.f32.mrf.mxu0
        %v1167 = vpop.f32.mrf.mxu0
        %v1168 = vadd.f32 0.0, %v1167
        %v1169 = vpop.f32.mrf.mxu0
        %1170 = vmatprep.mubr.bf16.mxu0 0
        %1171 = vmatmul.mubr.bf16.gmra.mxu0 %v1095
        %v1172 = vpop.f32.mrf.mxu0
        %v1173 = vadd.f32 0.0, %v1172
        %v1174 = vpop.f32.mrf.mxu0
        %v1175 = vpop.f32.mrf.mxu0
        %v1176 = vadd.f32 0.0, %v1175
        %v1177 = vpop.f32.mrf.mxu0
        %1178 = vmatprep.mubr.bf16.mxu0 0
        %1179 = vmatmul.mubr.bf16.gmra.mxu0 %v1096
        %v1180 = vpop.f32.mrf.mxu0
        %v1181 = vadd.f32 0.0, %v1180
        %v1182 = vpop.f32.mrf.mxu0
        %v1183 = vpop.f32.mrf.mxu0
        %v1184 = vadd.f32 0.0, %v1183
        %v1185 = vpop.f32.mrf.mxu0
        %1186 = vmatprep.mubr.bf16.mxu0 0
        %1187 = vmatmul.mubr.bf16.gmra.mxu0 %v1097
        %v1188 = vpop.f32.mrf.mxu0
        %v1189 = vadd.f32 0.0, %v1188
        %v1190 = vpop.f32.mrf.mxu0
        %v1191 = vpop.f32.mrf.mxu0
        %v1192 = vadd.f32 0.0, %v1191
        %v1193 = vpop.f32.mrf.mxu0
        %1194 = vdwg.mxu0
        %v1195 = vadd.f32 %v1050, %v1133
        %v1196 = vadd.f32 %v1051, %v1136
        %v1197 = vadd.f32 %v1052, %v1141
        %v1198 = vadd.f32 %v1053, %v1144
        %v1199 = vadd.f32 %v1054, %v1149
        %v1200 = vadd.f32 %v1055, %v1152
        %v1201 = vadd.f32 %v1056, %v1157
        %v1202 = vadd.f32 %v1057, %v1160
        %v1203 = vadd.f32 %v1058, %v1165
        %v1204 = vadd.f32 %v1059, %v1168
        %v1205 = vadd.f32 %v1060, %v1173
        %v1206 = vadd.f32 %v1061, %v1176
        %v1207 = vadd.f32 %v1062, %v1181
        %v1208 = vadd.f32 %v1063, %v1184
        %v1209 = vadd.f32 %v1064, %v1189
        %v1210 = vadd.f32 %v1065, %v1192
        %1211 = vst [vmem:[%s6] sm:$0xff] %v1195
        %1212 = vst [vmem:[%s6 + $0x8] sm:$0xff] %v1196
        %1213 = vst [vmem:[%s6 + $0x10] sm:$0xff] %v1197
        %1214 = vst [vmem:[%s6 + $0x18] sm:$0xff] %v1198
        %1215 = vst [vmem:[%s6 + $0x20] sm:$0xff] %v1199
        %1216 = vst [vmem:[%s6 + $0x28] sm:$0xff] %v1200
        %1217 = vst [vmem:[%s6 + $0x30] sm:$0xff] %v1201
        %1218 = vst [vmem:[%s6 + $0x38] sm:$0xff] %v1202
        %1219 = vst [vmem:[%s6 + $0x40] sm:$0xff] %v1203
        %1220 = vst [vmem:[%s6 + $0x48] sm:$0xff] %v1204
        %1221 = vst [vmem:[%s6 + $0x50] sm:$0xff] %v1205
        %1222 = vst [vmem:[%s6 + $0x58] sm:$0xff] %v1206
        %1223 = vst [vmem:[%s6 + $0x60] sm:$0xff] %v1207
        %1224 = vst [vmem:[%s6 + $0x68] sm:$0xff] %v1208
        %1225 = vst [vmem:[%s6 + $0x70] sm:$0xff] %v1209
        %1226 = vst [vmem:[%s6 + $0x78] sm:$0xff] %v1210
        %p1227 = scmp.eq.s32.totalorder %s21, 1
        // Predicated region
        $region49: #{geometric_linearized_attention.2} parent=39 // pred_check
          %p1228 = pneg %p1227
        $region50: #{geometric_linearized_attention.2} parent=39 // pred_check_branch
          %1230 = sbr.rel (%p1228) target = $region52
        $region51: #{geometric_linearized_attention.2} parent=39 // pred_region
          %v1231 = vld [vmem:[%s6] sm:$0xff]
          %v1232 = vld [vmem:[%s6 + $0x8] sm:$0xff]
          %v1233 = vld [vmem:[%s6 + $0x10] sm:$0xff]
          %v1234 = vld [vmem:[%s6 + $0x18] sm:$0xff]
          %v1235 = vld [vmem:[%s6 + $0x20] sm:$0xff]
          %v1236 = vld [vmem:[%s6 + $0x28] sm:$0xff]
          %v1237 = vld [vmem:[%s6 + $0x30] sm:$0xff]
          %v1238 = vld [vmem:[%s6 + $0x38] sm:$0xff]
          %v1239 = vld [vmem:[%s6 + $0x40] sm:$0xff]
          %v1240 = vld [vmem:[%s6 + $0x48] sm:$0xff]
          %v1241 = vld [vmem:[%s6 + $0x50] sm:$0xff]
          %v1242 = vld [vmem:[%s6 + $0x58] sm:$0xff]
          %v1243 = vld [vmem:[%s6 + $0x60] sm:$0xff]
          %v1244 = vld [vmem:[%s6 + $0x68] sm:$0xff]
          %v1245 = vld [vmem:[%s6 + $0x70] sm:$0xff]
          %v1246 = vld [vmem:[%s6 + $0x78] sm:$0xff]
          %v1247 = vunpack.c.l.bf16 %v371
          %v1248 = vunpack.c.l.bf16 %v372
          %v1249 = vunpack.c.l.bf16 %v373
          %v1250 = vunpack.c.l.bf16 %v374
          %v1251 = vunpack.c.l.bf16 %v375
          %v1252 = vunpack.c.l.bf16 %v376
          %v1253 = vunpack.c.l.bf16 %v377
          %v1254 = vunpack.c.l.bf16 %v378
          %v1255 = vunpack.c.l.bf16 %v379
          %v1256 = vunpack.c.l.bf16 %v380
          %v1257 = vunpack.c.l.bf16 %v381
          %v1258 = vunpack.c.l.bf16 %v382
          %v1259 = vunpack.c.l.bf16 %v383
          %v1260 = vunpack.c.l.bf16 %v384
          %v1261 = vunpack.c.l.bf16 %v385
          %v1262 = vunpack.c.l.bf16 %v386
          %v1263 = vmul.f32 %v1231, %v1247
          %v1264 = vmul.f32 %v1232, %v1248
          %v1265 = vmul.f32 %v1233, %v1249
          %v1266 = vmul.f32 %v1234, %v1250
          %v1267 = vmul.f32 %v1235, %v1251
          %v1268 = vmul.f32 %v1236, %v1252
          %v1269 = vmul.f32 %v1237, %v1253
          %v1270 = vmul.f32 %v1238, %v1254
          %v1271 = vmul.f32 %v1239, %v1255
          %v1272 = vmul.f32 %v1240, %v1256
          %v1273 = vmul.f32 %v1241, %v1257
          %v1274 = vmul.f32 %v1242, %v1258
          %v1275 = vmul.f32 %v1243, %v1259
          %v1276 = vmul.f32 %v1244, %v1260
          %v1277 = vmul.f32 %v1245, %v1261
          %v1278 = vmul.f32 %v1246, %v1262
          %1279 = vst [vmem:[%s6] sm:$0xff] %v1263
          %1280 = vst [vmem:[%s6 + $0x8] sm:$0xff] %v1264
          %1281 = vst [vmem:[%s6 + $0x10] sm:$0xff] %v1265
          %1282 = vst [vmem:[%s6 + $0x18] sm:$0xff] %v1266
          %1283 = vst [vmem:[%s6 + $0x20] sm:$0xff] %v1267
          %1284 = vst [vmem:[%s6 + $0x28] sm:$0xff] %v1268
          %1285 = vst [vmem:[%s6 + $0x30] sm:$0xff] %v1269
          %1286 = vst [vmem:[%s6 + $0x38] sm:$0xff] %v1270
          %1287 = vst [vmem:[%s6 + $0x40] sm:$0xff] %v1271
          %1288 = vst [vmem:[%s6 + $0x48] sm:$0xff] %v1272
          %1289 = vst [vmem:[%s6 + $0x50] sm:$0xff] %v1273
          %1290 = vst [vmem:[%s6 + $0x58] sm:$0xff] %v1274
          %1291 = vst [vmem:[%s6 + $0x60] sm:$0xff] %v1275
          %1292 = vst [vmem:[%s6 + $0x68] sm:$0xff] %v1276
          %1293 = vst [vmem:[%s6 + $0x70] sm:$0xff] %v1277
          %1294 = vst [vmem:[%s6 + $0x78] sm:$0xff] %v1278
        $region52: #{geometric_linearized_attention.2} parent=39 // pred_fallthru
          _
        // Predicated region
        $region53: #{geometric_linearized_attention.2} parent=39 // pred_check
          %p1295 = pneg %p154
        $region54: #{geometric_linearized_attention.2} parent=39 // pred_check_branch
          %1297 = sbr.rel (%p1295) target = $region56
        $region55: #{geometric_linearized_attention.2} parent=39 // pred_region
          _
        $region56: #{geometric_linearized_attention.2} parent=39 // pred_fallthru
          _
        // Predicated region
        $region57: #{geometric_linearized_attention.2} parent=39 // pred_check
          %p1298 = pneg %p175
        $region58: #{geometric_linearized_attention.2} parent=39 // pred_check_branch
          %1300 = sbr.rel (%p1298) target = $region60
        $region59: #{geometric_linearized_attention.2} parent=39 // pred_region
          _
        $region60: #{geometric_linearized_attention.2} parent=39 // pred_fallthru
          _
        // Predicated region
        $region61: #{geometric_linearized_attention.2} parent=39 // pred_check
          %p1301 = pneg %p154
        $region62: #{geometric_linearized_attention.2} parent=39 // pred_check_branch
          %1303 = sbr.rel (%p1301) target = $region64
        $region63: #{geometric_linearized_attention.2} parent=39 // pred_region
          _
        $region64: #{geometric_linearized_attention.2} parent=39 // pred_fallthru
          _
        // Predicated region
        $region65: #{geometric_linearized_attention.2} parent=39 // pred_check
          %p1304 = pneg %p175
        $region66: #{geometric_linearized_attention.2} parent=39 // pred_check_branch
          %1306 = sbr.rel (%p1304) target = $region68
        $region67: #{geometric_linearized_attention.2} parent=39 // pred_region
          _
        $region68: #{geometric_linearized_attention.2} parent=39 // pred_fallthru
          _
      $region40: #{geometric_linearized_attention.2} parent=5 // pred_fallthru
        _
      %p1307 = scmp.le.s32.totalorder 2, %s16
      // Predicated region
      $region69: #{geometric_linearized_attention.2} parent=5 // pred_check
        %p1308 = pneg %p1307
      $region70: #{geometric_linearized_attention.2} parent=5 // pred_check_branch
        %1310 = sbr.rel (%p1308) target = $region72
      $region71: #{geometric_linearized_attention.2} parent=5 // pred_region
        %s1311 = ssub.s32 %s16, 2
      $region72: #{geometric_linearized_attention.2} parent=5 // pred_fallthru
        _
    $region6: #{geometric_linearized_attention.2} parent=1 // loop_footer
      %s20 = sadd.s32 1, %s16
    $region7: #{geometric_linearized_attention.2} parent=1 // loop_footer_branch
      %15 = sbr.rel target = $region3
    $region8: #{geometric_linearized_attention.2} parent=1 // loop_exit
      _
    %1312 = vsyncpa [#allocation3], 1
    %s1313 = scalar_lea.sflag [#allocation3], 1
    %1314 = vsyncpa %s1313, 1

// kernel: geometric_linearized_attention.3
$region0: #{geometric_linearized_attention.3}
  #allocation0 [shape = 'u32[]', space=smem, size = 0x4, offset = 0x4, fixed_abs, tag = 'smem constant byte address 0x4 - core index']
  #allocation1 [shape = 'u32[144,128]{1,0:T(1,128)}', space=vmem, size = 0x12000, scoped, tag = 'internal scratch']
  %s0 = inlined_call_operand.vmem [shape: f32[256,128], index: 0, kind: input, shape index: {}]
  %s1 = inlined_call_operand.vmem [shape: f32[256,128], index: 1, kind: input, shape index: {}]
  %s2 = inlined_call_operand.vmem [shape: f32[1,128], index: 2, kind: input, shape index: {}]
  %s3 = inlined_call_operand.vmem [shape: bf16[128,128], index: 3, kind: input, shape index: {}]
  %s4 = inlined_call_operand.vmem [shape: f32[1,128], index: 4, kind: input, shape index: {}]
  %s5 = inlined_call_operand.vmem [shape: f32[128,128], index: 5, kind: input, shape index: {}]
  %s6 = inlined_call_operand.hbm [shape: f32[256,128], index: 6, kind: output, shape index: {}]
  %s7 = sld [smem:[#allocation0]]
  $region57: #{geometric_linearized_attention.3} parent=0
    _
  %s9 = ssub.s32 1, %s7
  %s10 = scalar_select 0, %s9, %s7
  $region1: #{geometric_linearized_attention.3} parent=0
    #allocation2 [shape = 'u8[131072]{0}', space=vmem, size = 0x20000, scoped, tag = 'output window, operand 0']
    #allocation3 [shape = 's32[2]{0}', space=sflag, size = 0x8, scoped, tag = 'scoped memory for geometric_linearized_attention.3']
    %11 = vsyncpa [#allocation3], 0
    %s12 = scalar_lea.sflag [#allocation3], 1
    %13 = vsyncpa %s12, 0
    loop: start=0, step=1, limit=4
    $region2: #{geometric_linearized_attention.3} parent=1 // loop_pre_header
      _
    $region3: #{geometric_linearized_attention.3} parent=1 // loop_header
      %s15 = sphi 0, %s19
      %p16 = scmp.ge.s32.totalorder %s15, 4
      %s25 = sphi 0, %s27
      %s28 = sphi 0, %s25
      %s29 = sphi 0, %s28
      %s45 = sphi 0, %s29
      %s51 = sphi 0, %s53
      %s54 = sphi 0, %s51
      %s55 = sphi 0, %s54
      %s71 = sphi 0, %s55
      %s75 = sphi 0, %s75
      %s77 = sphi 0, %s75
      %s78 = sphi 0, %s77
      %s92 = sphi 0, %s78
      %s96 = sphi 0, %s96
      %s98 = sphi 0, %s96
      %s99 = sphi 0, %s98
      %s113 = sphi 0, %s99
      %s117 = sphi 0, %s117
      %s119 = sphi 0, %s117
      %s120 = sphi 0, %s119
      %s134 = sphi 0, %s120
      %s138 = sphi 0, %s138
      %s140 = sphi 0, %s138
      %s141 = sphi 0, %s140
      %s155 = sphi 0, %s141
      %s161 = sphi 0, %s163
      %s164 = sphi 0, %s161
      %s165 = sphi 0, %s164
      %s181 = sphi 0, %s165
    $region4: #{geometric_linearized_attention.3} parent=1 // loop_header_branch
      %18 = sbr.rel (%p16) target = $region8
    $region5: #{geometric_linearized_attention.3} parent=1 // loop_body
      %s20 = ssub.s32 %s15, 1
      %s21 = ssub.s32 %s15, 2
      %s22 = sadd.s32 %s15, 1
      %s23 = ssub.s32 %s15, %s22
      %p24 = scmp.eq.s32.totalorder %s23, 0
      %s26 = sadd.s32 %s25, 1
      %s27 = scalar_select %p24, %s25, %s26
      %p30 = pneg %p24
      %p31 = scmp.eq.s32.totalorder %s15, 1
      %p32 = por %p30, %p31
      %p33 = scmp.ne.s32.totalorder %s25, %s28
      %p34 = scmp.eq.s32.totalorder %s15, 0
      %p35 = por %p33, %p34
      %p36 = scmp.ne.s32.totalorder %s25, %s28
      %p37 = scmp.eq.s32.totalorder %s20, 1
      %p38 = por %p36, %p37
      %p39 = scmp.ne.s32.totalorder %s28, %s29
      %p40 = scmp.eq.s32.totalorder %s20, 0
      %p41 = por %p39, %p40
      %p42 = scmp.ne.s32.totalorder %s28, %s29
      %p43 = scmp.eq.s32.totalorder %s21, 1
      %p44 = por %p42, %p43
      %p46 = scmp.ne.s32.totalorder %s29, %s45
      %p47 = scmp.eq.s32.totalorder %s21, 0
      %p48 = por %p46, %p47
      %s49 = ssub.s32 %s15, %s22
      %p50 = scmp.eq.s32.totalorder %s49, 0
      %s52 = sadd.s32 %s51, 1
      %s53 = scalar_select %p50, %s51, %s52
      %p56 = pneg %p50
      %p57 = scmp.eq.s32.totalorder %s15, 1
      %p58 = por %p56, %p57
      %p59 = scmp.ne.s32.totalorder %s51, %s54
      %p60 = scmp.eq.s32.totalorder %s15, 0
      %p61 = por %p59, %p60
      %p62 = scmp.ne.s32.totalorder %s51, %s54
      %p63 = scmp.eq.s32.totalorder %s20, 1
      %p64 = por %p62, %p63
      %p65 = scmp.ne.s32.totalorder %s54, %s55
      %p66 = scmp.eq.s32.totalorder %s20, 0
      %p67 = por %p65, %p66
      %p68 = scmp.ne.s32.totalorder %s54, %s55
      %p69 = scmp.eq.s32.totalorder %s21, 1
      %p70 = por %p68, %p69
      %p72 = scmp.ne.s32.totalorder %s55, %s71
      %p73 = scmp.eq.s32.totalorder %s21, 0
      %p74 = por %p72, %p73
      %s76 = sadd.s32 %s75, 1
      %p79 = scmp.eq.s32.totalorder %s15, 1
      %p80 = scmp.ne.s32.totalorder %s75, %s77
      %p81 = scmp.eq.s32.totalorder %s15, 0
      %p82 = por %p80, %p81
      %p83 = scmp.ne.s32.totalorder %s75, %s77
      %p84 = scmp.eq.s32.totalorder %s20, 1
      %p85 = por %p83, %p84
      %p86 = scmp.ne.s32.totalorder %s77, %s78
      %p87 = scmp.eq.s32.totalorder %s20, 0
      %p88 = por %p86, %p87
      %p89 = scmp.ne.s32.totalorder %s77, %s78
      %p90 = scmp.eq.s32.totalorder %s21, 1
      %p91 = por %p89, %p90
      %p93 = scmp.ne.s32.totalorder %s78, %s92
      %p94 = scmp.eq.s32.totalorder %s21, 0
      %p95 = por %p93, %p94
      %s97 = sadd.s32 %s96, 1
      %p100 = scmp.eq.s32.totalorder %s15, 1
      %p101 = scmp.ne.s32.totalorder %s96, %s98
      %p102 = scmp.eq.s32.totalorder %s15, 0
      %p103 = por %p101, %p102
      %p104 = scmp.ne.s32.totalorder %s96, %s98
      %p105 = scmp.eq.s32.totalorder %s20, 1
      %p106 = por %p104, %p105
      %p107 = scmp.ne.s32.totalorder %s98, %s99
      %p108 = scmp.eq.s32.totalorder %s20, 0
      %p109 = por %p107, %p108
      %p110 = scmp.ne.s32.totalorder %s98, %s99
      %p111 = scmp.eq.s32.totalorder %s21, 1
      %p112 = por %p110, %p111
      %p114 = scmp.ne.s32.totalorder %s99, %s113
      %p115 = scmp.eq.s32.totalorder %s21, 0
      %p116 = por %p114, %p115
      %s118 = sadd.s32 %s117, 1
      %p121 = scmp.eq.s32.totalorder %s15, 1
      %p122 = scmp.ne.s32.totalorder %s117, %s119
      %p123 = scmp.eq.s32.totalorder %s15, 0
      %p124 = por %p122, %p123
      %p125 = scmp.ne.s32.totalorder %s117, %s119
      %p126 = scmp.eq.s32.totalorder %s20, 1
      %p127 = por %p125, %p126
      %p128 = scmp.ne.s32.totalorder %s119, %s120
      %p129 = scmp.eq.s32.totalorder %s20, 0
      %p130 = por %p128, %p129
      %p131 = scmp.ne.s32.totalorder %s119, %s120
      %p132 = scmp.eq.s32.totalorder %s21, 1
      %p133 = por %p131, %p132
      %p135 = scmp.ne.s32.totalorder %s120, %s134
      %p136 = scmp.eq.s32.totalorder %s21, 0
      %p137 = por %p135, %p136
      %s139 = sadd.s32 %s138, 1
      %p142 = scmp.eq.s32.totalorder %s15, 1
      %p143 = scmp.ne.s32.totalorder %s138, %s140
      %p144 = scmp.eq.s32.totalorder %s15, 0
      %p145 = por %p143, %p144
      %p146 = scmp.ne.s32.totalorder %s138, %s140
      %p147 = scmp.eq.s32.totalorder %s20, 1
      %p148 = por %p146, %p147
      %p149 = scmp.ne.s32.totalorder %s140, %s141
      %p150 = scmp.eq.s32.totalorder %s20, 0
      %p151 = por %p149, %p150
      %p152 = scmp.ne.s32.totalorder %s140, %s141
      %p153 = scmp.eq.s32.totalorder %s21, 1
      %p154 = por %p152, %p153
      %p156 = scmp.ne.s32.totalorder %s141, %s155
      %p157 = scmp.eq.s32.totalorder %s21, 0
      %p158 = por %p156, %p157
      %s159 = ssub.s32 %s15, %s22
      %p160 = scmp.eq.s32.totalorder %s159, 0
      %s162 = sadd.s32 %s161, 1
      %s163 = scalar_select %p160, %s161, %s162
      %p166 = pneg %p160
      %p167 = scmp.eq.s32.totalorder %s15, 1
      %p168 = por %p166, %p167
      %p169 = scmp.ne.s32.totalorder %s161, %s164
      %p170 = scmp.eq.s32.totalorder %s15, 0
      %p171 = por %p169, %p170
      %p172 = scmp.ne.s32.totalorder %s161, %s164
      %p173 = scmp.eq.s32.totalorder %s20, 1
      %p174 = por %p172, %p173
      %p175 = scmp.ne.s32.totalorder %s164, %s165
      %p176 = scmp.eq.s32.totalorder %s20, 0
      %p177 = por %p175, %p176
      %p178 = scmp.ne.s32.totalorder %s164, %s165
      %p179 = scmp.eq.s32.totalorder %s21, 1
      %p180 = por %p178, %p179
      %p182 = scmp.ne.s32.totalorder %s165, %s181
      %p183 = scmp.eq.s32.totalorder %s21, 0
      %p184 = por %p182, %p183
      %p185 = scmp.le.s32.totalorder 1, %s15
      %p186 = scmp.lt.s32.totalorder %s15, 3
      %p187 = pnand %p185, %p186
      %p188 = pneg %p187
      // Predicated region
      $region9: #{geometric_linearized_attention.3} parent=5 // pred_check
        _
      $region10: #{geometric_linearized_attention.3} parent=5 // pred_check_branch
        %190 = sbr.rel (%p187) target = $region12
      $region11: #{geometric_linearized_attention.3} parent=5 // pred_region
        %s191 = ssub.s32 %s15, 1
        // Predicated region
        $region13: #{geometric_linearized_attention.3} parent=11 // pred_check
          %p192 = pneg %p88
        $region14: #{geometric_linearized_attention.3} parent=11 // pred_check_branch
          %194 = sbr.rel (%p192) target = $region16
        $region15: #{geometric_linearized_attention.3} parent=11 // pred_region
          _
        $region16: #{geometric_linearized_attention.3} parent=11 // pred_fallthru
          _
        // Predicated region
        $region17: #{geometric_linearized_attention.3} parent=11 // pred_check
          %p195 = pneg %p109
        $region18: #{geometric_linearized_attention.3} parent=11 // pred_check_branch
          %197 = sbr.rel (%p195) target = $region20
        $region19: #{geometric_linearized_attention.3} parent=11 // pred_region
          _
        $region20: #{geometric_linearized_attention.3} parent=11 // pred_fallthru
          _
        // Predicated region
        $region21: #{geometric_linearized_attention.3} parent=11 // pred_check
          %p198 = pneg %p130
        $region22: #{geometric_linearized_attention.3} parent=11 // pred_check_branch
          %200 = sbr.rel (%p198) target = $region24
        $region23: #{geometric_linearized_attention.3} parent=11 // pred_region
          _
        $region24: #{geometric_linearized_attention.3} parent=11 // pred_fallthru
          _
        // Predicated region
        $region25: #{geometric_linearized_attention.3} parent=11 // pred_check
          %p201 = pneg %p151
        $region26: #{geometric_linearized_attention.3} parent=11 // pred_check_branch
          %203 = sbr.rel (%p201) target = $region28
        $region27: #{geometric_linearized_attention.3} parent=11 // pred_region
          _
        $region28: #{geometric_linearized_attention.3} parent=11 // pred_fallthru
          _
      $region12: #{geometric_linearized_attention.3} parent=5 // pred_fallthru
        _
      %p204 = scmp.lt.s32.totalorder %s15, 2
      // Predicated region
      $region29: #{geometric_linearized_attention.3} parent=5 // pred_check
        %p205 = pneg %p204
      $region30: #{geometric_linearized_attention.3} parent=5 // pred_check_branch
        %207 = sbr.rel (%p205) target = $region32
      $region31: #{geometric_linearized_attention.3} parent=5 // pred_region
        // Predicated region
        $region33: #{geometric_linearized_attention.3} parent=31 // pred_check
          %p208 = pneg %p35
        $region34: #{geometric_linearized_attention.3} parent=31 // pred_check_branch
          %210 = sbr.rel (%p208) target = $region36
        $region35: #{geometric_linearized_attention.3} parent=31 // pred_region
          %s211 = smul.u32 16, %s15
          %p212 = scmp.lt.s32.totalorder %s211, 31
          %s213 = scalar_select %p212, %s211, 31
          %s214 = smul.addr %s213, 8
          %s215 = scalar_lea.vmem %s0, %s214
          %s216 = smul.u32 16, %s15
        $region36: #{geometric_linearized_attention.3} parent=31 // pred_fallthru
          _
        // Predicated region
        $region37: #{geometric_linearized_attention.3} parent=31 // pred_check
          %p217 = pneg %p61
        $region38: #{geometric_linearized_attention.3} parent=31 // pred_check_branch
          %219 = sbr.rel (%p217) target = $region40
        $region39: #{geometric_linearized_attention.3} parent=31 // pred_region
          %s220 = smul.u32 16, %s15
          %p221 = scmp.lt.s32.totalorder %s220, 31
          %s222 = scalar_select %p221, %s220, 31
          %s223 = smul.addr %s222, 8
          %s224 = scalar_lea.vmem %s1, %s223
          %s225 = smul.u32 16, %s15
        $region40: #{geometric_linearized_attention.3} parent=31 // pred_fallthru
          _
      $region32: #{geometric_linearized_attention.3} parent=5 // pred_fallthru
        _
      %p226 = scmp.le.s32.totalorder 1, %s15
      %p227 = scmp.lt.s32.totalorder %s15, 3
      %p228 = pnand %p226, %p227
      %p229 = pneg %p228
      // Predicated region
      $region41: #{geometric_linearized_attention.3} parent=5 // pred_check
        _
      $region42: #{geometric_linearized_attention.3} parent=5 // pred_check_branch
        %231 = sbr.rel (%p228) target = $region44
      $region43: #{geometric_linearized_attention.3} parent=5 // pred_region
        %s232 = ssub.s32 %s15, 1
        %s233 = smul.u32 16, %s20
        %p234 = scmp.lt.s32.totalorder %s233, 31
        %s235 = scalar_select %p234, %s233, 31
        %s236 = smul.addr %s235, 8
        %s237 = scalar_lea.vmem %s0, %s236
        %p238 = pneg %p41
        %p239 = pneg %p38
        %s240 = smul.u32 16, %s20
        %p241 = scmp.lt.s32.totalorder %s240, 31
        %s242 = scalar_select %p241, %s240, 31
        %s243 = smul.addr %s242, 8
        %s244 = scalar_lea.vmem %s1, %s243
        %p245 = pneg %p67
        %p246 = pneg %p64
        %p247 = pneg %p88
        %p248 = pneg %p85
        %p249 = pneg %p109
        %p250 = pneg %p106
        %p251 = pneg %p130
        %p252 = pneg %p127
        %p253 = pneg %p151
        %p254 = pneg %p148
        %p255 = pneg %p177
        %p256 = pneg %p174
        %s257 = sand.u32 %s164, 1
        %s258 = scalar_lea.sflag [#allocation3], %s257
        %s259 = sand.u32 %s164, 1
        %s260 = smul.addr %s259, 128
        %s261 = scalar_lea.vmem [#allocation2], %s260
        %s262 = smul.u32 16, %s20
        %p263 = scmp.lt.s32.totalorder %s262, 31
        %s264 = scalar_select %p263, %s262, 31
        %s265 = smul.addr %s264, 8
        %s266 = scalar_lea.vmem %s0, %s265
        %s267 = smul.u32 16, %s20
        %s268 = smul.u32 16, %s20
        %p269 = scmp.lt.s32.totalorder %s268, 31
        %s270 = scalar_select %p269, %s268, 31
        %s271 = smul.addr %s270, 8
        %s272 = scalar_lea.vmem %s1, %s271
        %s273 = smul.u32 16, %s20
        %s274 = smul.u32 16, %s20
        %v276 = vld [vmem:[%s266] sm:$0xff]
        %v277 = vld [vmem:[%s266 + $0x8] sm:$0xff]
        %v278 = vld [vmem:[%s266 + $0x10] sm:$0xff]
        %v279 = vld [vmem:[%s266 + $0x18] sm:$0xff]
        %v280 = vld [vmem:[%s266 + $0x20] sm:$0xff]
        %v281 = vld [vmem:[%s266 + $0x28] sm:$0xff]
        %v282 = vld [vmem:[%s266 + $0x30] sm:$0xff]
        %v283 = vld [vmem:[%s266 + $0x38] sm:$0xff]
        %v284 = vld [vmem:[%s266 + $0x40] sm:$0xff]
        %v285 = vld [vmem:[%s266 + $0x48] sm:$0xff]
        %v286 = vld [vmem:[%s266 + $0x50] sm:$0xff]
        %v287 = vld [vmem:[%s266 + $0x58] sm:$0xff]
        %v288 = vld [vmem:[%s266 + $0x60] sm:$0xff]
        %v289 = vld [vmem:[%s266 + $0x68] sm:$0xff]
        %v290 = vld [vmem:[%s266 + $0x70] sm:$0xff]
        %v291 = vld [vmem:[%s266 + $0x78] sm:$0xff]
        %v292 = vld [vmem:[%s272] sm:$0xff]
        %v293 = vld [vmem:[%s272 + $0x8] sm:$0xff]
        %v294 = vld [vmem:[%s272 + $0x10] sm:$0xff]
        %v295 = vld [vmem:[%s272 + $0x18] sm:$0xff]
        %v296 = vld [vmem:[%s272 + $0x20] sm:$0xff]
        %v297 = vld [vmem:[%s272 + $0x28] sm:$0xff]
        %v298 = vld [vmem:[%s272 + $0x30] sm:$0xff]
        %v299 = vld [vmem:[%s272 + $0x38] sm:$0xff]
        %v300 = vld [vmem:[%s272 + $0x40] sm:$0xff]
        %v301 = vld [vmem:[%s272 + $0x48] sm:$0xff]
        %v302 = vld [vmem:[%s272 + $0x50] sm:$0xff]
        %v303 = vld [vmem:[%s272 + $0x58] sm:$0xff]
        %v304 = vld [vmem:[%s272 + $0x60] sm:$0xff]
        %v305 = vld [vmem:[%s272 + $0x68] sm:$0xff]
        %v306 = vld [vmem:[%s272 + $0x70] sm:$0xff]
        %v307 = vld [vmem:[%s272 + $0x78] sm:$0xff]
        %v308 = vld [vmem:[%s2] sm:$0x1]
        %v309 = vld [vmem:[%s3] sm:$0xf]
        %v310 = vld [vmem:[%s3 + $0x4] sm:$0xf]
        %v311 = vld [vmem:[%s3 + $0x8] sm:$0xf]
        %v312 = vld [vmem:[%s3 + $0xc] sm:$0xf]
        %v313 = vld [vmem:[%s3 + $0x10] sm:$0xf]
        %v314 = vld [vmem:[%s3 + $0x14] sm:$0xf]
        %v315 = vld [vmem:[%s3 + $0x18] sm:$0xf]
        %v316 = vld [vmem:[%s3 + $0x1c] sm:$0xf]
        %v317 = vld [vmem:[%s3 + $0x20] sm:$0xf]
        %v318 = vld [vmem:[%s3 + $0x24] sm:$0xf]
        %v319 = vld [vmem:[%s3 + $0x28] sm:$0xf]
        %v320 = vld [vmem:[%s3 + $0x2c] sm:$0xf]
        %v321 = vld [vmem:[%s3 + $0x30] sm:$0xf]
        %v322 = vld [vmem:[%s3 + $0x34] sm:$0xf]
        %v323 = vld [vmem:[%s3 + $0x38] sm:$0xf]
        %v324 = vld [vmem:[%s3 + $0x3c] sm:$0xf]
        %v325 = vld [vmem:[%s4] sm:$0x1]
        %v326 = vld [vmem:[%s5] sm:$0xff]
        %v327 = vld [vmem:[%s5 + $0x8] sm:$0xff]
        %v328 = vld [vmem:[%s5 + $0x10] sm:$0xff]
        %v329 = vld [vmem:[%s5 + $0x18] sm:$0xff]
        %v330 = vld [vmem:[%s5 + $0x20] sm:$0xff]
        %v331 = vld [vmem:[%s5 + $0x28] sm:$0xff]
        %v332 = vld [vmem:[%s5 + $0x30] sm:$0xff]
        %v333 = vld [vmem:[%s5 + $0x38] sm:$0xff]
        %v334 = vld [vmem:[%s5 + $0x40] sm:$0xff]
        %v335 = vld [vmem:[%s5 + $0x48] sm:$0xff]
        %v336 = vld [vmem:[%s5 + $0x50] sm:$0xff]
        %v337 = vld [vmem:[%s5 + $0x58] sm:$0xff]
        %v338 = vld [vmem:[%s5 + $0x60] sm:$0xff]
        %v339 = vld [vmem:[%s5 + $0x68] sm:$0xff]
        %v340 = vld [vmem:[%s5 + $0x70] sm:$0xff]
        %v341 = vld [vmem:[%s5 + $0x78] sm:$0xff]
        %v342 = vpack.c.bf16 %v327, %v326
        %v343 = vpack.c.bf16 %v329, %v328
        %v344 = vpack.c.bf16 %v331, %v330
        %v345 = vpack.c.bf16 %v333, %v332
        %v346 = vpack.c.bf16 %v335, %v334
        %v347 = vpack.c.bf16 %v337, %v336
        %v348 = vpack.c.bf16 %v339, %v338
        %v349 = vpack.c.bf16 %v341, %v340
        %v350 = vmul.f32 %v292, %v292
        %v351 = vmul.f32 %v293, %v293
        %v352 = vmul.f32 %v294, %v294
        %v353 = vmul.f32 %v295, %v295
        %v354 = vmul.f32 %v296, %v296
        %v355 = vmul.f32 %v297, %v297
        %v356 = vmul.f32 %v298, %v298
        %v357 = vmul.f32 %v299, %v299
        %v358 = vmul.f32 %v300, %v300
        %v359 = vmul.f32 %v301, %v301
        %v360 = vmul.f32 %v302, %v302
        %v361 = vmul.f32 %v303, %v303
        %v362 = vmul.f32 %v304, %v304
        %v363 = vmul.f32 %v305, %v305
        %v364 = vmul.f32 %v306, %v306
        %v365 = vmul.f32 %v307, %v307
        %v366 = vpack.c.bf16 %v351, %v350
        %v367 = vpack.c.bf16 %v353, %v352
        %v368 = vpack.c.bf16 %v355, %v354
        %v369 = vpack.c.bf16 %v357, %v356
        %v370 = vpack.c.bf16 %v359, %v358
        %v371 = vpack.c.bf16 %v361, %v360
        %v372 = vpack.c.bf16 %v363, %v362
        %v373 = vpack.c.bf16 %v365, %v364
        %v390 = vunpack.c.l.b16 %v309
        %v391 = vunpack.c.l.b16 %v310
        %v392 = vunpack.c.l.b16 %v311
        %v393 = vunpack.c.l.b16 %v312
        %v394 = vunpack.c.l.b16 %v313
        %v395 = vunpack.c.l.b16 %v314
        %v396 = vunpack.c.l.b16 %v315
        %v397 = vunpack.c.l.b16 %v316
        %v398 = vunpack.c.l.b16 %v317
        %v399 = vunpack.c.l.b16 %v318
        %v400 = vunpack.c.l.b16 %v319
        %v401 = vunpack.c.l.b16 %v320
        %v402 = vunpack.c.l.b16 %v321
        %v403 = vunpack.c.l.b16 %v322
        %v404 = vunpack.c.l.b16 %v323
        %v405 = vunpack.c.l.b16 %v324
        %v406 = vpack.c.b16 %v391, %v390
        %v407 = vpack.c.b16 %v393, %v392
        %v408 = vpack.c.b16 %v395, %v394
        %v409 = vpack.c.b16 %v397, %v396
        %v410 = vpack.c.b16 %v399, %v398
        %v411 = vpack.c.b16 %v401, %v400
        %v412 = vpack.c.b16 %v403, %v402
        %v413 = vpack.c.b16 %v405, %v404
        %422 = vmatprep.subr.bf16.mxu0 0
        %423 = vmatpush1.bf16.msra.mxu0 %v413
        %424 = vmatprep.subr.bf16.mxu0 0
        %425 = vmatpush1.bf16.msra.mxu0 %v412
        %426 = vmatprep.subr.bf16.mxu0 0
        %427 = vmatpush1.bf16.msra.mxu0 %v411
        %428 = vmatprep.subr.bf16.mxu0 0
        %429 = vmatpush1.bf16.msra.mxu0 %v410
        %430 = vmatprep.subr.bf16.mxu0 0
        %431 = vmatpush1.bf16.msra.mxu0 %v409
        %432 = vmatprep.subr.bf16.mxu0 0
        %433 = vmatpush1.bf16.msra.mxu0 %v408
        %434 = vmatprep.subr.bf16.mxu0 0
        %435 = vmatpush1.bf16.msra.mxu0 %v407
        %436 = vmatprep.subr.bf16.mxu0 0
        %437 = vmatpush1.bf16.msra.mxu0 %v406
        %438 = vmatprep.subr.bf16.mxu0 0
        %439 = vmatpush2.bf16.msra.mxu0 0
        %440 = vmatprep.subr.bf16.mxu0 0
        %441 = vmatpush2.bf16.msra.mxu0 0
        %442 = vmatprep.subr.bf16.mxu0 0
        %443 = vmatpush2.bf16.msra.mxu0 0
        %444 = vmatprep.subr.bf16.mxu0 0
        %445 = vmatpush2.bf16.msra.mxu0 0
        %446 = vmatprep.subr.bf16.mxu0 0
        %447 = vmatpush2.bf16.msra.mxu0 0
        %448 = vmatprep.subr.bf16.mxu0 0
        %449 = vmatpush2.bf16.msra.mxu0 0
        %450 = vmatprep.subr.bf16.mxu0 0
        %451 = vmatpush2.bf16.msra.mxu0 0
        %452 = vmatprep.subr.bf16.mxu0 0
        %453 = vmatpush2.bf16.msra.mxu0 0
        %454 = vmatprep.mubr.bf16.mxu0 0
        %455 = vmatmul.mubr.bf16.gmra.mxu0 %v366
        %v456 = vpop.f32.mrf.mxu0
        %v457 = vadd.f32 0.0, %v456
        %v458 = vpop.f32.mrf.mxu0
        %v459 = vpop.f32.mrf.mxu0
        %v460 = vadd.f32 0.0, %v459
        %v461 = vpop.f32.mrf.mxu0
        %462 = vmatprep.mubr.bf16.mxu0 0
        %463 = vmatmul.mubr.bf16.gmra.mxu0 %v367
        %v464 = vpop.f32.mrf.mxu0
        %v465 = vadd.f32 0.0, %v464
        %v466 = vpop.f32.mrf.mxu0
        %v467 = vpop.f32.mrf.mxu0
        %v468 = vadd.f32 0.0, %v467
        %v469 = vpop.f32.mrf.mxu0
        %470 = vmatprep.mubr.bf16.mxu0 0
        %471 = vmatmul.mubr.bf16.gmra.mxu0 %v368
        %v472 = vpop.f32.mrf.mxu0
        %v473 = vadd.f32 0.0, %v472
        %v474 = vpop.f32.mrf.mxu0
        %v475 = vpop.f32.mrf.mxu0
        %v476 = vadd.f32 0.0, %v475
        %v477 = vpop.f32.mrf.mxu0
        %478 = vmatprep.mubr.bf16.mxu0 0
        %479 = vmatmul.mubr.bf16.gmra.mxu0 %v369
        %v480 = vpop.f32.mrf.mxu0
        %v481 = vadd.f32 0.0, %v480
        %v482 = vpop.f32.mrf.mxu0
        %v483 = vpop.f32.mrf.mxu0
        %v484 = vadd.f32 0.0, %v483
        %v485 = vpop.f32.mrf.mxu0
        %486 = vmatprep.mubr.bf16.mxu0 0
        %487 = vmatmul.mubr.bf16.gmra.mxu0 %v370
        %v488 = vpop.f32.mrf.mxu0
        %v489 = vadd.f32 0.0, %v488
        %v490 = vpop.f32.mrf.mxu0
        %v491 = vpop.f32.mrf.mxu0
        %v492 = vadd.f32 0.0, %v491
        %v493 = vpop.f32.mrf.mxu0
        %494 = vmatprep.mubr.bf16.mxu0 0
        %495 = vmatmul.mubr.bf16.gmra.mxu0 %v371
        %v496 = vpop.f32.mrf.mxu0
        %v497 = vadd.f32 0.0, %v496
        %v498 = vpop.f32.mrf.mxu0
        %v499 = vpop.f32.mrf.mxu0
        %v500 = vadd.f32 0.0, %v499
        %v501 = vpop.f32.mrf.mxu0
        %502 = vmatprep.mubr.bf16.mxu0 0
        %503 = vmatmul.mubr.bf16.gmra.mxu0 %v372
        %v504 = vpop.f32.mrf.mxu0
        %v505 = vadd.f32 0.0, %v504
        %v506 = vpop.f32.mrf.mxu0
        %v507 = vpop.f32.mrf.mxu0
        %v508 = vadd.f32 0.0, %v507
        %v509 = vpop.f32.mrf.mxu0
        %510 = vmatprep.mubr.bf16.mxu0 0
        %511 = vmatmul.mubr.bf16.gmra.mxu0 %v373
        %v512 = vpop.f32.mrf.mxu0
        %v513 = vadd.f32 0.0, %v512
        %v514 = vpop.f32.mrf.mxu0
        %v515 = vpop.f32.mrf.mxu0
        %v516 = vadd.f32 0.0, %v515
        %v517 = vpop.f32.mrf.mxu0
        %518 = vdwg.mxu0
        %v520 = vlaneseq
        %v521 = vshrl.u32 %v520, 7
        %v522 = vsub.s32 0, %v521
        %v523 = vrot.slane %v308, %v522
        %v525 = vmul.f32 %v523, %v457
        %v526 = vmul.f32 %v523, %v460
        %v527 = vmul.f32 %v523, %v465
        %v528 = vmul.f32 %v523, %v468
        %v529 = vmul.f32 %v523, %v473
        %v530 = vmul.f32 %v523, %v476
        %v531 = vmul.f32 %v523, %v481
        %v532 = vmul.f32 %v523, %v484
        %v533 = vmul.f32 %v523, %v489
        %v534 = vmul.f32 %v523, %v492
        %v535 = vmul.f32 %v523, %v497
        %v536 = vmul.f32 %v523, %v500
        %v537 = vmul.f32 %v523, %v505
        %v538 = vmul.f32 %v523, %v508
        %v539 = vmul.f32 %v523, %v513
        %v540 = vmul.f32 %v523, %v516
        %v541 = vadd.f32 %v525, 1.0
        %v542 = vadd.f32 %v526, 1.0
        %v543 = vadd.f32 %v527, 1.0
        %v544 = vadd.f32 %v528, 1.0
        %v545 = vadd.f32 %v529, 1.0
        %v546 = vadd.f32 %v530, 1.0
        %v547 = vadd.f32 %v531, 1.0
        %v548 = vadd.f32 %v532, 1.0
        %v549 = vadd.f32 %v533, 1.0
        %v550 = vadd.f32 %v534, 1.0
        %v551 = vadd.f32 %v535, 1.0
        %v552 = vadd.f32 %v536, 1.0
        %v553 = vadd.f32 %v537, 1.0
        %v554 = vadd.f32 %v538, 1.0
        %v555 = vadd.f32 %v539, 1.0
        %v556 = vadd.f32 %v540, 1.0
        %v557 = vmax.f32 %v541, 1e-15
        %v558 = vmax.f32 %v542, 1e-15
        %v559 = vmax.f32 %v543, 1e-15
        %v560 = vmax.f32 %v544, 1e-15
        %v561 = vmax.f32 %v545, 1e-15
        %v562 = vmax.f32 %v546, 1e-15
        %v563 = vmax.f32 %v547, 1e-15
        %v564 = vmax.f32 %v548, 1e-15
        %v565 = vmax.f32 %v549, 1e-15
        %v566 = vmax.f32 %v550, 1e-15
        %v567 = vmax.f32 %v551, 1e-15
        %v568 = vmax.f32 %v552, 1e-15
        %v569 = vmax.f32 %v553, 1e-15
        %v570 = vmax.f32 %v554, 1e-15
        %v571 = vmax.f32 %v555, 1e-15
        %v572 = vmax.f32 %v556, 1e-15
        %v573 = vrcp.pop %v557
        %v574 = vrcp.pop %v558
        %v575 = vrcp.pop %v559
        %v576 = vrcp.pop %v560
        %v577 = vrcp.pop %v561
        %v578 = vrcp.pop %v562
        %v579 = vrcp.pop %v563
        %v580 = vrcp.pop %v564
        %v581 = vrcp.pop %v565
        %v582 = vrcp.pop %v566
        %v583 = vrcp.pop %v567
        %v584 = vrcp.pop %v568
        %v585 = vrcp.pop %v569
        %v586 = vrcp.pop %v570
        %v587 = vrcp.pop %v571
        %v588 = vrcp.pop %v572
        %v589 = vmul.f32 %v573, 2.0
        %v590 = vmul.f32 %v574, 2.0
        %v591 = vmul.f32 %v575, 2.0
        %v592 = vmul.f32 %v576, 2.0
        %v593 = vmul.f32 %v577, 2.0
        %v594 = vmul.f32 %v578, 2.0
        %v595 = vmul.f32 %v579, 2.0
        %v596 = vmul.f32 %v580, 2.0
        %v597 = vmul.f32 %v581, 2.0
        %v598 = vmul.f32 %v582, 2.0
        %v599 = vmul.f32 %v583, 2.0
        %v600 = vmul.f32 %v584, 2.0
        %v601 = vmul.f32 %v585, 2.0
        %v602 = vmul.f32 %v586, 2.0
        %v603 = vmul.f32 %v587, 2.0
        %v604 = vmul.f32 %v588, 2.0
        %v605 = vmul.f32 %v589, 0.5
        %v606 = vmul.f32 %v590, 0.5
        %v607 = vmul.f32 %v591, 0.5
        %v608 = vmul.f32 %v592, 0.5
        %v609 = vmul.f32 %v593, 0.5
        %v610 = vmul.f32 %v594, 0.5
        %v611 = vmul.f32 %v595, 0.5
        %v612 = vmul.f32 %v596, 0.5
        %v613 = vmul.f32 %v597, 0.5
        %v614 = vmul.f32 %v598, 0.5
        %v615 = vmul.f32 %v599, 0.5
        %v616 = vmul.f32 %v600, 0.5
        %v617 = vmul.f32 %v601, 0.5
        %v618 = vmul.f32 %v602, 0.5
        %v619 = vmul.f32 %v603, 0.5
        %v620 = vmul.f32 %v604, 0.5
        %v621 = vmul.f32 %v276, %v605
        %v622 = vmul.f32 %v277, %v606
        %v623 = vmul.f32 %v278, %v607
        %v624 = vmul.f32 %v279, %v608
        %v625 = vmul.f32 %v280, %v609
        %v626 = vmul.f32 %v281, %v610
        %v627 = vmul.f32 %v282, %v611
        %v628 = vmul.f32 %v283, %v612
        %v629 = vmul.f32 %v284, %v613
        %v630 = vmul.f32 %v285, %v614
        %v631 = vmul.f32 %v286, %v615
        %v632 = vmul.f32 %v287, %v616
        %v633 = vmul.f32 %v288, %v617
        %v634 = vmul.f32 %v289, %v618
        %v635 = vmul.f32 %v290, %v619
        %v636 = vmul.f32 %v291, %v620
        %vm637 = vcmp.gt.f32.partialorder %v621, 0.0
        %vm638 = vcmp.gt.f32.partialorder %v622, 0.0
        %vm639 = vcmp.gt.f32.partialorder %v623, 0.0
        %vm640 = vcmp.gt.f32.partialorder %v624, 0.0
        %vm641 = vcmp.gt.f32.partialorder %v625, 0.0
        %vm642 = vcmp.gt.f32.partialorder %v626, 0.0
        %vm643 = vcmp.gt.f32.partialorder %v627, 0.0
        %vm644 = vcmp.gt.f32.partialorder %v628, 0.0
        %vm645 = vcmp.gt.f32.partialorder %v629, 0.0
        %vm646 = vcmp.gt.f32.partialorder %v630, 0.0
        %vm647 = vcmp.gt.f32.partialorder %v631, 0.0
        %vm648 = vcmp.gt.f32.partialorder %v632, 0.0
        %vm649 = vcmp.gt.f32.partialorder %v633, 0.0
        %vm650 = vcmp.gt.f32.partialorder %v634, 0.0
        %vm651 = vcmp.gt.f32.partialorder %v635, 0.0
        %vm652 = vcmp.gt.f32.partialorder %v636, 0.0
        %v653 = vadd.f32 %v621, 1.0
        %v654 = vadd.f32 %v622, 1.0
        %v655 = vadd.f32 %v623, 1.0
        %v656 = vadd.f32 %v624, 1.0
        %v657 = vadd.f32 %v625, 1.0
        %v658 = vadd.f32 %v626, 1.0
        %v659 = vadd.f32 %v627, 1.0
        %v660 = vadd.f32 %v628, 1.0
        %v661 = vadd.f32 %v629, 1.0
        %v662 = vadd.f32 %v630, 1.0
        %v663 = vadd.f32 %v631, 1.0
        %v664 = vadd.f32 %v632, 1.0
        %v665 = vadd.f32 %v633, 1.0
        %v666 = vadd.f32 %v634, 1.0
        %v667 = vadd.f32 %v635, 1.0
        %v668 = vadd.f32 %v636, 1.0
        %v669 = vmul.f32 %v621, 1.442695
        %v670 = vpow.pop %v669
        %v671 = vmul.f32 %v622, 1.442695
        %v672 = vpow.pop %v671
        %v673 = vmul.f32 %v623, 1.442695
        %v674 = vpow.pop %v673
        %v675 = vmul.f32 %v624, 1.442695
        %v676 = vpow.pop %v675
        %v677 = vmul.f32 %v625, 1.442695
        %v678 = vpow.pop %v677
        %v679 = vmul.f32 %v626, 1.442695
        %v680 = vpow.pop %v679
        %v681 = vmul.f32 %v627, 1.442695
        %v682 = vpow.pop %v681
        %v683 = vmul.f32 %v628, 1.442695
        %v684 = vpow.pop %v683
        %v685 = vmul.f32 %v629, 1.442695
        %v686 = vpow.pop %v685
        %v687 = vmul.f32 %v630, 1.442695
        %v688 = vpow.pop %v687
        %v689 = vmul.f32 %v631, 1.442695
        %v690 = vpow.pop %v689
        %v691 = vmul.f32 %v632, 1.442695
        %v692 = vpow.pop %v691
        %v693 = vmul.f32 %v633, 1.442695
        %v694 = vpow.pop %v693
        %v695 = vmul.f32 %v634, 1.442695
        %v696 = vpow.pop %v695
        %v697 = vmul.f32 %v635, 1.442695
        %v698 = vpow.pop %v697
        %v699 = vmul.f32 %v636, 1.442695
        %v700 = vpow.pop %v699
        %v701 = vsel %vm637, %v653, %v670
        %v702 = vsel %vm638, %v654, %v672
        %v703 = vsel %vm639, %v655, %v674
        %v704 = vsel %vm640, %v656, %v676
        %v705 = vsel %vm641, %v657, %v678
        %v706 = vsel %vm642, %v658, %v680
        %v707 = vsel %vm643, %v659, %v682
        %v708 = vsel %vm644, %v660, %v684
        %v709 = vsel %vm645, %v661, %v686
        %v710 = vsel %vm646, %v662, %v688
        %v711 = vsel %vm647, %v663, %v690
        %v712 = vsel %vm648, %v664, %v692
        %v713 = vsel %vm649, %v665, %v694
        %v714 = vsel %vm650, %v666, %v696
        %v715 = vsel %vm651, %v667, %v698
        %v716 = vsel %vm652, %v668, %v700
        %v718 = vlaneseq
        %v719 = vshrl.u32 %v718, 7
        %v720 = vsub.s32 0, %v719
        %v721 = vrot.slane %v325, %v720
        %v723 = vmul.f32 %v701, %v721
        %v724 = vmul.f32 %v702, %v721
        %v725 = vmul.f32 %v703, %v721
        %v726 = vmul.f32 %v704, %v721
        %v727 = vmul.f32 %v705, %v721
        %v728 = vmul.f32 %v706, %v721
        %v729 = vmul.f32 %v707, %v721
        %v730 = vmul.f32 %v708, %v721
        %v731 = vmul.f32 %v709, %v721
        %v732 = vmul.f32 %v710, %v721
        %v733 = vmul.f32 %v711, %v721
        %v734 = vmul.f32 %v712, %v721
        %v735 = vmul.f32 %v713, %v721
        %v736 = vmul.f32 %v714, %v721
        %v737 = vmul.f32 %v715, %v721
        %v738 = vmul.f32 %v716, %v721
        %v739 = vpack.c.bf16 %v724, %v723
        %v740 = vpack.c.bf16 %v726, %v725
        %v741 = vpack.c.bf16 %v728, %v727
        %v742 = vpack.c.bf16 %v730, %v729
        %v743 = vpack.c.bf16 %v732, %v731
        %v744 = vpack.c.bf16 %v734, %v733
        %v745 = vpack.c.bf16 %v736, %v735
        %v746 = vpack.c.bf16 %v738, %v737
        %747 = vmatprep.subr.bf16.mxu0 0
        %748 = vmatpush1.bf16.msra.mxu0 %v413
        %749 = vmatprep.subr.bf16.mxu0 0
        %750 = vmatpush1.bf16.msra.mxu0 %v412
        %751 = vmatprep.subr.bf16.mxu0 0
        %752 = vmatpush1.bf16.msra.mxu0 %v411
        %753 = vmatprep.subr.bf16.mxu0 0
        %754 = vmatpush1.bf16.msra.mxu0 %v410
        %755 = vmatprep.subr.bf16.mxu0 0
        %756 = vmatpush1.bf16.msra.mxu0 %v409
        %757 = vmatprep.subr.bf16.mxu0 0
        %758 = vmatpush1.bf16.msra.mxu0 %v408
        %759 = vmatprep.subr.bf16.mxu0 0
        %760 = vmatpush1.bf16.msra.mxu0 %v407
        %761 = vmatprep.subr.bf16.mxu0 0
        %762 = vmatpush1.bf16.msra.mxu0 %v406
        %763 = vmatprep.subr.bf16.mxu0 0
        %764 = vmatpush2.bf16.msra.mxu0 0
        %765 = vmatprep.subr.bf16.mxu0 0
        %766 = vmatpush2.bf16.msra.mxu0 0
        %767 = vmatprep.subr.bf16.mxu0 0
        %768 = vmatpush2.bf16.msra.mxu0 0
        %769 = vmatprep.subr.bf16.mxu0 0
        %770 = vmatpush2.bf16.msra.mxu0 0
        %771 = vmatprep.subr.bf16.mxu0 0
        %772 = vmatpush2.bf16.msra.mxu0 0
        %773 = vmatprep.subr.bf16.mxu0 0
        %774 = vmatpush2.bf16.msra.mxu0 0
        %775 = vmatprep.subr.bf16.mxu0 0
        %776 = vmatpush2.bf16.msra.mxu0 0
        %777 = vmatprep.subr.bf16.mxu0 0
        %778 = vmatpush2.bf16.msra.mxu0 0
        %779 = vmatprep.mubr.bf16.mxu0 0
        %780 = vmatmul.mubr.bf16.gmra.mxu0 %v739
        %v781 = vpop.f32.mrf.mxu0
        %v782 = vadd.f32 0.0, %v781
        %v783 = vpop.f32.mrf.mxu0
        %v784 = vpop.f32.mrf.mxu0
        %v785 = vadd.f32 0.0, %v784
        %v786 = vpop.f32.mrf.mxu0
        %787 = vmatprep.mubr.bf16.mxu0 0
        %788 = vmatmul.mubr.bf16.gmra.mxu0 %v740
        %v789 = vpop.f32.mrf.mxu0
        %v790 = vadd.f32 0.0, %v789
        %v791 = vpop.f32.mrf.mxu0
        %v792 = vpop.f32.mrf.mxu0
        %v793 = vadd.f32 0.0, %v792
        %v794 = vpop.f32.mrf.mxu0
        %795 = vmatprep.mubr.bf16.mxu0 0
        %796 = vmatmul.mubr.bf16.gmra.mxu0 %v741
        %v797 = vpop.f32.mrf.mxu0
        %v798 = vadd.f32 0.0, %v797
        %v799 = vpop.f32.mrf.mxu0
        %v800 = vpop.f32.mrf.mxu0
        %v801 = vadd.f32 0.0, %v800
        %v802 = vpop.f32.mrf.mxu0
        %803 = vmatprep.mubr.bf16.mxu0 0
        %804 = vmatmul.mubr.bf16.gmra.mxu0 %v742
        %v805 = vpop.f32.mrf.mxu0
        %v806 = vadd.f32 0.0, %v805
        %v807 = vpop.f32.mrf.mxu0
        %v808 = vpop.f32.mrf.mxu0
        %v809 = vadd.f32 0.0, %v808
        %v810 = vpop.f32.mrf.mxu0
        %811 = vmatprep.mubr.bf16.mxu0 0
        %812 = vmatmul.mubr.bf16.gmra.mxu0 %v743
        %v813 = vpop.f32.mrf.mxu0
        %v814 = vadd.f32 0.0, %v813
        %v815 = vpop.f32.mrf.mxu0
        %v816 = vpop.f32.mrf.mxu0
        %v817 = vadd.f32 0.0, %v816
        %v818 = vpop.f32.mrf.mxu0
        %819 = vmatprep.mubr.bf16.mxu0 0
        %820 = vmatmul.mubr.bf16.gmra.mxu0 %v744
        %v821 = vpop.f32.mrf.mxu0
        %v822 = vadd.f32 0.0, %v821
        %v823 = vpop.f32.mrf.mxu0
        %v824 = vpop.f32.mrf.mxu0
        %v825 = vadd.f32 0.0, %v824
        %v826 = vpop.f32.mrf.mxu0
        %827 = vmatprep.mubr.bf16.mxu0 0
        %828 = vmatmul.mubr.bf16.gmra.mxu0 %v745
        %v829 = vpop.f32.mrf.mxu0
        %v830 = vadd.f32 0.0, %v829
        %v831 = vpop.f32.mrf.mxu0
        %v832 = vpop.f32.mrf.mxu0
        %v833 = vadd.f32 0.0, %v832
        %v834 = vpop.f32.mrf.mxu0
        %835 = vmatprep.mubr.bf16.mxu0 0
        %836 = vmatmul.mubr.bf16.gmra.mxu0 %v746
        %v837 = vpop.f32.mrf.mxu0
        %v838 = vadd.f32 0.0, %v837
        %v839 = vpop.f32.mrf.mxu0
        %v840 = vpop.f32.mrf.mxu0
        %v841 = vadd.f32 0.0, %v840
        %v842 = vpop.f32.mrf.mxu0
        %843 = vdwg.mxu0
        %vm844 = vcmp.eq.f32.partialorder %v782, 0.0
        %vm845 = vcmp.eq.f32.partialorder %v785, 0.0
        %vm846 = vcmp.eq.f32.partialorder %v790, 0.0
        %vm847 = vcmp.eq.f32.partialorder %v793, 0.0
        %vm848 = vcmp.eq.f32.partialorder %v798, 0.0
        %vm849 = vcmp.eq.f32.partialorder %v801, 0.0
        %vm850 = vcmp.eq.f32.partialorder %v806, 0.0
        %vm851 = vcmp.eq.f32.partialorder %v809, 0.0
        %vm852 = vcmp.eq.f32.partialorder %v814, 0.0
        %vm853 = vcmp.eq.f32.partialorder %v817, 0.0
        %vm854 = vcmp.eq.f32.partialorder %v822, 0.0
        %vm855 = vcmp.eq.f32.partialorder %v825, 0.0
        %vm856 = vcmp.eq.f32.partialorder %v830, 0.0
        %vm857 = vcmp.eq.f32.partialorder %v833, 0.0
        %vm858 = vcmp.eq.f32.partialorder %v838, 0.0
        %vm859 = vcmp.eq.f32.partialorder %v841, 0.0
        %v860 = vsel %vm844, 1e-05, %v782
        %v861 = vsel %vm845, 1e-05, %v785
        %v862 = vsel %vm846, 1e-05, %v790
        %v863 = vsel %vm847, 1e-05, %v793
        %v864 = vsel %vm848, 1e-05, %v798
        %v865 = vsel %vm849, 1e-05, %v801
        %v866 = vsel %vm850, 1e-05, %v806
        %v867 = vsel %vm851, 1e-05, %v809
        %v868 = vsel %vm852, 1e-05, %v814
        %v869 = vsel %vm853, 1e-05, %v817
        %v870 = vsel %vm854, 1e-05, %v822
        %v871 = vsel %vm855, 1e-05, %v825
        %v872 = vsel %vm856, 1e-05, %v830
        %v873 = vsel %vm857, 1e-05, %v833
        %v874 = vsel %vm858, 1e-05, %v838
        %v875 = vsel %vm859, 1e-05, %v841
        %v876 = vrcp.pop %v860
        %v877 = vmul.f32 1.0, %v876
        %v878 = vrcp.pop %v861
        %v879 = vmul.f32 1.0, %v878
        %v880 = vrcp.pop %v862
        %v881 = vmul.f32 1.0, %v880
        %v882 = vrcp.pop %v863
        %v883 = vmul.f32 1.0, %v882
        %v884 = vrcp.pop %v864
        %v885 = vmul.f32 1.0, %v884
        %v886 = vrcp.pop %v865
        %v887 = vmul.f32 1.0, %v886
        %v888 = vrcp.pop %v866
        %v889 = vmul.f32 1.0, %v888
        %v890 = vrcp.pop %v867
        %v891 = vmul.f32 1.0, %v890
        %v892 = vrcp.pop %v868
        %v893 = vmul.f32 1.0, %v892
        %v894 = vrcp.pop %v869
        %v895 = vmul.f32 1.0, %v894
        %v896 = vrcp.pop %v870
        %v897 = vmul.f32 1.0, %v896
        %v898 = vrcp.pop %v871
        %v899 = vmul.f32 1.0, %v898
        %v900 = vrcp.pop %v872
        %v901 = vmul.f32 1.0, %v900
        %v902 = vrcp.pop %v873
        %v903 = vmul.f32 1.0, %v902
        %v904 = vrcp.pop %v874
        %v905 = vmul.f32 1.0, %v904
        %v906 = vrcp.pop %v875
        %v907 = vmul.f32 1.0, %v906
        %v908 = vpack.c.bf16 %v702, %v701
        %v909 = vpack.c.bf16 %v704, %v703
        %v910 = vpack.c.bf16 %v706, %v705
        %v911 = vpack.c.bf16 %v708, %v707
        %v912 = vpack.c.bf16 %v710, %v709
        %v913 = vpack.c.bf16 %v712, %v711
        %v914 = vpack.c.bf16 %v714, %v713
        %v915 = vpack.c.bf16 %v716, %v715
        %916 = vmatprep.subr.bf16.mxu0 0
        %917 = vmatpush1.bf16.msra.mxu0 %v349
        %918 = vmatprep.subr.bf16.mxu0 0
        %919 = vmatpush1.bf16.msra.mxu0 %v348
        %920 = vmatprep.subr.bf16.mxu0 0
        %921 = vmatpush1.bf16.msra.mxu0 %v347
        %922 = vmatprep.subr.bf16.mxu0 0
        %923 = vmatpush1.bf16.msra.mxu0 %v346
        %924 = vmatprep.subr.bf16.mxu0 0
        %925 = vmatpush1.bf16.msra.mxu0 %v345
        %926 = vmatprep.subr.bf16.mxu0 0
        %927 = vmatpush1.bf16.msra.mxu0 %v344
        %928 = vmatprep.subr.bf16.mxu0 0
        %929 = vmatpush1.bf16.msra.mxu0 %v343
        %930 = vmatprep.subr.bf16.mxu0 0
        %931 = vmatpush1.bf16.msra.mxu0 %v342
        %932 = vmatprep.subr.bf16.mxu0 0
        %933 = vmatpush2.bf16.msra.mxu0 0
        %934 = vmatprep.subr.bf16.mxu0 0
        %935 = vmatpush2.bf16.msra.mxu0 0
        %936 = vmatprep.subr.bf16.mxu0 0
        %937 = vmatpush2.bf16.msra.mxu0 0
        %938 = vmatprep.subr.bf16.mxu0 0
        %939 = vmatpush2.bf16.msra.mxu0 0
        %940 = vmatprep.subr.bf16.mxu0 0
        %941 = vmatpush2.bf16.msra.mxu0 0
        %942 = vmatprep.subr.bf16.mxu0 0
        %943 = vmatpush2.bf16.msra.mxu0 0
        %944 = vmatprep.subr.bf16.mxu0 0
        %945 = vmatpush2.bf16.msra.mxu0 0
        %946 = vmatprep.subr.bf16.mxu0 0
        %947 = vmatpush2.bf16.msra.mxu0 0
        %948 = vmatprep.mubr.bf16.mxu0 0
        %949 = vmatmul.mubr.bf16.gmra.mxu0 %v908
        %v950 = vpop.f32.mrf.mxu0
        %v951 = vadd.f32 0.0, %v950
        %v952 = vpop.f32.mrf.mxu0
        %v953 = vpop.f32.mrf.mxu0
        %v954 = vadd.f32 0.0, %v953
        %v955 = vpop.f32.mrf.mxu0
        %956 = vmatprep.mubr.bf16.mxu0 0
        %957 = vmatmul.mubr.bf16.gmra.mxu0 %v909
        %v958 = vpop.f32.mrf.mxu0
        %v959 = vadd.f32 0.0, %v958
        %v960 = vpop.f32.mrf.mxu0
        %v961 = vpop.f32.mrf.mxu0
        %v962 = vadd.f32 0.0, %v961
        %v963 = vpop.f32.mrf.mxu0
        %964 = vmatprep.mubr.bf16.mxu0 0
        %965 = vmatmul.mubr.bf16.gmra.mxu0 %v910
        %v966 = vpop.f32.mrf.mxu0
        %v967 = vadd.f32 0.0, %v966
        %v968 = vpop.f32.mrf.mxu0
        %v969 = vpop.f32.mrf.mxu0
        %v970 = vadd.f32 0.0, %v969
        %v971 = vpop.f32.mrf.mxu0
        %972 = vmatprep.mubr.bf16.mxu0 0
        %973 = vmatmul.mubr.bf16.gmra.mxu0 %v911
        %v974 = vpop.f32.mrf.mxu0
        %v975 = vadd.f32 0.0, %v974
        %v976 = vpop.f32.mrf.mxu0
        %v977 = vpop.f32.mrf.mxu0
        %v978 = vadd.f32 0.0, %v977
        %v979 = vpop.f32.mrf.mxu0
        %980 = vmatprep.mubr.bf16.mxu0 0
        %981 = vmatmul.mubr.bf16.gmra.mxu0 %v912
        %v982 = vpop.f32.mrf.mxu0
        %v983 = vadd.f32 0.0, %v982
        %v984 = vpop.f32.mrf.mxu0
        %v985 = vpop.f32.mrf.mxu0
        %v986 = vadd.f32 0.0, %v985
        %v987 = vpop.f32.mrf.mxu0
        %988 = vmatprep.mubr.bf16.mxu0 0
        %989 = vmatmul.mubr.bf16.gmra.mxu0 %v913
        %v990 = vpop.f32.mrf.mxu0
        %v991 = vadd.f32 0.0, %v990
        %v992 = vpop.f32.mrf.mxu0
        %v993 = vpop.f32.mrf.mxu0
        %v994 = vadd.f32 0.0, %v993
        %v995 = vpop.f32.mrf.mxu0
        %996 = vmatprep.mubr.bf16.mxu0 0
        %997 = vmatmul.mubr.bf16.gmra.mxu0 %v914
        %v998 = vpop.f32.mrf.mxu0
        %v999 = vadd.f32 0.0, %v998
        %v1000 = vpop.f32.mrf.mxu0
        %v1001 = vpop.f32.mrf.mxu0
        %v1002 = vadd.f32 0.0, %v1001
        %v1003 = vpop.f32.mrf.mxu0
        %1004 = vmatprep.mubr.bf16.mxu0 0
        %1005 = vmatmul.mubr.bf16.gmra.mxu0 %v915
        %v1006 = vpop.f32.mrf.mxu0
        %v1007 = vadd.f32 0.0, %v1006
        %v1008 = vpop.f32.mrf.mxu0
        %v1009 = vpop.f32.mrf.mxu0
        %v1010 = vadd.f32 0.0, %v1009
        %v1011 = vpop.f32.mrf.mxu0
        %1012 = vdwg.mxu0
        %v1013 = vmul.f32 %v951, %v877
        %v1014 = vmul.f32 %v954, %v879
        %v1015 = vmul.f32 %v959, %v881
        %v1016 = vmul.f32 %v962, %v883
        %v1017 = vmul.f32 %v967, %v885
        %v1018 = vmul.f32 %v970, %v887
        %v1019 = vmul.f32 %v975, %v889
        %v1020 = vmul.f32 %v978, %v891
        %v1021 = vmul.f32 %v983, %v893
        %v1022 = vmul.f32 %v986, %v895
        %v1023 = vmul.f32 %v991, %v897
        %v1024 = vmul.f32 %v994, %v899
        %v1025 = vmul.f32 %v999, %v901
        %v1026 = vmul.f32 %v1002, %v903
        %v1027 = vmul.f32 %v1007, %v905
        %v1028 = vmul.f32 %v1010, %v907
        %v1029 = vand.u32 2147483647, %v308
        %v1030 = vmax.f32 %v1029, 1e-15
        %v1031 = vrsqrt.pop %v1030
        %v1032 = vmul.f32 %v1030, %v1031
        %vm1033 = vcmp.eq.f32.partialorder %v1030, inf
        %v1034 = vsel %vm1033, %v1030, %v1032
        %vm1035 = vcmp.eq.f32.partialorder %v1030, 0.0
        %v1036 = vand.u32 %v1030, 2147483648
        %v1037 = vsel %vm1035, %v1036, %v1034
        %v1038 = vrcp.pop %v1037
        %v1039 = vmul.f32 %v1038, 0.996
        %vm1040 = vcmp.lt.f32.partialorder %v308, 0.0
        %v1041 = vsel %vm1040, %v1039, 1e+15
        %v1042 = vmul.f32 %v1013, %v1013
        %v1043 = vmul.f32 %v1014, %v1014
        %v1044 = vmul.f32 %v1015, %v1015
        %v1045 = vmul.f32 %v1016, %v1016
        %v1046 = vmul.f32 %v1017, %v1017
        %v1047 = vmul.f32 %v1018, %v1018
        %v1048 = vmul.f32 %v1019, %v1019
        %v1049 = vmul.f32 %v1020, %v1020
        %v1050 = vmul.f32 %v1021, %v1021
        %v1051 = vmul.f32 %v1022, %v1022
        %v1052 = vmul.f32 %v1023, %v1023
        %v1053 = vmul.f32 %v1024, %v1024
        %v1054 = vmul.f32 %v1025, %v1025
        %v1055 = vmul.f32 %v1026, %v1026
        %v1056 = vmul.f32 %v1027, %v1027
        %v1057 = vmul.f32 %v1028, %v1028
        %v1058 = vpack.c.bf16 %v1043, %v1042
        %v1059 = vpack.c.bf16 %v1045, %v1044
        %v1060 = vpack.c.bf16 %v1047, %v1046
        %v1061 = vpack.c.bf16 %v1049, %v1048
        %v1062 = vpack.c.bf16 %v1051, %v1050
        %v1063 = vpack.c.bf16 %v1053, %v1052
        %v1064 = vpack.c.bf16 %v1055, %v1054
        %v1065 = vpack.c.bf16 %v1057, %v1056
        %1066 = vmatprep.subr.bf16.mxu0 0
        %1067 = vmatpush1.bf16.msra.mxu0 %v413
        %1068 = vmatprep.subr.bf16.mxu0 0
        %1069 = vmatpush1.bf16.msra.mxu0 %v412
        %1070 = vmatprep.subr.bf16.mxu0 0
        %1071 = vmatpush1.bf16.msra.mxu0 %v411
        %1072 = vmatprep.subr.bf16.mxu0 0
        %1073 = vmatpush1.bf16.msra.mxu0 %v410
        %1074 = vmatprep.subr.bf16.mxu0 0
        %1075 = vmatpush1.bf16.msra.mxu0 %v409
        %1076 = vmatprep.subr.bf16.mxu0 0
        %1077 = vmatpush1.bf16.msra.mxu0 %v408
        %1078 = vmatprep.subr.bf16.mxu0 0
        %1079 = vmatpush1.bf16.msra.mxu0 %v407
        %1080 = vmatprep.subr.bf16.mxu0 0
        %1081 = vmatpush1.bf16.msra.mxu0 %v406
        %1082 = vmatprep.subr.bf16.mxu0 0
        %1083 = vmatpush2.bf16.msra.mxu0 0
        %1084 = vmatprep.subr.bf16.mxu0 0
        %1085 = vmatpush2.bf16.msra.mxu0 0
        %1086 = vmatprep.subr.bf16.mxu0 0
        %1087 = vmatpush2.bf16.msra.mxu0 0
        %1088 = vmatprep.subr.bf16.mxu0 0
        %1089 = vmatpush2.bf16.msra.mxu0 0
        %1090 = vmatprep.subr.bf16.mxu0 0
        %1091 = vmatpush2.bf16.msra.mxu0 0
        %1092 = vmatprep.subr.bf16.mxu0 0
        %1093 = vmatpush2.bf16.msra.mxu0 0
        %1094 = vmatprep.subr.bf16.mxu0 0
        %1095 = vmatpush2.bf16.msra.mxu0 0
        %1096 = vmatprep.subr.bf16.mxu0 0
        %1097 = vmatpush2.bf16.msra.mxu0 0
        %1098 = vmatprep.mubr.bf16.mxu0 0
        %1099 = vmatmul.mubr.bf16.gmra.mxu0 %v1058
        %v1100 = vpop.f32.mrf.mxu0
        %v1101 = vadd.f32 0.0, %v1100
        %v1102 = vpop.f32.mrf.mxu0
        %v1103 = vpop.f32.mrf.mxu0
        %v1104 = vadd.f32 0.0, %v1103
        %v1105 = vpop.f32.mrf.mxu0
        %1106 = vmatprep.mubr.bf16.mxu0 0
        %1107 = vmatmul.mubr.bf16.gmra.mxu0 %v1059
        %v1108 = vpop.f32.mrf.mxu0
        %v1109 = vadd.f32 0.0, %v1108
        %v1110 = vpop.f32.mrf.mxu0
        %v1111 = vpop.f32.mrf.mxu0
        %v1112 = vadd.f32 0.0, %v1111
        %v1113 = vpop.f32.mrf.mxu0
        %1114 = vmatprep.mubr.bf16.mxu0 0
        %1115 = vmatmul.mubr.bf16.gmra.mxu0 %v1060
        %v1116 = vpop.f32.mrf.mxu0
        %v1117 = vadd.f32 0.0, %v1116
        %v1118 = vpop.f32.mrf.mxu0
        %v1119 = vpop.f32.mrf.mxu0
        %v1120 = vadd.f32 0.0, %v1119
        %v1121 = vpop.f32.mrf.mxu0
        %1122 = vmatprep.mubr.bf16.mxu0 0
        %1123 = vmatmul.mubr.bf16.gmra.mxu0 %v1061
        %v1124 = vpop.f32.mrf.mxu0
        %v1125 = vadd.f32 0.0, %v1124
        %v1126 = vpop.f32.mrf.mxu0
        %v1127 = vpop.f32.mrf.mxu0
        %v1128 = vadd.f32 0.0, %v1127
        %v1129 = vpop.f32.mrf.mxu0
        %1130 = vmatprep.mubr.bf16.mxu0 0
        %1131 = vmatmul.mubr.bf16.gmra.mxu0 %v1062
        %v1132 = vpop.f32.mrf.mxu0
        %v1133 = vadd.f32 0.0, %v1132
        %v1134 = vpop.f32.mrf.mxu0
        %v1135 = vpop.f32.mrf.mxu0
        %v1136 = vadd.f32 0.0, %v1135
        %v1137 = vpop.f32.mrf.mxu0
        %1138 = vmatprep.mubr.bf16.mxu0 0
        %1139 = vmatmul.mubr.bf16.gmra.mxu0 %v1063
        %v1140 = vpop.f32.mrf.mxu0
        %v1141 = vadd.f32 0.0, %v1140
        %v1142 = vpop.f32.mrf.mxu0
        %v1143 = vpop.f32.mrf.mxu0
        %v1144 = vadd.f32 0.0, %v1143
        %v1145 = vpop.f32.mrf.mxu0
        %1146 = vmatprep.mubr.bf16.mxu0 0
        %1147 = vmatmul.mubr.bf16.gmra.mxu0 %v1064
        %v1148 = vpop.f32.mrf.mxu0
        %v1149 = vadd.f32 0.0, %v1148
        %v1150 = vpop.f32.mrf.mxu0
        %v1151 = vpop.f32.mrf.mxu0
        %v1152 = vadd.f32 0.0, %v1151
        %v1153 = vpop.f32.mrf.mxu0
        %1154 = vmatprep.mubr.bf16.mxu0 0
        %1155 = vmatmul.mubr.bf16.gmra.mxu0 %v1065
        %v1156 = vpop.f32.mrf.mxu0
        %v1157 = vadd.f32 0.0, %v1156
        %v1158 = vpop.f32.mrf.mxu0
        %v1159 = vpop.f32.mrf.mxu0
        %v1160 = vadd.f32 0.0, %v1159
        %v1161 = vpop.f32.mrf.mxu0
        %1162 = vdwg.mxu0
        %v1163 = vrsqrt.pop %v1101
        %v1164 = vmul.f32 %v1101, %v1163
        %vm1165 = vcmp.eq.f32.partialorder %v1101, inf
        %v1166 = vsel %vm1165, %v1101, %v1164
        %vm1167 = vcmp.eq.f32.partialorder %v1101, 0.0
        %v1168 = vand.u32 %v1101, 2147483648
        %v1169 = vsel %vm1167, %v1168, %v1166
        %v1170 = vrsqrt.pop %v1104
        %v1171 = vmul.f32 %v1104, %v1170
        %vm1172 = vcmp.eq.f32.partialorder %v1104, inf
        %v1173 = vsel %vm1172, %v1104, %v1171
        %vm1174 = vcmp.eq.f32.partialorder %v1104, 0.0
        %v1175 = vand.u32 %v1104, 2147483648
        %v1176 = vsel %vm1174, %v1175, %v1173
        %v1177 = vrsqrt.pop %v1109
        %v1178 = vmul.f32 %v1109, %v1177
        %vm1179 = vcmp.eq.f32.partialorder %v1109, inf
        %v1180 = vsel %vm1179, %v1109, %v1178
        %vm1181 = vcmp.eq.f32.partialorder %v1109, 0.0
        %v1182 = vand.u32 %v1109, 2147483648
        %v1183 = vsel %vm1181, %v1182, %v1180
        %v1184 = vrsqrt.pop %v1112
        %v1185 = vmul.f32 %v1112, %v1184
        %vm1186 = vcmp.eq.f32.partialorder %v1112, inf
        %v1187 = vsel %vm1186, %v1112, %v1185
        %vm1188 = vcmp.eq.f32.partialorder %v1112, 0.0
        %v1189 = vand.u32 %v1112, 2147483648
        %v1190 = vsel %vm1188, %v1189, %v1187
        %v1191 = vrsqrt.pop %v1117
        %v1192 = vmul.f32 %v1117, %v1191
        %vm1193 = vcmp.eq.f32.partialorder %v1117, inf
        %v1194 = vsel %vm1193, %v1117, %v1192
        %vm1195 = vcmp.eq.f32.partialorder %v1117, 0.0
        %v1196 = vand.u32 %v1117, 2147483648
        %v1197 = vsel %vm1195, %v1196, %v1194
        %v1198 = vrsqrt.pop %v1120
        %v1199 = vmul.f32 %v1120, %v1198
        %vm1200 = vcmp.eq.f32.partialorder %v1120, inf
        %v1201 = vsel %vm1200, %v1120, %v1199
        %vm1202 = vcmp.eq.f32.partialorder %v1120, 0.0
        %v1203 = vand.u32 %v1120, 2147483648
        %v1204 = vsel %vm1202, %v1203, %v1201
        %v1205 = vrsqrt.pop %v1125
        %v1206 = vmul.f32 %v1125, %v1205
        %vm1207 = vcmp.eq.f32.partialorder %v1125, inf
        %v1208 = vsel %vm1207, %v1125, %v1206
        %vm1209 = vcmp.eq.f32.partialorder %v1125, 0.0
        %v1210 = vand.u32 %v1125, 2147483648
        %v1211 = vsel %vm1209, %v1210, %v1208
        %v1212 = vrsqrt.pop %v1128
        %v1213 = vmul.f32 %v1128, %v1212
        %vm1214 = vcmp.eq.f32.partialorder %v1128, inf
        %v1215 = vsel %vm1214, %v1128, %v1213
        %vm1216 = vcmp.eq.f32.partialorder %v1128, 0.0
        %v1217 = vand.u32 %v1128, 2147483648
        %v1218 = vsel %vm1216, %v1217, %v1215
        %v1219 = vrsqrt.pop %v1133
        %v1220 = vmul.f32 %v1133, %v1219
        %vm1221 = vcmp.eq.f32.partialorder %v1133, inf
        %v1222 = vsel %vm1221, %v1133, %v1220
        %vm1223 = vcmp.eq.f32.partialorder %v1133, 0.0
        %v1224 = vand.u32 %v1133, 2147483648
        %v1225 = vsel %vm1223, %v1224, %v1222
        %v1226 = vrsqrt.pop %v1136
        %v1227 = vmul.f32 %v1136, %v1226
        %vm1228 = vcmp.eq.f32.partialorder %v1136, inf
        %v1229 = vsel %vm1228, %v1136, %v1227
        %vm1230 = vcmp.eq.f32.partialorder %v1136, 0.0
        %v1231 = vand.u32 %v1136, 2147483648
        %v1232 = vsel %vm1230, %v1231, %v1229
        %v1233 = vrsqrt.pop %v1141
        %v1234 = vmul.f32 %v1141, %v1233
        %vm1235 = vcmp.eq.f32.partialorder %v1141, inf
        %v1236 = vsel %vm1235, %v1141, %v1234
        %vm1237 = vcmp.eq.f32.partialorder %v1141, 0.0
        %v1238 = vand.u32 %v1141, 2147483648
        %v1239 = vsel %vm1237, %v1238, %v1236
        %v1240 = vrsqrt.pop %v1144
        %v1241 = vmul.f32 %v1144, %v1240
        %vm1242 = vcmp.eq.f32.partialorder %v1144, inf
        %v1243 = vsel %vm1242, %v1144, %v1241
        %vm1244 = vcmp.eq.f32.partialorder %v1144, 0.0
        %v1245 = vand.u32 %v1144, 2147483648
        %v1246 = vsel %vm1244, %v1245, %v1243
        %v1247 = vrsqrt.pop %v1149
        %v1248 = vmul.f32 %v1149, %v1247
        %vm1249 = vcmp.eq.f32.partialorder %v1149, inf
        %v1250 = vsel %vm1249, %v1149, %v1248
        %vm1251 = vcmp.eq.f32.partialorder %v1149, 0.0
        %v1252 = vand.u32 %v1149, 2147483648
        %v1253 = vsel %vm1251, %v1252, %v1250
        %v1254 = vrsqrt.pop %v1152
        %v1255 = vmul.f32 %v1152, %v1254
        %vm1256 = vcmp.eq.f32.partialorder %v1152, inf
        %v1257 = vsel %vm1256, %v1152, %v1255
        %vm1258 = vcmp.eq.f32.partialorder %v1152, 0.0
        %v1259 = vand.u32 %v1152, 2147483648
        %v1260 = vsel %vm1258, %v1259, %v1257
        %v1261 = vrsqrt.pop %v1157
        %v1262 = vmul.f32 %v1157, %v1261
        %vm1263 = vcmp.eq.f32.partialorder %v1157, inf
        %v1264 = vsel %vm1263, %v1157, %v1262
        %vm1265 = vcmp.eq.f32.partialorder %v1157, 0.0
        %v1266 = vand.u32 %v1157, 2147483648
        %v1267 = vsel %vm1265, %v1266, %v1264
        %v1268 = vrsqrt.pop %v1160
        %v1269 = vmul.f32 %v1160, %v1268
        %vm1270 = vcmp.eq.f32.partialorder %v1160, inf
        %v1271 = vsel %vm1270, %v1160, %v1269
        %vm1272 = vcmp.eq.f32.partialorder %v1160, 0.0
        %v1273 = vand.u32 %v1160, 2147483648
        %v1274 = vsel %vm1272, %v1273, %v1271
        %v1275 = vmax.f32 %v1169, 1e-15
        %v1276 = vmax.f32 %v1176, 1e-15
        %v1277 = vmax.f32 %v1183, 1e-15
        %v1278 = vmax.f32 %v1190, 1e-15
        %v1279 = vmax.f32 %v1197, 1e-15
        %v1280 = vmax.f32 %v1204, 1e-15
        %v1281 = vmax.f32 %v1211, 1e-15
        %v1282 = vmax.f32 %v1218, 1e-15
        %v1283 = vmax.f32 %v1225, 1e-15
        %v1284 = vmax.f32 %v1232, 1e-15
        %v1285 = vmax.f32 %v1239, 1e-15
        %v1286 = vmax.f32 %v1246, 1e-15
        %v1287 = vmax.f32 %v1253, 1e-15
        %v1288 = vmax.f32 %v1260, 1e-15
        %v1289 = vmax.f32 %v1267, 1e-15
        %v1290 = vmax.f32 %v1274, 1e-15
        %v1292 = vlaneseq
        %v1293 = vshrl.u32 %v1292, 7
        %v1294 = vsub.s32 0, %v1293
        %v1295 = vrot.slane %v1041, %v1294
        %vm1297 = vcmp.gt.f32.partialorder %v1275, %v1295
        %vm1298 = vcmp.gt.f32.partialorder %v1276, %v1295
        %vm1299 = vcmp.gt.f32.partialorder %v1277, %v1295
        %vm1300 = vcmp.gt.f32.partialorder %v1278, %v1295
        %vm1301 = vcmp.gt.f32.partialorder %v1279, %v1295
        %vm1302 = vcmp.gt.f32.partialorder %v1280, %v1295
        %vm1303 = vcmp.gt.f32.partialorder %v1281, %v1295
        %vm1304 = vcmp.gt.f32.partialorder %v1282, %v1295
        %vm1305 = vcmp.gt.f32.partialorder %v1283, %v1295
        %vm1306 = vcmp.gt.f32.partialorder %v1284, %v1295
        %vm1307 = vcmp.gt.f32.partialorder %v1285, %v1295
        %vm1308 = vcmp.gt.f32.partialorder %v1286, %v1295
        %vm1309 = vcmp.gt.f32.partialorder %v1287, %v1295
        %vm1310 = vcmp.gt.f32.partialorder %v1288, %v1295
        %vm1311 = vcmp.gt.f32.partialorder %v1289, %v1295
        %vm1312 = vcmp.gt.f32.partialorder %v1290, %v1295
        %v1313 = vrcp.pop %v1275
        %v1314 = vrcp.pop %v1276
        %v1315 = vrcp.pop %v1277
        %v1316 = vrcp.pop %v1278
        %v1317 = vrcp.pop %v1279
        %v1318 = vrcp.pop %v1280
        %v1319 = vrcp.pop %v1281
        %v1320 = vrcp.pop %v1282
        %v1321 = vrcp.pop %v1283
        %v1322 = vrcp.pop %v1284
        %v1323 = vrcp.pop %v1285
        %v1324 = vrcp.pop %v1286
        %v1325 = vrcp.pop %v1287
        %v1326 = vrcp.pop %v1288
        %v1327 = vrcp.pop %v1289
        %v1328 = vrcp.pop %v1290
        %v1329 = vmul.f32 %v1295, %v1313
        %v1330 = vmul.f32 %v1295, %v1314
        %v1331 = vmul.f32 %v1295, %v1315
        %v1332 = vmul.f32 %v1295, %v1316
        %v1333 = vmul.f32 %v1295, %v1317
        %v1334 = vmul.f32 %v1295, %v1318
        %v1335 = vmul.f32 %v1295, %v1319
        %v1336 = vmul.f32 %v1295, %v1320
        %v1337 = vmul.f32 %v1295, %v1321
        %v1338 = vmul.f32 %v1295, %v1322
        %v1339 = vmul.f32 %v1295, %v1323
        %v1340 = vmul.f32 %v1295, %v1324
        %v1341 = vmul.f32 %v1295, %v1325
        %v1342 = vmul.f32 %v1295, %v1326
        %v1343 = vmul.f32 %v1295, %v1327
        %v1344 = vmul.f32 %v1295, %v1328
        %v1345 = vsel %vm1297, %v1329, 1.0
        %v1346 = vsel %vm1298, %v1330, 1.0
        %v1347 = vsel %vm1299, %v1331, 1.0
        %v1348 = vsel %vm1300, %v1332, 1.0
        %v1349 = vsel %vm1301, %v1333, 1.0
        %v1350 = vsel %vm1302, %v1334, 1.0
        %v1351 = vsel %vm1303, %v1335, 1.0
        %v1352 = vsel %vm1304, %v1336, 1.0
        %v1353 = vsel %vm1305, %v1337, 1.0
        %v1354 = vsel %vm1306, %v1338, 1.0
        %v1355 = vsel %vm1307, %v1339, 1.0
        %v1356 = vsel %vm1308, %v1340, 1.0
        %v1357 = vsel %vm1309, %v1341, 1.0
        %v1358 = vsel %vm1310, %v1342, 1.0
        %v1359 = vsel %vm1311, %v1343, 1.0
        %v1360 = vsel %vm1312, %v1344, 1.0
        %v1361 = vmul.f32 %v1345, %v1013
        %v1362 = vmul.f32 %v1346, %v1014
        %v1363 = vmul.f32 %v1347, %v1015
        %v1364 = vmul.f32 %v1348, %v1016
        %v1365 = vmul.f32 %v1349, %v1017
        %v1366 = vmul.f32 %v1350, %v1018
        %v1367 = vmul.f32 %v1351, %v1019
        %v1368 = vmul.f32 %v1352, %v1020
        %v1369 = vmul.f32 %v1353, %v1021
        %v1370 = vmul.f32 %v1354, %v1022
        %v1371 = vmul.f32 %v1355, %v1023
        %v1372 = vmul.f32 %v1356, %v1024
        %v1373 = vmul.f32 %v1357, %v1025
        %v1374 = vmul.f32 %v1358, %v1026
        %v1375 = vmul.f32 %v1359, %v1027
        %v1376 = vmul.f32 %v1360, %v1028
        %v1377 = vmin.f32 %v1275, %v1295
        %v1378 = vmin.f32 %v1276, %v1295
        %v1379 = vmin.f32 %v1277, %v1295
        %v1380 = vmin.f32 %v1278, %v1295
        %v1381 = vmin.f32 %v1279, %v1295
        %v1382 = vmin.f32 %v1280, %v1295
        %v1383 = vmin.f32 %v1281, %v1295
        %v1384 = vmin.f32 %v1282, %v1295
        %v1385 = vmin.f32 %v1283, %v1295
        %v1386 = vmin.f32 %v1284, %v1295
        %v1387 = vmin.f32 %v1285, %v1295
        %v1388 = vmin.f32 %v1286, %v1295
        %v1389 = vmin.f32 %v1287, %v1295
        %v1390 = vmin.f32 %v1288, %v1295
        %v1391 = vmin.f32 %v1289, %v1295
        %v1392 = vmin.f32 %v1290, %v1295
        %v1394 = vlaneseq
        %v1395 = vshrl.u32 %v1394, 7
        %v1396 = vsub.s32 0, %v1395
        %v1397 = vrot.slane %v1037, %v1396
        %v1399 = vmul.f32 %v1397, %v1377
        %v1400 = vmul.f32 %v1397, %v1378
        %v1401 = vmul.f32 %v1397, %v1379
        %v1402 = vmul.f32 %v1397, %v1380
        %v1403 = vmul.f32 %v1397, %v1381
        %v1404 = vmul.f32 %v1397, %v1382
        %v1405 = vmul.f32 %v1397, %v1383
        %v1406 = vmul.f32 %v1397, %v1384
        %v1407 = vmul.f32 %v1397, %v1385
        %v1408 = vmul.f32 %v1397, %v1386
        %v1409 = vmul.f32 %v1397, %v1387
        %v1410 = vmul.f32 %v1397, %v1388
        %v1411 = vmul.f32 %v1397, %v1389
        %v1412 = vmul.f32 %v1397, %v1390
        %v1413 = vmul.f32 %v1397, %v1391
        %v1414 = vmul.f32 %v1397, %v1392
        %v1415 = vmax.f32 %v1399, -0.9999999
        %v1416 = vmax.f32 %v1400, -0.9999999
        %v1417 = vmax.f32 %v1401, -0.9999999
        %v1418 = vmax.f32 %v1402, -0.9999999
        %v1419 = vmax.f32 %v1403, -0.9999999
        %v1420 = vmax.f32 %v1404, -0.9999999
        %v1421 = vmax.f32 %v1405, -0.9999999
        %v1422 = vmax.f32 %v1406, -0.9999999
        %v1423 = vmax.f32 %v1407, -0.9999999
        %v1424 = vmax.f32 %v1408, -0.9999999
        %v1425 = vmax.f32 %v1409, -0.9999999
        %v1426 = vmax.f32 %v1410, -0.9999999
        %v1427 = vmax.f32 %v1411, -0.9999999
        %v1428 = vmax.f32 %v1412, -0.9999999
        %v1429 = vmax.f32 %v1413, -0.9999999
        %v1430 = vmax.f32 %v1414, -0.9999999
        %v1431 = vmin.f32 %v1415, 0.9999999
        %v1432 = vmin.f32 %v1416, 0.9999999
        %v1433 = vmin.f32 %v1417, 0.9999999
        %v1434 = vmin.f32 %v1418, 0.9999999
        %v1435 = vmin.f32 %v1419, 0.9999999
        %v1436 = vmin.f32 %v1420, 0.9999999
        %v1437 = vmin.f32 %v1421, 0.9999999
        %v1438 = vmin.f32 %v1422, 0.9999999
        %v1439 = vmin.f32 %v1423, 0.9999999
        %v1440 = vmin.f32 %v1424, 0.9999999
        %v1441 = vmin.f32 %v1425, 0.9999999
        %v1442 = vmin.f32 %v1426, 0.9999999
        %v1443 = vmin.f32 %v1427, 0.9999999
        %v1444 = vmin.f32 %v1428, 0.9999999
        %v1445 = vmin.f32 %v1429, 0.9999999
        %v1446 = vmin.f32 %v1430, 0.9999999
        %v1447 = vadd.f32 %v1431, 1.0
        %v1448 = vlog2.pop %v1447
        %v1449 = vmul.f32 %v1448, 0.6931472
        %v1450 = vmul.f32 -0.5, %v1431
        %v1451 = vadd.f32 %v1450, 1.0
        %v1452 = vmul.f32 %v1451, %v1431
        %v1453 = vand.u32 2147483647, %v1431
        %vm1454 = vcmp.lt.f32.partialorder %v1453, 0.0004427343
        %v1455 = vsel %vm1454, %v1452, %v1449
        %v1456 = vadd.f32 %v1432, 1.0
        %v1457 = vlog2.pop %v1456
        %v1458 = vmul.f32 %v1457, 0.6931472
        %v1459 = vmul.f32 -0.5, %v1432
        %v1460 = vadd.f32 %v1459, 1.0
        %v1461 = vmul.f32 %v1460, %v1432
        %v1462 = vand.u32 2147483647, %v1432
        %vm1463 = vcmp.lt.f32.partialorder %v1462, 0.0004427343
        %v1464 = vsel %vm1463, %v1461, %v1458
        %v1465 = vadd.f32 %v1433, 1.0
        %v1466 = vlog2.pop %v1465
        %v1467 = vmul.f32 %v1466, 0.6931472
        %v1468 = vmul.f32 -0.5, %v1433
        %v1469 = vadd.f32 %v1468, 1.0
        %v1470 = vmul.f32 %v1469, %v1433
        %v1471 = vand.u32 2147483647, %v1433
        %vm1472 = vcmp.lt.f32.partialorder %v1471, 0.0004427343
        %v1473 = vsel %vm1472, %v1470, %v1467
        %v1474 = vadd.f32 %v1434, 1.0
        %v1475 = vlog2.pop %v1474
        %v1476 = vmul.f32 %v1475, 0.6931472
        %v1477 = vmul.f32 -0.5, %v1434
        %v1478 = vadd.f32 %v1477, 1.0
        %v1479 = vmul.f32 %v1478, %v1434
        %v1480 = vand.u32 2147483647, %v1434
        %vm1481 = vcmp.lt.f32.partialorder %v1480, 0.0004427343
        %v1482 = vsel %vm1481, %v1479, %v1476
        %v1483 = vadd.f32 %v1435, 1.0
        %v1484 = vlog2.pop %v1483
        %v1485 = vmul.f32 %v1484, 0.6931472
        %v1486 = vmul.f32 -0.5, %v1435
        %v1487 = vadd.f32 %v1486, 1.0
        %v1488 = vmul.f32 %v1487, %v1435
        %v1489 = vand.u32 2147483647, %v1435
        %vm1490 = vcmp.lt.f32.partialorder %v1489, 0.0004427343
        %v1491 = vsel %vm1490, %v1488, %v1485
        %v1492 = vadd.f32 %v1436, 1.0
        %v1493 = vlog2.pop %v1492
        %v1494 = vmul.f32 %v1493, 0.6931472
        %v1495 = vmul.f32 -0.5, %v1436
        %v1496 = vadd.f32 %v1495, 1.0
        %v1497 = vmul.f32 %v1496, %v1436
        %v1498 = vand.u32 2147483647, %v1436
        %vm1499 = vcmp.lt.f32.partialorder %v1498, 0.0004427343
        %v1500 = vsel %vm1499, %v1497, %v1494
        %v1501 = vadd.f32 %v1437, 1.0
        %v1502 = vlog2.pop %v1501
        %v1503 = vmul.f32 %v1502, 0.6931472
        %v1504 = vmul.f32 -0.5, %v1437
        %v1505 = vadd.f32 %v1504, 1.0
        %v1506 = vmul.f32 %v1505, %v1437
        %v1507 = vand.u32 2147483647, %v1437
        %vm1508 = vcmp.lt.f32.partialorder %v1507, 0.0004427343
        %v1509 = vsel %vm1508, %v1506, %v1503
        %v1510 = vadd.f32 %v1438, 1.0
        %v1511 = vlog2.pop %v1510
        %v1512 = vmul.f32 %v1511, 0.6931472
        %v1513 = vmul.f32 -0.5, %v1438
        %v1514 = vadd.f32 %v1513, 1.0
        %v1515 = vmul.f32 %v1514, %v1438
        %v1516 = vand.u32 2147483647, %v1438
        %vm1517 = vcmp.lt.f32.partialorder %v1516, 0.0004427343
        %v1518 = vsel %vm1517, %v1515, %v1512
        %v1519 = vadd.f32 %v1439, 1.0
        %v1520 = vlog2.pop %v1519
        %v1521 = vmul.f32 %v1520, 0.6931472
        %v1522 = vmul.f32 -0.5, %v1439
        %v1523 = vadd.f32 %v1522, 1.0
        %v1524 = vmul.f32 %v1523, %v1439
        %v1525 = vand.u32 2147483647, %v1439
        %vm1526 = vcmp.lt.f32.partialorder %v1525, 0.0004427343
        %v1527 = vsel %vm1526, %v1524, %v1521
        %v1528 = vadd.f32 %v1440, 1.0
        %v1529 = vlog2.pop %v1528
        %v1530 = vmul.f32 %v1529, 0.6931472
        %v1531 = vmul.f32 -0.5, %v1440
        %v1532 = vadd.f32 %v1531, 1.0
        %v1533 = vmul.f32 %v1532, %v1440
        %v1534 = vand.u32 2147483647, %v1440
        %vm1535 = vcmp.lt.f32.partialorder %v1534, 0.0004427343
        %v1536 = vsel %vm1535, %v1533, %v1530
        %v1537 = vadd.f32 %v1441, 1.0
        %v1538 = vlog2.pop %v1537
        %v1539 = vmul.f32 %v1538, 0.6931472
        %v1540 = vmul.f32 -0.5, %v1441
        %v1541 = vadd.f32 %v1540, 1.0
        %v1542 = vmul.f32 %v1541, %v1441
        %v1543 = vand.u32 2147483647, %v1441
        %vm1544 = vcmp.lt.f32.partialorder %v1543, 0.0004427343
        %v1545 = vsel %vm1544, %v1542, %v1539
        %v1546 = vadd.f32 %v1442, 1.0
        %v1547 = vlog2.pop %v1546
        %v1548 = vmul.f32 %v1547, 0.6931472
        %v1549 = vmul.f32 -0.5, %v1442
        %v1550 = vadd.f32 %v1549, 1.0
        %v1551 = vmul.f32 %v1550, %v1442
        %v1552 = vand.u32 2147483647, %v1442
        %vm1553 = vcmp.lt.f32.partialorder %v1552, 0.0004427343
        %v1554 = vsel %vm1553, %v1551, %v1548
        %v1555 = vadd.f32 %v1443, 1.0
        %v1556 = vlog2.pop %v1555
        %v1557 = vmul.f32 %v1556, 0.6931472
        %v1558 = vmul.f32 -0.5, %v1443
        %v1559 = vadd.f32 %v1558, 1.0
        %v1560 = vmul.f32 %v1559, %v1443
        %v1561 = vand.u32 2147483647, %v1443
        %vm1562 = vcmp.lt.f32.partialorder %v1561, 0.0004427343
        %v1563 = vsel %vm1562, %v1560, %v1557
        %v1564 = vadd.f32 %v1444, 1.0
        %v1565 = vlog2.pop %v1564
        %v1566 = vmul.f32 %v1565, 0.6931472
        %v1567 = vmul.f32 -0.5, %v1444
        %v1568 = vadd.f32 %v1567, 1.0
        %v1569 = vmul.f32 %v1568, %v1444
        %v1570 = vand.u32 2147483647, %v1444
        %vm1571 = vcmp.lt.f32.partialorder %v1570, 0.0004427343
        %v1572 = vsel %vm1571, %v1569, %v1566
        %v1573 = vadd.f32 %v1445, 1.0
        %v1574 = vlog2.pop %v1573
        %v1575 = vmul.f32 %v1574, 0.6931472
        %v1576 = vmul.f32 -0.5, %v1445
        %v1577 = vadd.f32 %v1576, 1.0
        %v1578 = vmul.f32 %v1577, %v1445
        %v1579 = vand.u32 2147483647, %v1445
        %vm1580 = vcmp.lt.f32.partialorder %v1579, 0.0004427343
        %v1581 = vsel %vm1580, %v1578, %v1575
        %v1582 = vadd.f32 %v1446, 1.0
        %v1583 = vlog2.pop %v1582
        %v1584 = vmul.f32 %v1583, 0.6931472
        %v1585 = vmul.f32 -0.5, %v1446
        %v1586 = vadd.f32 %v1585, 1.0
        %v1587 = vmul.f32 %v1586, %v1446
        %v1588 = vand.u32 2147483647, %v1446
        %vm1589 = vcmp.lt.f32.partialorder %v1588, 0.0004427343
        %v1590 = vsel %vm1589, %v1587, %v1584
        %v1591 = vsub.f32 0.0, %v1431
        %v1592 = vsub.f32 0.0, %v1432
        %v1593 = vsub.f32 0.0, %v1433
        %v1594 = vsub.f32 0.0, %v1434
        %v1595 = vsub.f32 0.0, %v1435
        %v1596 = vsub.f32 0.0, %v1436
        %v1597 = vsub.f32 0.0, %v1437
        %v1598 = vsub.f32 0.0, %v1438
        %v1599 = vsub.f32 0.0, %v1439
        %v1600 = vsub.f32 0.0, %v1440
        %v1601 = vsub.f32 0.0, %v1441
        %v1602 = vsub.f32 0.0, %v1442
        %v1603 = vsub.f32 0.0, %v1443
        %v1604 = vsub.f32 0.0, %v1444
        %v1605 = vsub.f32 0.0, %v1445
        %v1606 = vsub.f32 0.0, %v1446
        %v1607 = vadd.f32 %v1591, 1.0
        %v1608 = vlog2.pop %v1607
        %v1609 = vmul.f32 %v1608, 0.6931472
        %v1610 = vmul.f32 -0.5, %v1591
        %v1611 = vadd.f32 %v1610, 1.0
        %v1612 = vmul.f32 %v1611, %v1591
        %v1613 = vand.u32 2147483647, %v1591
        %vm1614 = vcmp.lt.f32.partialorder %v1613, 0.0004427343
        %v1615 = vsel %vm1614, %v1612, %v1609
        %v1616 = vadd.f32 %v1592, 1.0
        %v1617 = vlog2.pop %v1616
        %v1618 = vmul.f32 %v1617, 0.6931472
        %v1619 = vmul.f32 -0.5, %v1592
        %v1620 = vadd.f32 %v1619, 1.0
        %v1621 = vmul.f32 %v1620, %v1592
        %v1622 = vand.u32 2147483647, %v1592
        %vm1623 = vcmp.lt.f32.partialorder %v1622, 0.0004427343
        %v1624 = vsel %vm1623, %v1621, %v1618
        %v1625 = vadd.f32 %v1593, 1.0
        %v1626 = vlog2.pop %v1625
        %v1627 = vmul.f32 %v1626, 0.6931472
        %v1628 = vmul.f32 -0.5, %v1593
        %v1629 = vadd.f32 %v1628, 1.0
        %v1630 = vmul.f32 %v1629, %v1593
        %v1631 = vand.u32 2147483647, %v1593
        %vm1632 = vcmp.lt.f32.partialorder %v1631, 0.0004427343
        %v1633 = vsel %vm1632, %v1630, %v1627
        %v1634 = vadd.f32 %v1594, 1.0
        %v1635 = vlog2.pop %v1634
        %v1636 = vmul.f32 %v1635, 0.6931472
        %v1637 = vmul.f32 -0.5, %v1594
        %v1638 = vadd.f32 %v1637, 1.0
        %v1639 = vmul.f32 %v1638, %v1594
        %v1640 = vand.u32 2147483647, %v1594
        %vm1641 = vcmp.lt.f32.partialorder %v1640, 0.0004427343
        %v1642 = vsel %vm1641, %v1639, %v1636
        %v1643 = vadd.f32 %v1595, 1.0
        %v1644 = vlog2.pop %v1643
        %v1645 = vmul.f32 %v1644, 0.6931472
        %v1646 = vmul.f32 -0.5, %v1595
        %v1647 = vadd.f32 %v1646, 1.0
        %v1648 = vmul.f32 %v1647, %v1595
        %v1649 = vand.u32 2147483647, %v1595
        %vm1650 = vcmp.lt.f32.partialorder %v1649, 0.0004427343
        %v1651 = vsel %vm1650, %v1648, %v1645
        %v1652 = vadd.f32 %v1596, 1.0
        %v1653 = vlog2.pop %v1652
        %v1654 = vmul.f32 %v1653, 0.6931472
        %v1655 = vmul.f32 -0.5, %v1596
        %v1656 = vadd.f32 %v1655, 1.0
        %v1657 = vmul.f32 %v1656, %v1596
        %v1658 = vand.u32 2147483647, %v1596
        %vm1659 = vcmp.lt.f32.partialorder %v1658, 0.0004427343
        %v1660 = vsel %vm1659, %v1657, %v1654
        %v1661 = vadd.f32 %v1597, 1.0
        %v1662 = vlog2.pop %v1661
        %v1663 = vmul.f32 %v1662, 0.6931472
        %v1664 = vmul.f32 -0.5, %v1597
        %v1665 = vadd.f32 %v1664, 1.0
        %v1666 = vmul.f32 %v1665, %v1597
        %v1667 = vand.u32 2147483647, %v1597
        %vm1668 = vcmp.lt.f32.partialorder %v1667, 0.0004427343
        %v1669 = vsel %vm1668, %v1666, %v1663
        %v1670 = vadd.f32 %v1598, 1.0
        %v1671 = vlog2.pop %v1670
        %v1672 = vmul.f32 %v1671, 0.6931472
        %v1673 = vmul.f32 -0.5, %v1598
        %v1674 = vadd.f32 %v1673, 1.0
        %v1675 = vmul.f32 %v1674, %v1598
        %v1676 = vand.u32 2147483647, %v1598
        %vm1677 = vcmp.lt.f32.partialorder %v1676, 0.0004427343
        %v1678 = vsel %vm1677, %v1675, %v1672
        %v1679 = vadd.f32 %v1599, 1.0
        %v1680 = vlog2.pop %v1679
        %v1681 = vmul.f32 %v1680, 0.6931472
        %v1682 = vmul.f32 -0.5, %v1599
        %v1683 = vadd.f32 %v1682, 1.0
        %v1684 = vmul.f32 %v1683, %v1599
        %v1685 = vand.u32 2147483647, %v1599
        %vm1686 = vcmp.lt.f32.partialorder %v1685, 0.0004427343
        %v1687 = vsel %vm1686, %v1684, %v1681
        %v1688 = vadd.f32 %v1600, 1.0
        %v1689 = vlog2.pop %v1688
        %v1690 = vmul.f32 %v1689, 0.6931472
        %v1691 = vmul.f32 -0.5, %v1600
        %v1692 = vadd.f32 %v1691, 1.0
        %v1693 = vmul.f32 %v1692, %v1600
        %v1694 = vand.u32 2147483647, %v1600
        %vm1695 = vcmp.lt.f32.partialorder %v1694, 0.0004427343
        %v1696 = vsel %vm1695, %v1693, %v1690
        %v1697 = vadd.f32 %v1601, 1.0
        %v1698 = vlog2.pop %v1697
        %v1699 = vmul.f32 %v1698, 0.6931472
        %v1700 = vmul.f32 -0.5, %v1601
        %v1701 = vadd.f32 %v1700, 1.0
        %v1702 = vmul.f32 %v1701, %v1601
        %v1703 = vand.u32 2147483647, %v1601
        %vm1704 = vcmp.lt.f32.partialorder %v1703, 0.0004427343
        %v1705 = vsel %vm1704, %v1702, %v1699
        %v1706 = vadd.f32 %v1602, 1.0
        %v1707 = vlog2.pop %v1706
        %v1708 = vmul.f32 %v1707, 0.6931472
        %v1709 = vmul.f32 -0.5, %v1602
        %v1710 = vadd.f32 %v1709, 1.0
        %v1711 = vmul.f32 %v1710, %v1602
        %v1712 = vand.u32 2147483647, %v1602
        %vm1713 = vcmp.lt.f32.partialorder %v1712, 0.0004427343
        %v1714 = vsel %vm1713, %v1711, %v1708
        %v1715 = vadd.f32 %v1603, 1.0
        %v1716 = vlog2.pop %v1715
        %v1717 = vmul.f32 %v1716, 0.6931472
        %v1718 = vmul.f32 -0.5, %v1603
        %v1719 = vadd.f32 %v1718, 1.0
        %v1720 = vmul.f32 %v1719, %v1603
        %v1721 = vand.u32 2147483647, %v1603
        %vm1722 = vcmp.lt.f32.partialorder %v1721, 0.0004427343
        %v1723 = vsel %vm1722, %v1720, %v1717
        %v1724 = vadd.f32 %v1604, 1.0
        %v1725 = vlog2.pop %v1724
        %v1726 = vmul.f32 %v1725, 0.6931472
        %v1727 = vmul.f32 -0.5, %v1604
        %v1728 = vadd.f32 %v1727, 1.0
        %v1729 = vmul.f32 %v1728, %v1604
        %v1730 = vand.u32 2147483647, %v1604
        %vm1731 = vcmp.lt.f32.partialorder %v1730, 0.0004427343
        %v1732 = vsel %vm1731, %v1729, %v1726
        %v1733 = vadd.f32 %v1605, 1.0
        %v1734 = vlog2.pop %v1733
        %v1735 = vmul.f32 %v1734, 0.6931472
        %v1736 = vmul.f32 -0.5, %v1605
        %v1737 = vadd.f32 %v1736, 1.0
        %v1738 = vmul.f32 %v1737, %v1605
        %v1739 = vand.u32 2147483647, %v1605
        %vm1740 = vcmp.lt.f32.partialorder %v1739, 0.0004427343
        %v1741 = vsel %vm1740, %v1738, %v1735
        %v1742 = vadd.f32 %v1606, 1.0
        %v1743 = vlog2.pop %v1742
        %v1744 = vmul.f32 %v1743, 0.6931472
        %v1745 = vmul.f32 -0.5, %v1606
        %v1746 = vadd.f32 %v1745, 1.0
        %v1747 = vmul.f32 %v1746, %v1606
        %v1748 = vand.u32 2147483647, %v1606
        %vm1749 = vcmp.lt.f32.partialorder %v1748, 0.0004427343
        %v1750 = vsel %vm1749, %v1747, %v1744
        %v1751 = vsub.f32 %v1455, %v1615
        %v1752 = vsub.f32 %v1464, %v1624
        %v1753 = vsub.f32 %v1473, %v1633
        %v1754 = vsub.f32 %v1482, %v1642
        %v1755 = vsub.f32 %v1491, %v1651
        %v1756 = vsub.f32 %v1500, %v1660
        %v1757 = vsub.f32 %v1509, %v1669
        %v1758 = vsub.f32 %v1518, %v1678
        %v1759 = vsub.f32 %v1527, %v1687
        %v1760 = vsub.f32 %v1536, %v1696
        %v1761 = vsub.f32 %v1545, %v1705
        %v1762 = vsub.f32 %v1554, %v1714
        %v1763 = vsub.f32 %v1563, %v1723
        %v1764 = vsub.f32 %v1572, %v1732
        %v1765 = vsub.f32 %v1581, %v1741
        %v1766 = vsub.f32 %v1590, %v1750
        %v1767 = vmul.f32 %v1751, 0.5
        %v1768 = vmul.f32 %v1752, 0.5
        %v1769 = vmul.f32 %v1753, 0.5
        %v1770 = vmul.f32 %v1754, 0.5
        %v1771 = vmul.f32 %v1755, 0.5
        %v1772 = vmul.f32 %v1756, 0.5
        %v1773 = vmul.f32 %v1757, 0.5
        %v1774 = vmul.f32 %v1758, 0.5
        %v1775 = vmul.f32 %v1759, 0.5
        %v1776 = vmul.f32 %v1760, 0.5
        %v1777 = vmul.f32 %v1761, 0.5
        %v1778 = vmul.f32 %v1762, 0.5
        %v1779 = vmul.f32 %v1763, 0.5
        %v1780 = vmul.f32 %v1764, 0.5
        %v1781 = vmul.f32 %v1765, 0.5
        %v1782 = vmul.f32 %v1766, 0.5
        %v1783 = vrcp.pop %v1037
        %v1784 = vmul.f32 1.0, %v1783
        %v1786 = vlaneseq
        %v1787 = vshrl.u32 %v1786, 7
        %v1788 = vsub.s32 0, %v1787
        %v1789 = vrot.slane %v1784, %v1788
        %v1791 = vmul.f32 %v1767, %v1789
        %v1792 = vmul.f32 %v1768, %v1789
        %v1793 = vmul.f32 %v1769, %v1789
        %v1794 = vmul.f32 %v1770, %v1789
        %v1795 = vmul.f32 %v1771, %v1789
        %v1796 = vmul.f32 %v1772, %v1789
        %v1797 = vmul.f32 %v1773, %v1789
        %v1798 = vmul.f32 %v1774, %v1789
        %v1799 = vmul.f32 %v1775, %v1789
        %v1800 = vmul.f32 %v1776, %v1789
        %v1801 = vmul.f32 %v1777, %v1789
        %v1802 = vmul.f32 %v1778, %v1789
        %v1803 = vmul.f32 %v1779, %v1789
        %v1804 = vmul.f32 %v1780, %v1789
        %v1805 = vmul.f32 %v1781, %v1789
        %v1806 = vmul.f32 %v1782, %v1789
        %v1807 = vmul.f32 %v523, %v1377
        %v1808 = vmul.f32 %v523, %v1378
        %v1809 = vmul.f32 %v523, %v1379
        %v1810 = vmul.f32 %v523, %v1380
        %v1811 = vmul.f32 %v523, %v1381
        %v1812 = vmul.f32 %v523, %v1382
        %v1813 = vmul.f32 %v523, %v1383
        %v1814 = vmul.f32 %v523, %v1384
        %v1815 = vmul.f32 %v523, %v1385
        %v1816 = vmul.f32 %v523, %v1386
        %v1817 = vmul.f32 %v523, %v1387
        %v1818 = vmul.f32 %v523, %v1388
        %v1819 = vmul.f32 %v523, %v1389
        %v1820 = vmul.f32 %v523, %v1390
        %v1821 = vmul.f32 %v523, %v1391
        %v1822 = vmul.f32 %v523, %v1392
        %v1823 = vmul.f32 %v1807, %v1377
        %v1824 = vmul.f32 %v1808, %v1378
        %v1825 = vmul.f32 %v1809, %v1379
        %v1826 = vmul.f32 %v1810, %v1380
        %v1827 = vmul.f32 %v1811, %v1381
        %v1828 = vmul.f32 %v1812, %v1382
        %v1829 = vmul.f32 %v1813, %v1383
        %v1830 = vmul.f32 %v1814, %v1384
        %v1831 = vmul.f32 %v1815, %v1385
        %v1832 = vmul.f32 %v1816, %v1386
        %v1833 = vmul.f32 %v1817, %v1387
        %v1834 = vmul.f32 %v1818, %v1388
        %v1835 = vmul.f32 %v1819, %v1389
        %v1836 = vmul.f32 %v1820, %v1390
        %v1837 = vmul.f32 %v1821, %v1391
        %v1838 = vmul.f32 %v1822, %v1392
        %v1839 = vmul.f32 %v1823, %v1377
        %v1840 = vmul.f32 %v1824, %v1378
        %v1841 = vmul.f32 %v1825, %v1379
        %v1842 = vmul.f32 %v1826, %v1380
        %v1843 = vmul.f32 %v1827, %v1381
        %v1844 = vmul.f32 %v1828, %v1382
        %v1845 = vmul.f32 %v1829, %v1383
        %v1846 = vmul.f32 %v1830, %v1384
        %v1847 = vmul.f32 %v1831, %v1385
        %v1848 = vmul.f32 %v1832, %v1386
        %v1849 = vmul.f32 %v1833, %v1387
        %v1850 = vmul.f32 %v1834, %v1388
        %v1851 = vmul.f32 %v1835, %v1389
        %v1852 = vmul.f32 %v1836, %v1390
        %v1853 = vmul.f32 %v1837, %v1391
        %v1854 = vmul.f32 %v1838, %v1392
        %v1855 = vrcp.pop 3.0
        %v1856 = vmul.f32 %v1839, %v1855
        %v1857 = vmul.f32 %v1840, %v1855
        %v1858 = vmul.f32 %v1841, %v1855
        %v1859 = vmul.f32 %v1842, %v1855
        %v1860 = vmul.f32 %v1843, %v1855
        %v1861 = vmul.f32 %v1844, %v1855
        %v1862 = vmul.f32 %v1845, %v1855
        %v1863 = vmul.f32 %v1846, %v1855
        %v1864 = vmul.f32 %v1847, %v1855
        %v1865 = vmul.f32 %v1848, %v1855
        %v1866 = vmul.f32 %v1849, %v1855
        %v1867 = vmul.f32 %v1850, %v1855
        %v1868 = vmul.f32 %v1851, %v1855
        %v1869 = vmul.f32 %v1852, %v1855
        %v1870 = vmul.f32 %v1853, %v1855
        %v1871 = vmul.f32 %v1854, %v1855
        %v1872 = vsub.f32 %v1377, %v1856
        %v1873 = vsub.f32 %v1378, %v1857
        %v1874 = vsub.f32 %v1379, %v1858
        %v1875 = vsub.f32 %v1380, %v1859
        %v1876 = vsub.f32 %v1381, %v1860
        %v1877 = vsub.f32 %v1382, %v1861
        %v1878 = vsub.f32 %v1383, %v1862
        %v1879 = vsub.f32 %v1384, %v1863
        %v1880 = vsub.f32 %v1385, %v1864
        %v1881 = vsub.f32 %v1386, %v1865
        %v1882 = vsub.f32 %v1387, %v1866
        %v1883 = vsub.f32 %v1388, %v1867
        %v1884 = vsub.f32 %v1389, %v1868
        %v1885 = vsub.f32 %v1390, %v1869
        %v1886 = vsub.f32 %v1391, %v1870
        %v1887 = vsub.f32 %v1392, %v1871
        %vm1888 = vcmp.le.f32.partialorder %v1029, 1e-08
        %v1889 = vsel %vm1888, 1, 0
        %v1890 = vlaneseq
        %v1891 = vshrl.u32 %v1890, 7
        %v1892 = vsub.s32 0, %v1891
        %v1893 = vrot.slane %v1889, %v1892
        %vm1894 = vcmp.eq.s32.totalorder %v1893, 1
        %v1895 = vsel %vm1894, %v1872, %v1791
        %v1896 = vsel %vm1894, %v1873, %v1792
        %v1897 = vsel %vm1894, %v1874, %v1793
        %v1898 = vsel %vm1894, %v1875, %v1794
        %v1899 = vsel %vm1894, %v1876, %v1795
        %v1900 = vsel %vm1894, %v1877, %v1796
        %v1901 = vsel %vm1894, %v1878, %v1797
        %v1902 = vsel %vm1894, %v1879, %v1798
        %v1903 = vsel %vm1894, %v1880, %v1799
        %v1904 = vsel %vm1894, %v1881, %v1800
        %v1905 = vsel %vm1894, %v1882, %v1801
        %v1906 = vsel %vm1894, %v1883, %v1802
        %v1907 = vsel %vm1894, %v1884, %v1803
        %v1908 = vsel %vm1894, %v1885, %v1804
        %v1909 = vsel %vm1894, %v1886, %v1805
        %v1910 = vsel %vm1894, %v1887, %v1806
        %v1911 = vmul.f32 %v1895, 0.5
        %v1912 = vmul.f32 %v1896, 0.5
        %v1913 = vmul.f32 %v1897, 0.5
        %v1914 = vmul.f32 %v1898, 0.5
        %v1915 = vmul.f32 %v1899, 0.5
        %v1916 = vmul.f32 %v1900, 0.5
        %v1917 = vmul.f32 %v1901, 0.5
        %v1918 = vmul.f32 %v1902, 0.5
        %v1919 = vmul.f32 %v1903, 0.5
        %v1920 = vmul.f32 %v1904, 0.5
        %v1921 = vmul.f32 %v1905, 0.5
        %v1922 = vmul.f32 %v1906, 0.5
        %v1923 = vmul.f32 %v1907, 0.5
        %v1924 = vmul.f32 %v1908, 0.5
        %v1925 = vmul.f32 %v1909, 0.5
        %v1926 = vmul.f32 %v1910, 0.5
        %v1927 = vmul.f32 %v1397, %v1911
        %v1928 = vmul.f32 %v1397, %v1912
        %v1929 = vmul.f32 %v1397, %v1913
        %v1930 = vmul.f32 %v1397, %v1914
        %v1931 = vmul.f32 %v1397, %v1915
        %v1932 = vmul.f32 %v1397, %v1916
        %v1933 = vmul.f32 %v1397, %v1917
        %v1934 = vmul.f32 %v1397, %v1918
        %v1935 = vmul.f32 %v1397, %v1919
        %v1936 = vmul.f32 %v1397, %v1920
        %v1937 = vmul.f32 %v1397, %v1921
        %v1938 = vmul.f32 %v1397, %v1922
        %v1939 = vmul.f32 %v1397, %v1923
        %v1940 = vmul.f32 %v1397, %v1924
        %v1941 = vmul.f32 %v1397, %v1925
        %v1942 = vmul.f32 %v1397, %v1926
        %v1943 = vtanh.pop %v1927
        %v1944 = vtanh.pop %v1928
        %v1945 = vtanh.pop %v1929
        %v1946 = vtanh.pop %v1930
        %v1947 = vtanh.pop %v1931
        %v1948 = vtanh.pop %v1932
        %v1949 = vtanh.pop %v1933
        %v1950 = vtanh.pop %v1934
        %v1951 = vtanh.pop %v1935
        %v1952 = vtanh.pop %v1936
        %v1953 = vtanh.pop %v1937
        %v1954 = vtanh.pop %v1938
        %v1955 = vtanh.pop %v1939
        %v1956 = vtanh.pop %v1940
        %v1957 = vtanh.pop %v1941
        %v1958 = vtanh.pop %v1942
        %v1959 = vmul.f32 %v1943, %v1789
        %v1960 = vmul.f32 %v1944, %v1789
        %v1961 = vmul.f32 %v1945, %v1789
        %v1962 = vmul.f32 %v1946, %v1789
        %v1963 = vmul.f32 %v1947, %v1789
        %v1964 = vmul.f32 %v1948, %v1789
        %v1965 = vmul.f32 %v1949, %v1789
        %v1966 = vmul.f32 %v1950, %v1789
        %v1967 = vmul.f32 %v1951, %v1789
        %v1968 = vmul.f32 %v1952, %v1789
        %v1969 = vmul.f32 %v1953, %v1789
        %v1970 = vmul.f32 %v1954, %v1789
        %v1971 = vmul.f32 %v1955, %v1789
        %v1972 = vmul.f32 %v1956, %v1789
        %v1973 = vmul.f32 %v1957, %v1789
        %v1974 = vmul.f32 %v1958, %v1789
        %v1975 = vmul.f32 %v523, %v1911
        %v1976 = vmul.f32 %v523, %v1912
        %v1977 = vmul.f32 %v523, %v1913
        %v1978 = vmul.f32 %v523, %v1914
        %v1979 = vmul.f32 %v523, %v1915
        %v1980 = vmul.f32 %v523, %v1916
        %v1981 = vmul.f32 %v523, %v1917
        %v1982 = vmul.f32 %v523, %v1918
        %v1983 = vmul.f32 %v523, %v1919
        %v1984 = vmul.f32 %v523, %v1920
        %v1985 = vmul.f32 %v523, %v1921
        %v1986 = vmul.f32 %v523, %v1922
        %v1987 = vmul.f32 %v523, %v1923
        %v1988 = vmul.f32 %v523, %v1924
        %v1989 = vmul.f32 %v523, %v1925
        %v1990 = vmul.f32 %v523, %v1926
        %v1991 = vmul.f32 %v1975, %v1911
        %v1992 = vmul.f32 %v1976, %v1912
        %v1993 = vmul.f32 %v1977, %v1913
        %v1994 = vmul.f32 %v1978, %v1914
        %v1995 = vmul.f32 %v1979, %v1915
        %v1996 = vmul.f32 %v1980, %v1916
        %v1997 = vmul.f32 %v1981, %v1917
        %v1998 = vmul.f32 %v1982, %v1918
        %v1999 = vmul.f32 %v1983, %v1919
        %v2000 = vmul.f32 %v1984, %v1920
        %v2001 = vmul.f32 %v1985, %v1921
        %v2002 = vmul.f32 %v1986, %v1922
        %v2003 = vmul.f32 %v1987, %v1923
        %v2004 = vmul.f32 %v1988, %v1924
        %v2005 = vmul.f32 %v1989, %v1925
        %v2006 = vmul.f32 %v1990, %v1926
        %v2007 = vmul.f32 %v1991, %v1911
        %v2008 = vmul.f32 %v1992, %v1912
        %v2009 = vmul.f32 %v1993, %v1913
        %v2010 = vmul.f32 %v1994, %v1914
        %v2011 = vmul.f32 %v1995, %v1915
        %v2012 = vmul.f32 %v1996, %v1916
        %v2013 = vmul.f32 %v1997, %v1917
        %v2014 = vmul.f32 %v1998, %v1918
        %v2015 = vmul.f32 %v1999, %v1919
        %v2016 = vmul.f32 %v2000, %v1920
        %v2017 = vmul.f32 %v2001, %v1921
        %v2018 = vmul.f32 %v2002, %v1922
        %v2019 = vmul.f32 %v2003, %v1923
        %v2020 = vmul.f32 %v2004, %v1924
        %v2021 = vmul.f32 %v2005, %v1925
        %v2022 = vmul.f32 %v2006, %v1926
        %v2023 = vmul.f32 %v2007, %v1855
        %v2024 = vmul.f32 %v2008, %v1855
        %v2025 = vmul.f32 %v2009, %v1855
        %v2026 = vmul.f32 %v2010, %v1855
        %v2027 = vmul.f32 %v2011, %v1855
        %v2028 = vmul.f32 %v2012, %v1855
        %v2029 = vmul.f32 %v2013, %v1855
        %v2030 = vmul.f32 %v2014, %v1855
        %v2031 = vmul.f32 %v2015, %v1855
        %v2032 = vmul.f32 %v2016, %v1855
        %v2033 = vmul.f32 %v2017, %v1855
        %v2034 = vmul.f32 %v2018, %v1855
        %v2035 = vmul.f32 %v2019, %v1855
        %v2036 = vmul.f32 %v2020, %v1855
        %v2037 = vmul.f32 %v2021, %v1855
        %v2038 = vmul.f32 %v2022, %v1855
        %v2039 = vadd.f32 %v1911, %v2023
        %v2040 = vadd.f32 %v1912, %v2024
        %v2041 = vadd.f32 %v1913, %v2025
        %v2042 = vadd.f32 %v1914, %v2026
        %v2043 = vadd.f32 %v1915, %v2027
        %v2044 = vadd.f32 %v1916, %v2028
        %v2045 = vadd.f32 %v1917, %v2029
        %v2046 = vadd.f32 %v1918, %v2030
        %v2047 = vadd.f32 %v1919, %v2031
        %v2048 = vadd.f32 %v1920, %v2032
        %v2049 = vadd.f32 %v1921, %v2033
        %v2050 = vadd.f32 %v1922, %v2034
        %v2051 = vadd.f32 %v1923, %v2035
        %v2052 = vadd.f32 %v1924, %v2036
        %v2053 = vadd.f32 %v1925, %v2037
        %v2054 = vadd.f32 %v1926, %v2038
        %v2055 = vsel %vm1894, %v2039, %v1959
        %v2056 = vsel %vm1894, %v2040, %v1960
        %v2057 = vsel %vm1894, %v2041, %v1961
        %v2058 = vsel %vm1894, %v2042, %v1962
        %v2059 = vsel %vm1894, %v2043, %v1963
        %v2060 = vsel %vm1894, %v2044, %v1964
        %v2061 = vsel %vm1894, %v2045, %v1965
        %v2062 = vsel %vm1894, %v2046, %v1966
        %v2063 = vsel %vm1894, %v2047, %v1967
        %v2064 = vsel %vm1894, %v2048, %v1968
        %v2065 = vsel %vm1894, %v2049, %v1969
        %v2066 = vsel %vm1894, %v2050, %v1970
        %v2067 = vsel %vm1894, %v2051, %v1971
        %v2068 = vsel %vm1894, %v2052, %v1972
        %v2069 = vsel %vm1894, %v2053, %v1973
        %v2070 = vsel %vm1894, %v2054, %v1974
        %v2071 = vrcp.pop %v1377
        %v2072 = vrcp.pop %v1378
        %v2073 = vrcp.pop %v1379
        %v2074 = vrcp.pop %v1380
        %v2075 = vrcp.pop %v1381
        %v2076 = vrcp.pop %v1382
        %v2077 = vrcp.pop %v1383
        %v2078 = vrcp.pop %v1384
        %v2079 = vrcp.pop %v1385
        %v2080 = vrcp.pop %v1386
        %v2081 = vrcp.pop %v1387
        %v2082 = vrcp.pop %v1388
        %v2083 = vrcp.pop %v1389
        %v2084 = vrcp.pop %v1390
        %v2085 = vrcp.pop %v1391
        %v2086 = vrcp.pop %v1392
        %v2087 = vmul.f32 %v2055, %v2071
        %v2088 = vmul.f32 %v2056, %v2072
        %v2089 = vmul.f32 %v2057, %v2073
        %v2090 = vmul.f32 %v2058, %v2074
        %v2091 = vmul.f32 %v2059, %v2075
        %v2092 = vmul.f32 %v2060, %v2076
        %v2093 = vmul.f32 %v2061, %v2077
        %v2094 = vmul.f32 %v2062, %v2078
        %v2095 = vmul.f32 %v2063, %v2079
        %v2096 = vmul.f32 %v2064, %v2080
        %v2097 = vmul.f32 %v2065, %v2081
        %v2098 = vmul.f32 %v2066, %v2082
        %v2099 = vmul.f32 %v2067, %v2083
        %v2100 = vmul.f32 %v2068, %v2084
        %v2101 = vmul.f32 %v2069, %v2085
        %v2102 = vmul.f32 %v2070, %v2086
        %v2103 = vmul.f32 %v2087, %v1361
        %v2104 = vmul.f32 %v2088, %v1362
        %v2105 = vmul.f32 %v2089, %v1363
        %v2106 = vmul.f32 %v2090, %v1364
        %v2107 = vmul.f32 %v2091, %v1365
        %v2108 = vmul.f32 %v2092, %v1366
        %v2109 = vmul.f32 %v2093, %v1367
        %v2110 = vmul.f32 %v2094, %v1368
        %v2111 = vmul.f32 %v2095, %v1369
        %v2112 = vmul.f32 %v2096, %v1370
        %v2113 = vmul.f32 %v2097, %v1371
        %v2114 = vmul.f32 %v2098, %v1372
        %v2115 = vmul.f32 %v2099, %v1373
        %v2116 = vmul.f32 %v2100, %v1374
        %v2117 = vmul.f32 %v2101, %v1375
        %v2118 = vmul.f32 %v2102, %v1376
        %2119 = vst [vmem:[%s261] sm:$0xff] %v2103
        %2120 = vst [vmem:[%s261 + $0x8] sm:$0xff] %v2104
        %2121 = vst [vmem:[%s261 + $0x10] sm:$0xff] %v2105
        %2122 = vst [vmem:[%s261 + $0x18] sm:$0xff] %v2106
        %2123 = vst [vmem:[%s261 + $0x20] sm:$0xff] %v2107
        %2124 = vst [vmem:[%s261 + $0x28] sm:$0xff] %v2108
        %2125 = vst [vmem:[%s261 + $0x30] sm:$0xff] %v2109
        %2126 = vst [vmem:[%s261 + $0x38] sm:$0xff] %v2110
        %2127 = vst [vmem:[%s261 + $0x40] sm:$0xff] %v2111
        %2128 = vst [vmem:[%s261 + $0x48] sm:$0xff] %v2112
        %2129 = vst [vmem:[%s261 + $0x50] sm:$0xff] %v2113
        %2130 = vst [vmem:[%s261 + $0x58] sm:$0xff] %v2114
        %2131 = vst [vmem:[%s261 + $0x60] sm:$0xff] %v2115
        %2132 = vst [vmem:[%s261 + $0x68] sm:$0xff] %v2116
        %2133 = vst [vmem:[%s261 + $0x70] sm:$0xff] %v2117
        %2134 = vst [vmem:[%s261 + $0x78] sm:$0xff] %v2118
        %s2135 = sand.u32 %s164, 1
        %s2136 = scalar_lea.sflag [#allocation3], %s2135
        %s2137 = sand.u32 %s164, 1
        %s2138 = smul.addr %s2137, 128
        %s2139 = scalar_lea.vmem [#allocation2], %s2138
        // Predicated region
        $region45: #{geometric_linearized_attention.3} parent=43 // pred_check
          %p2140 = pneg %p174
        $region46: #{geometric_linearized_attention.3} parent=43 // pred_check_branch
          %2142 = sbr.rel (%p2140) target = $region48
        $region47: #{geometric_linearized_attention.3} parent=43 // pred_region
          %s2143 = smul.u32 16, %s20
          %s2145 = ssub.s32 2048, 2048
          %2146 = vsyncadd %s2136, %s2145
          %s2147 = smul.addr %s2143, 128
          %s2148 = scalar_lea.hbm %s6, %s2147
          %s2149 = sshll.u32 %s2139, 4
          %s2150 = int_to_ptr.vmem [resolvable:$true] %s2149
          %2155 = dma.vmem_to_hbm [thread:$0]  %s2150, 2048, %s2148, %s2136, 128, 128, 8
        $region48: #{geometric_linearized_attention.3} parent=43 // pred_fallthru
          _
      $region44: #{geometric_linearized_attention.3} parent=5 // pred_fallthru
        _
      %p2156 = scmp.le.s32.totalorder 2, %s15
      // Predicated region
      $region49: #{geometric_linearized_attention.3} parent=5 // pred_check
        %p2157 = pneg %p2156
      $region50: #{geometric_linearized_attention.3} parent=5 // pred_check_branch
        %2159 = sbr.rel (%p2157) target = $region52
      $region51: #{geometric_linearized_attention.3} parent=5 // pred_region
        %s2160 = ssub.s32 %s15, 2
        // Predicated region
        $region53: #{geometric_linearized_attention.3} parent=51 // pred_check
          %p2161 = pneg %p180
        $region54: #{geometric_linearized_attention.3} parent=51 // pred_check_branch
          %2163 = sbr.rel (%p2161) target = $region56
        $region55: #{geometric_linearized_attention.3} parent=51 // pred_region
          %s2164 = sand.u32 %s165, 1
          %s2165 = scalar_lea.sflag [#allocation3], %s2164
          %s2166 = sand.u32 %s165, 1
          %s2167 = smul.addr %s2166, 128
          %s2168 = scalar_lea.vmem [#allocation2], %s2167
          %2169 = dma.done %s2165, 2048
        $region56: #{geometric_linearized_attention.3} parent=51 // pred_fallthru
          _
      $region52: #{geometric_linearized_attention.3} parent=5 // pred_fallthru
        _
    $region6: #{geometric_linearized_attention.3} parent=1 // loop_footer
      %s19 = sadd.s32 1, %s15
    $region7: #{geometric_linearized_attention.3} parent=1 // loop_footer_branch
      %14 = sbr.rel target = $region3
    $region8: #{geometric_linearized_attention.3} parent=1 // loop_exit
      _
    %2170 = vsyncpa [#allocation3], 1
    %s2171 = scalar_lea.sflag [#allocation3], 1
    %2172 = vsyncpa %s2171, 1

</llo_original>
